<compile_context>
chip_gen: v5e
topology: v5e:2x2
jax: 0.10.0
libtpu: 0.0.40
codegen_flags: <defaults>
</compile_context>

<pallas_src>
import functools

import jax
import jax.numpy as jnp
from jax.experimental import pallas as pl
from jax.experimental.pallas import tpu as pltpu

LN_EPS = 1e-12
CHUNK = 16     # word rows gathered / normalized / stored per inner step
NBUF = 3       # gather pipeline depth (outstanding chunks)


def bert_embedding_kernel(tok_ref,            # SMEM scalar prefetch: (B*S,) int32 token ids
                          word_hbm,           # HBM (pl.ANY): (V, H) word-embedding table
                          pos_ref,            # VMEM (MAX_POS, H): full position table (resident)
                          type_ref,           # VMEM (TV, H): token-type table (resident)
                          ttid_ref,           # VMEM (row_tile, 1): int32 token-type ids
                          gamma_ref,          # VMEM (1, H)
                          beta_ref,           # VMEM (1, H)
                          out_ref,            # VMEM (row_tile, H) output block
                          gather_ref,         # VMEM scratch (NBUF, CHUNK, H)
                          copy_sems,          # DMA semaphores (NBUF,) -- one per slot
                          *, seq_len, row_tile, type_vocab, eps):
    b = pl.program_id(0)
    j = pl.program_id(1)
    H = out_ref.shape[1]
    n_chunks = row_tile // CHUNK
    row0 = b * seq_len + j * row_tile          # flat (B*S) index of this tile's first row
    pos0 = j * row_tile                        # position index of this tile's first row

    def read_ids(c):
        # SMEM scalar reads for chunk c (hoisted off the DMA-wait critical path).
        base = row0 + c * CHUNK
        return [tok_ref[base + r] for r in range(CHUNK)]

    def issue_chunk(ids, slot):
        # CHUNK independent word-row gathers, all signalling the same per-slot sem.
        for r in range(CHUNK):
            pltpu.make_async_copy(word_hbm.at[ids[r]],
                                  gather_ref.at[slot, r],
                                  copy_sems.at[slot]).start()

    def wait_chunk(slot):
        # Single aggregated wait: descriptor covers the whole chunk's bytes
        # (CHUNK * H * itemsize == sum of the per-row copies issued above).
        pltpu.make_async_copy(word_hbm.at[pl.ds(0, CHUNK)],
                              gather_ref.at[slot],
                              copy_sems.at[slot]).wait()

    # Prologue: fill the gather pipeline.
    for p in range(min(NBUF, n_chunks)):
        issue_chunk(read_ids(p), p)

    # Loop-invariant hoists (JAX does not CSE broadcasts/casts inside the loop).
    inv_h = jnp.float32(1.0 / H)
    gamma = gamma_ref[...].astype(jnp.float32)
    beta = beta_ref[...].astype(jnp.float32)
    type_rows = [type_ref[pl.ds(t, 1), :].astype(jnp.float32)
                 for t in range(type_vocab)]

    @pl.loop(0, n_chunks)
    def _(c):
        slot = c % NBUF

        # Next chunk's token ids read from SMEM BEFORE the wait (clamped so the
        # reads always stay inside this tile; the DMA issue itself is gated).
        c_next = jnp.minimum(c + NBUF, n_chunks - 1)
        next_ids = read_ids(c_next)

        wait_chunk(slot)
        w = gather_ref[slot].astype(jnp.float32)      # (CHUNK, H) word rows -> vregs

        # This slot's data is in registers: refill it while we compute below.
        @pl.when(c + NBUF < n_chunks)
        def _():
            issue_chunk(next_ids, slot)

        rows = pl.ds(pl.multiple_of(c * CHUNK, CHUNK), CHUNK)
        prow = pl.ds(pl.multiple_of(pos0 + c * CHUNK, CHUNK), CHUNK)

        # Token-type embedding: vectorized select over the tiny type vocabulary.
        ttid = ttid_ref[rows, :]                      # (CHUNK, 1) int32
        if type_vocab == 1:
            te = type_rows[0]
        elif type_vocab == 2:
            te = jnp.where(ttid == 0, type_rows[0], type_rows[1])
        else:
            te = type_rows[type_vocab - 1]
            for t in range(type_vocab - 2, -1, -1):
                te = jnp.where(ttid == t, type_rows[t], te)

        x = w + pos_ref[prow, :].astype(jnp.float32) + te

        # Single-pass LayerNorm over the hidden dim (rsqrt on the EUP).
        s1 = jnp.sum(x, axis=-1, keepdims=True)
        s2 = jnp.sum(x * x, axis=-1, keepdims=True)
        mean = s1 * inv_h
        var = jnp.maximum(s2 * inv_h - mean * mean, 0.0)   # clamp: no rsqrt(negative)
        y = (x - mean) * jax.lax.rsqrt(var + eps)
        out_ref[rows, :] = (y * gamma + beta).astype(out_ref.dtype)

    # TODO(synk): nn.Dropout(p=0.1) is identity in eval mode; training-mode
    # stochastic dropout is not applied here.


def _pick_row_tile(S, B, cap=1024):
    cap = min(S, cap)
    if B == 1:
        # Keep at least 2 grid points so v7x's 2 TensorCores both get work.
        cap = min(cap, max(CHUNK, S // 2))
    best = CHUNK
    t = CHUNK
    while t <= cap:
        if S % t == 0:
            best = t
        t += CHUNK
    return best


def bert_embedding(token_ids, token_type_ids,
                   word_table, pos_table, type_table, gamma, beta,
                   *, eps=LN_EPS, row_tile=None, out_dtype=jnp.float32):
    B, S = token_ids.shape
    V, H = word_table.shape
    MAX_POS = pos_table.shape[0]
    TV = type_table.shape[0]

    assert S % CHUNK == 0, f"sequence length must be a multiple of {CHUNK}"
    assert S <= MAX_POS, "sequence longer than max_position_embeddings"
    # 1-D SMEM prefetch pads to next power of two of 4N bytes; keep it modest.
    assert B * S <= (1 << 17), "token-id scalar prefetch would exceed SMEM budget"

    if row_tile is None:
        row_tile = _pick_row_tile(S, B)
    assert S % row_tile == 0 and row_tile % CHUNK == 0

    # Clamp ids: DMA / VMEM accesses are not bounds-checked on TPU.
    tok_flat = jnp.clip(token_ids.astype(jnp.int32), 0, V - 1).reshape(-1)
    ttid_col = jnp.clip(token_type_ids.astype(jnp.int32), 0, TV - 1).reshape(B, S, 1)

    gamma2 = gamma.reshape(1, H)
    beta2 = beta.reshape(1, H)

    kernel = functools.partial(bert_embedding_kernel,
                               seq_len=S, row_tile=row_tile,
                               type_vocab=TV, eps=eps)

    isz = lambda dt: jnp.dtype(dt).itemsize
    vmem_est = (2 * row_tile * H * isz(out_dtype)          # output (double-buffered)
                + 2 * MAX_POS * H * isz(pos_table.dtype)   # resident position table
                + 2 * TV * H * isz(type_table.dtype)       # resident type table
                + 2 * row_tile * 128 * 4                   # type-id column (lane-padded)
                + 4 * H * 4                                # gamma / beta
                + NBUF * CHUNK * H * isz(word_table.dtype))  # gather scratch
    vmem_limit = int(min(100 * 2 ** 20, max(32 * 2 ** 20, 2 * vmem_est)))

    grid_spec = pltpu.PrefetchScalarGridSpec(
        num_scalar_prefetch=1,
        grid=(B, S // row_tile),
        in_specs=[
            pl.BlockSpec(memory_space=pl.ANY),                               # word table stays in HBM
            pl.BlockSpec((MAX_POS, H), lambda b, j, tok: (0, 0)),            # position table: fetched once
            pl.BlockSpec((TV, H), lambda b, j, tok: (0, 0)),                 # tiny type table: fetched once
            pl.BlockSpec((None, row_tile, 1), lambda b, j, tok: (b, j, 0)),  # type-id column for this tile
            pl.BlockSpec((1, H), lambda b, j, tok: (0, 0)),                  # gamma
            pl.BlockSpec((1, H), lambda b, j, tok: (0, 0)),                  # beta
        ],
        out_specs=pl.BlockSpec((None, row_tile, H), lambda b, j, tok: (b, j, 0)),
        scratch_shapes=[
            pltpu.VMEM((NBUF, CHUNK, H), word_table.dtype),
            pltpu.SemaphoreType.DMA((NBUF,)),
        ],
    )

    return pl.pallas_call(
        kernel,
        out_shape=jax.ShapeDtypeStruct((B, S, H), out_dtype),
        grid_spec=grid_spec,
        compiler_params=pltpu.CompilerParams(
            dimension_semantics=("parallel", "parallel"),
            vmem_limit_bytes=vmem_limit),
    )(tok_flat, word_table, pos_table, type_table, ttid_col, gamma2, beta2)


def reference(token_ids, token_type_ids, word_table, pos_table, type_table, gamma, beta):
    we = word_table[token_ids]
    te = type_table[token_type_ids]
    S = token_ids.shape[1]
    pe = pos_table[jnp.arange(S)][None, :, :]
    x = we + te + pe
    mean = x.mean(-1, keepdims=True)
    var = ((x - mean) ** 2).mean(-1, keepdims=True)
    y = (x - mean) / jnp.sqrt(var + LN_EPS)
    return y * gamma + beta


if __name__ == "__main__":
    # Small synthetic shapes consistent with the module's forward.
    B, S, H = 2, 64, 128
    VOCAB, MAX_POS, TYPE_VOCAB, PAD_ID = 96, 128, 2, 0

    key = jax.random.PRNGKey(0)
    k_w, k_p, k_t, k_g, k_b, k_tok, k_typ = jax.random.split(key, 7)

    # Deterministic parameter init (synthetic, not a checkpoint).
    word_table = jax.random.normal(k_w, (VOCAB, H), jnp.float32) * 0.02
    word_table = word_table.at[PAD_ID].set(0.0)   # padding_idx row initialized to zero
    pos_table = jax.random.normal(k_p, (MAX_POS, H), jnp.float32) * 0.02
    type_table = jax.random.normal(k_t, (TYPE_VOCAB, H), jnp.float32) * 0.02
    gamma = 1.0 + 0.1 * jax.random.normal(k_g, (H,), jnp.float32)
    beta = 0.1 * jax.random.normal(k_b, (H,), jnp.float32)

    token_ids = jax.random.randint(k_tok, (B, S), 0, VOCAB, jnp.int32)
    token_type_ids = jax.random.randint(k_typ, (B, S), 0, TYPE_VOCAB, jnp.int32)

    ref = reference(token_ids, token_type_ids,
                    word_table, pos_table, type_table, gamma, beta)

    # row_tile=64: 4 chunks/step > NBUF=3 -> exercises the steady-state prefetch path.
    out1 = jax.block_until_ready(
        bert_embedding(token_ids, token_type_ids,
                       word_table, pos_table, type_table, gamma, beta, row_tile=64))
    assert out1.shape == (B, S, H) and out1.dtype == jnp.float32
    assert jnp.allclose(out1, ref, atol=1e-5, rtol=1e-4), "mismatch vs reference (row_tile=64)"

    # row_tile=32: two tiles per sequence -> exercises j>0 position indexing.
    out2 = jax.block_until_ready(
        bert_embedding(token_ids, token_type_ids,
                       word_table, pos_table, type_table, gamma, beta, row_tile=32))
    assert jnp.allclose(out2, ref, atol=1e-5, rtol=1e-4), "mismatch vs reference (row_tile=32)"

    print("KERNEL_OK")
</pallas_src>

<mosaic_0001>
module attributes {stable_mosaic.version = 11 : i64} {
  func.func @bert_embedding_kernel(%arg0: i32, %arg1: i32, %arg2: memref<128xi32, #tpu.memory_space<smem>>, %arg3: memref<96x128xf32, #tpu.memory_space<any>>, %arg4: memref<128x128xf32, #tpu.memory_space<vmem>>, %arg5: memref<2x128xf32, #tpu.memory_space<vmem>>, %arg6: memref<1x64x1xi32, #tpu.memory_space<vmem>>, %arg7: memref<1x128xf32, #tpu.memory_space<vmem>>, %arg8: memref<1x128xf32, #tpu.memory_space<vmem>>, %arg9: memref<1x64x128xf32, #tpu.memory_space<vmem>>, %arg10: memref<3x16x128xf32, #tpu.memory_space<vmem>>, %arg11: memref<3x!tpu.dma_semaphore, #tpu.memory_space<semaphore_mem>>) attributes {dimension_semantics = [#tpu.dimension_semantics<parallel>, #tpu.dimension_semantics<parallel>], iteration_bounds = array<i64: 2, 1>, scalar_prefetch = 1 : i64, scratch_operands = 2 : i64, tpu.core_type = #tpu.core_type<tc>, window_params = [{}, {pipeline_mode = #tpu.pipeline_mode<synchronous>, transform_indices = @transform_1, window_bounds = array<i64: 128, 128>}, {pipeline_mode = #tpu.pipeline_mode<synchronous>, transform_indices = @transform_2, window_bounds = array<i64: 2, 128>}, {transform_indices = @transform_3, window_bounds = array<i64: 1, 64, 1>}, {pipeline_mode = #tpu.pipeline_mode<synchronous>, transform_indices = @transform_4, window_bounds = array<i64: 1, 128>}, {pipeline_mode = #tpu.pipeline_mode<synchronous>, transform_indices = @transform_5, window_bounds = array<i64: 1, 128>}, {transform_indices = @transform_6, window_bounds = array<i64: 1, 64, 128>}]} {
    %c64_i32 = arith.constant 64 : i32
    %0 = arith.muli %arg0, %c64_i32 : i32
    %c64_i32_0 = arith.constant 64 : i32
    %1 = arith.muli %arg1, %c64_i32_0 : i32
    %2 = arith.addi %0, %1 : i32
    %c64_i32_1 = arith.constant 64 : i32
    %3 = arith.muli %arg1, %c64_i32_1 : i32
    %c0_i32 = arith.constant 0 : i32
    %4 = arith.addi %2, %c0_i32 : i32
    %c0_i32_2 = arith.constant 0 : i32
    %5 = arith.addi %4, %c0_i32_2 : i32
    %6 = arith.index_cast %5 : i32 to index
    %7 = memref.load %arg2[%6] : memref<128xi32, #tpu.memory_space<smem>>
    %c1_i32 = arith.constant 1 : i32
    %8 = arith.addi %4, %c1_i32 : i32
    %9 = arith.index_cast %8 : i32 to index
    %10 = memref.load %arg2[%9] : memref<128xi32, #tpu.memory_space<smem>>
    %c2_i32 = arith.constant 2 : i32
    %11 = arith.addi %4, %c2_i32 : i32
    %12 = arith.index_cast %11 : i32 to index
    %13 = memref.load %arg2[%12] : memref<128xi32, #tpu.memory_space<smem>>
    %c3_i32 = arith.constant 3 : i32
    %14 = arith.addi %4, %c3_i32 : i32
    %15 = arith.index_cast %14 : i32 to index
    %16 = memref.load %arg2[%15] : memref<128xi32, #tpu.memory_space<smem>>
    %c4_i32 = arith.constant 4 : i32
    %17 = arith.addi %4, %c4_i32 : i32
    %18 = arith.index_cast %17 : i32 to index
    %19 = memref.load %arg2[%18] : memref<128xi32, #tpu.memory_space<smem>>
    %c5_i32 = arith.constant 5 : i32
    %20 = arith.addi %4, %c5_i32 : i32
    %21 = arith.index_cast %20 : i32 to index
    %22 = memref.load %arg2[%21] : memref<128xi32, #tpu.memory_space<smem>>
    %c6_i32 = arith.constant 6 : i32
    %23 = arith.addi %4, %c6_i32 : i32
    %24 = arith.index_cast %23 : i32 to index
    %25 = memref.load %arg2[%24] : memref<128xi32, #tpu.memory_space<smem>>
    %c7_i32 = arith.constant 7 : i32
    %26 = arith.addi %4, %c7_i32 : i32
    %27 = arith.index_cast %26 : i32 to index
    %28 = memref.load %arg2[%27] : memref<128xi32, #tpu.memory_space<smem>>
    %c8_i32 = arith.constant 8 : i32
    %29 = arith.addi %4, %c8_i32 : i32
    %30 = arith.index_cast %29 : i32 to index
    %31 = memref.load %arg2[%30] : memref<128xi32, #tpu.memory_space<smem>>
    %c9_i32 = arith.constant 9 : i32
    %32 = arith.addi %4, %c9_i32 : i32
    %33 = arith.index_cast %32 : i32 to index
    %34 = memref.load %arg2[%33] : memref<128xi32, #tpu.memory_space<smem>>
    %c10_i32 = arith.constant 10 : i32
    %35 = arith.addi %4, %c10_i32 : i32
    %36 = arith.index_cast %35 : i32 to index
    %37 = memref.load %arg2[%36] : memref<128xi32, #tpu.memory_space<smem>>
    %c11_i32 = arith.constant 11 : i32
    %38 = arith.addi %4, %c11_i32 : i32
    %39 = arith.index_cast %38 : i32 to index
    %40 = memref.load %arg2[%39] : memref<128xi32, #tpu.memory_space<smem>>
    %c12_i32 = arith.constant 12 : i32
    %41 = arith.addi %4, %c12_i32 : i32
    %42 = arith.index_cast %41 : i32 to index
    %43 = memref.load %arg2[%42] : memref<128xi32, #tpu.memory_space<smem>>
    %c13_i32 = arith.constant 13 : i32
    %44 = arith.addi %4, %c13_i32 : i32
    %45 = arith.index_cast %44 : i32 to index
    %46 = memref.load %arg2[%45] : memref<128xi32, #tpu.memory_space<smem>>
    %c14_i32 = arith.constant 14 : i32
    %47 = arith.addi %4, %c14_i32 : i32
    %48 = arith.index_cast %47 : i32 to index
    %49 = memref.load %arg2[%48] : memref<128xi32, #tpu.memory_space<smem>>
    %c15_i32 = arith.constant 15 : i32
    %50 = arith.addi %4, %c15_i32 : i32
    %51 = arith.index_cast %50 : i32 to index
    %52 = memref.load %arg2[%51] : memref<128xi32, #tpu.memory_space<smem>>
    %c0_i32_3 = arith.constant 0 : i32
    %c0_i32_4 = arith.constant 0 : i32
    %c0_i32_5 = arith.constant 0 : i32
    %c0_i32_6 = arith.constant 0 : i32
    %53 = tpu.memref_slice %arg3[%7, %c0_i32_6] : memref<96x128xf32, #tpu.memory_space<any>> -> memref<1x128xf32, #tpu.memory_space<any>>
    %54 = tpu.memref_squeeze %53 : memref<1x128xf32, #tpu.memory_space<any>> -> memref<128xf32, #tpu.memory_space<any>>
    %c0_i32_7 = arith.constant 0 : i32
    %55 = tpu.memref_slice %arg10[%c0_i32_3, %c0_i32_4, %c0_i32_7] : memref<3x16x128xf32, #tpu.memory_space<vmem>> -> memref<1x1x128xf32, #tpu.memory_space<vmem>>
    %56 = tpu.memref_squeeze %55 : memref<1x1x128xf32, #tpu.memory_space<vmem>> -> memref<128xf32, #tpu.memory_space<vmem>>
    %57 = tpu.memref_slice %arg11[%c0_i32_5] : memref<3x!tpu.dma_semaphore, #tpu.memory_space<semaphore_mem>> -> memref<1x!tpu.dma_semaphore, #tpu.memory_space<semaphore_mem>>
    %58 = tpu.memref_squeeze %57 : memref<1x!tpu.dma_semaphore, #tpu.memory_space<semaphore_mem>> -> memref<!tpu.dma_semaphore, #tpu.memory_space<semaphore_mem>>
    tpu.enqueue_dma source(%54 : memref<128xf32, #tpu.memory_space<any>>) target(%56 : memref<128xf32, #tpu.memory_space<vmem>>) target_semaphore(%58 : memref<!tpu.dma_semaphore, #tpu.memory_space<semaphore_mem>>)
    %c0_i32_8 = arith.constant 0 : i32
    %c1_i32_9 = arith.constant 1 : i32
    %c0_i32_10 = arith.constant 0 : i32
    %c0_i32_11 = arith.constant 0 : i32
    %59 = tpu.memref_slice %arg3[%10, %c0_i32_11] : memref<96x128xf32, #tpu.memory_space<any>> -> memref<1x128xf32, #tpu.memory_space<any>>
    %60 = tpu.memref_squeeze %59 : memref<1x128xf32, #tpu.memory_space<any>> -> memref<128xf32, #tpu.memory_space<any>>
    %c0_i32_12 = arith.constant 0 : i32
    %61 = tpu.memref_slice %arg10[%c0_i32_8, %c1_i32_9, %c0_i32_12] : memref<3x16x128xf32, #tpu.memory_space<vmem>> -> memref<1x1x128xf32, #tpu.memory_space<vmem>>
    %62 = tpu.memref_squeeze %61 : memref<1x1x128xf32, #tpu.memory_space<vmem>> -> memref<128xf32, #tpu.memory_space<vmem>>
    %63 = tpu.memref_slice %arg11[%c0_i32_10] : memref<3x!tpu.dma_semaphore, #tpu.memory_space<semaphore_mem>> -> memref<1x!tpu.dma_semaphore, #tpu.memory_space<semaphore_mem>>
    %64 = tpu.memref_squeeze %63 : memref<1x!tpu.dma_semaphore, #tpu.memory_space<semaphore_mem>> -> memref<!tpu.dma_semaphore, #tpu.memory_space<semaphore_mem>>
    tpu.enqueue_dma source(%60 : memref<128xf32, #tpu.memory_space<any>>) target(%62 : memref<128xf32, #tpu.memory_space<vmem>>) target_semaphore(%64 : memref<!tpu.dma_semaphore, #tpu.memory_space<semaphore_mem>>)
    %c0_i32_13 = arith.constant 0 : i32
    %c2_i32_14 = arith.constant 2 : i32
    %c0_i32_15 = arith.constant 0 : i32
    %c0_i32_16 = arith.constant 0 : i32
    %65 = tpu.memref_slice %arg3[%13, %c0_i32_16] : memref<96x128xf32, #tpu.memory_space<any>> -> memref<1x128xf32, #tpu.memory_space<any>>
    %66 = tpu.memref_squeeze %65 : memref<1x128xf32, #tpu.memory_space<any>> -> memref<128xf32, #tpu.memory_space<any>>
    %c0_i32_17 = arith.constant 0 : i32
    %67 = tpu.memref_slice %arg10[%c0_i32_13, %c2_i32_14, %c0_i32_17] : memref<3x16x128xf32, #tpu.memory_space<vmem>> -> memref<1x1x128xf32, #tpu.memory_space<vmem>>
    %68 = tpu.memref_squeeze %67 : memref<1x1x128xf32, #tpu.memory_space<vmem>> -> memref<128xf32, #tpu.memory_space<vmem>>
    %69 = tpu.memref_slice %arg11[%c0_i32_15] : memref<3x!tpu.dma_semaphore, #tpu.memory_space<semaphore_mem>> -> memref<1x!tpu.dma_semaphore, #tpu.memory_space<semaphore_mem>>
    %70 = tpu.memref_squeeze %69 : memref<1x!tpu.dma_semaphore, #tpu.memory_space<semaphore_mem>> -> memref<!tpu.dma_semaphore, #tpu.memory_space<semaphore_mem>>
    tpu.enqueue_dma source(%66 : memref<128xf32, #tpu.memory_space<any>>) target(%68 : memref<128xf32, #tpu.memory_space<vmem>>) target_semaphore(%70 : memref<!tpu.dma_semaphore, #tpu.memory_space<semaphore_mem>>)
    %c0_i32_18 = arith.constant 0 : i32
    %c3_i32_19 = arith.constant 3 : i32
    %c0_i32_20 = arith.constant 0 : i32
    %c0_i32_21 = arith.constant 0 : i32
    %71 = tpu.memref_slice %arg3[%16, %c0_i32_21] : memref<96x128xf32, #tpu.memory_space<any>> -> memref<1x128xf32, #tpu.memory_space<any>>
    %72 = tpu.memref_squeeze %71 : memref<1x128xf32, #tpu.memory_space<any>> -> memref<128xf32, #tpu.memory_space<any>>
    %c0_i32_22 = arith.constant 0 : i32
    %73 = tpu.memref_slice %arg10[%c0_i32_18, %c3_i32_19, %c0_i32_22] : memref<3x16x128xf32, #tpu.memory_space<vmem>> -> memref<1x1x128xf32, #tpu.memory_space<vmem>>
    %74 = tpu.memref_squeeze %73 : memref<1x1x128xf32, #tpu.memory_space<vmem>> -> memref<128xf32, #tpu.memory_space<vmem>>
    %75 = tpu.memref_slice %arg11[%c0_i32_20] : memref<3x!tpu.dma_semaphore, #tpu.memory_space<semaphore_mem>> -> memref<1x!tpu.dma_semaphore, #tpu.memory_space<semaphore_mem>>
    %76 = tpu.memref_squeeze %75 : memref<1x!tpu.dma_semaphore, #tpu.memory_space<semaphore_mem>> -> memref<!tpu.dma_semaphore, #tpu.memory_space<semaphore_mem>>
    tpu.enqueue_dma source(%72 : memref<128xf32, #tpu.memory_space<any>>) target(%74 : memref<128xf32, #tpu.memory_space<vmem>>) target_semaphore(%76 : memref<!tpu.dma_semaphore, #tpu.memory_space<semaphore_mem>>)
    %c0_i32_23 = arith.constant 0 : i32
    %c4_i32_24 = arith.constant 4 : i32
    %c0_i32_25 = arith.constant 0 : i32
    %c0_i32_26 = arith.constant 0 : i32
    %77 = tpu.memref_slice %arg3[%19, %c0_i32_26] : memref<96x128xf32, #tpu.memory_space<any>> -> memref<1x128xf32, #tpu.memory_space<any>>
    %78 = tpu.memref_squeeze %77 : memref<1x128xf32, #tpu.memory_space<any>> -> memref<128xf32, #tpu.memory_space<any>>
    %c0_i32_27 = arith.constant 0 : i32
    %79 = tpu.memref_slice %arg10[%c0_i32_23, %c4_i32_24, %c0_i32_27] : memref<3x16x128xf32, #tpu.memory_space<vmem>> -> memref<1x1x128xf32, #tpu.memory_space<vmem>>
    %80 = tpu.memref_squeeze %79 : memref<1x1x128xf32, #tpu.memory_space<vmem>> -> memref<128xf32, #tpu.memory_space<vmem>>
    %81 = tpu.memref_slice %arg11[%c0_i32_25] : memref<3x!tpu.dma_semaphore, #tpu.memory_space<semaphore_mem>> -> memref<1x!tpu.dma_semaphore, #tpu.memory_space<semaphore_mem>>
    %82 = tpu.memref_squeeze %81 : memref<1x!tpu.dma_semaphore, #tpu.memory_space<semaphore_mem>> -> memref<!tpu.dma_semaphore, #tpu.memory_space<semaphore_mem>>
    tpu.enqueue_dma source(%78 : memref<128xf32, #tpu.memory_space<any>>) target(%80 : memref<128xf32, #tpu.memory_space<vmem>>) target_semaphore(%82 : memref<!tpu.dma_semaphore, #tpu.memory_space<semaphore_mem>>)
    %c0_i32_28 = arith.constant 0 : i32
    %c5_i32_29 = arith.constant 5 : i32
    %c0_i32_30 = arith.constant 0 : i32
    %c0_i32_31 = arith.constant 0 : i32
    %83 = tpu.memref_slice %arg3[%22, %c0_i32_31] : memref<96x128xf32, #tpu.memory_space<any>> -> memref<1x128xf32, #tpu.memory_space<any>>
    %84 = tpu.memref_squeeze %83 : memref<1x128xf32, #tpu.memory_space<any>> -> memref<128xf32, #tpu.memory_space<any>>
    %c0_i32_32 = arith.constant 0 : i32
    %85 = tpu.memref_slice %arg10[%c0_i32_28, %c5_i32_29, %c0_i32_32] : memref<3x16x128xf32, #tpu.memory_space<vmem>> -> memref<1x1x128xf32, #tpu.memory_space<vmem>>
    %86 = tpu.memref_squeeze %85 : memref<1x1x128xf32, #tpu.memory_space<vmem>> -> memref<128xf32, #tpu.memory_space<vmem>>
    %87 = tpu.memref_slice %arg11[%c0_i32_30] : memref<3x!tpu.dma_semaphore, #tpu.memory_space<semaphore_mem>> -> memref<1x!tpu.dma_semaphore, #tpu.memory_space<semaphore_mem>>
    %88 = tpu.memref_squeeze %87 : memref<1x!tpu.dma_semaphore, #tpu.memory_space<semaphore_mem>> -> memref<!tpu.dma_semaphore, #tpu.memory_space<semaphore_mem>>
    tpu.enqueue_dma source(%84 : memref<128xf32, #tpu.memory_space<any>>) target(%86 : memref<128xf32, #tpu.memory_space<vmem>>) target_semaphore(%88 : memref<!tpu.dma_semaphore, #tpu.memory_space<semaphore_mem>>)
    %c0_i32_33 = arith.constant 0 : i32
    %c6_i32_34 = arith.constant 6 : i32
    %c0_i32_35 = arith.constant 0 : i32
    %c0_i32_36 = arith.constant 0 : i32
    %89 = tpu.memref_slice %arg3[%25, %c0_i32_36] : memref<96x128xf32, #tpu.memory_space<any>> -> memref<1x128xf32, #tpu.memory_space<any>>
    %90 = tpu.memref_squeeze %89 : memref<1x128xf32, #tpu.memory_space<any>> -> memref<128xf32, #tpu.memory_space<any>>
    %c0_i32_37 = arith.constant 0 : i32
    %91 = tpu.memref_slice %arg10[%c0_i32_33, %c6_i32_34, %c0_i32_37] : memref<3x16x128xf32, #tpu.memory_space<vmem>> -> memref<1x1x128xf32, #tpu.memory_space<vmem>>
    %92 = tpu.memref_squeeze %91 : memref<1x1x128xf32, #tpu.memory_space<vmem>> -> memref<128xf32, #tpu.memory_space<vmem>>
    %93 = tpu.memref_slice %arg11[%c0_i32_35] : memref<3x!tpu.dma_semaphore, #tpu.memory_space<semaphore_mem>> -> memref<1x!tpu.dma_semaphore, #tpu.memory_space<semaphore_mem>>
    %94 = tpu.memref_squeeze %93 : memref<1x!tpu.dma_semaphore, #tpu.memory_space<semaphore_mem>> -> memref<!tpu.dma_semaphore, #tpu.memory_space<semaphore_mem>>
    tpu.enqueue_dma source(%90 : memref<128xf32, #tpu.memory_space<any>>) target(%92 : memref<128xf32, #tpu.memory_space<vmem>>) target_semaphore(%94 : memref<!tpu.dma_semaphore, #tpu.memory_space<semaphore_mem>>)
    %c0_i32_38 = arith.constant 0 : i32
    %c7_i32_39 = arith.constant 7 : i32
    %c0_i32_40 = arith.constant 0 : i32
    %c0_i32_41 = arith.constant 0 : i32
    %95 = tpu.memref_slice %arg3[%28, %c0_i32_41] : memref<96x128xf32, #tpu.memory_space<any>> -> memref<1x128xf32, #tpu.memory_space<any>>
    %96 = tpu.memref_squeeze %95 : memref<1x128xf32, #tpu.memory_space<any>> -> memref<128xf32, #tpu.memory_space<any>>
    %c0_i32_42 = arith.constant 0 : i32
    %97 = tpu.memref_slice %arg10[%c0_i32_38, %c7_i32_39, %c0_i32_42] : memref<3x16x128xf32, #tpu.memory_space<vmem>> -> memref<1x1x128xf32, #tpu.memory_space<vmem>>
    %98 = tpu.memref_squeeze %97 : memref<1x1x128xf32, #tpu.memory_space<vmem>> -> memref<128xf32, #tpu.memory_space<vmem>>
    %99 = tpu.memref_slice %arg11[%c0_i32_40] : memref<3x!tpu.dma_semaphore, #tpu.memory_space<semaphore_mem>> -> memref<1x!tpu.dma_semaphore, #tpu.memory_space<semaphore_mem>>
    %100 = tpu.memref_squeeze %99 : memref<1x!tpu.dma_semaphore, #tpu.memory_space<semaphore_mem>> -> memref<!tpu.dma_semaphore, #tpu.memory_space<semaphore_mem>>
    tpu.enqueue_dma source(%96 : memref<128xf32, #tpu.memory_space<any>>) target(%98 : memref<128xf32, #tpu.memory_space<vmem>>) target_semaphore(%100 : memref<!tpu.dma_semaphore, #tpu.memory_space<semaphore_mem>>)
    %c0_i32_43 = arith.constant 0 : i32
    %c8_i32_44 = arith.constant 8 : i32
    %c0_i32_45 = arith.constant 0 : i32
    %c0_i32_46 = arith.constant 0 : i32
    %101 = tpu.memref_slice %arg3[%31, %c0_i32_46] : memref<96x128xf32, #tpu.memory_space<any>> -> memref<1x128xf32, #tpu.memory_space<any>>
    %102 = tpu.memref_squeeze %101 : memref<1x128xf32, #tpu.memory_space<any>> -> memref<128xf32, #tpu.memory_space<any>>
    %c0_i32_47 = arith.constant 0 : i32
    %103 = tpu.memref_slice %arg10[%c0_i32_43, %c8_i32_44, %c0_i32_47] : memref<3x16x128xf32, #tpu.memory_space<vmem>> -> memref<1x1x128xf32, #tpu.memory_space<vmem>>
    %104 = tpu.memref_squeeze %103 : memref<1x1x128xf32, #tpu.memory_space<vmem>> -> memref<128xf32, #tpu.memory_space<vmem>>
    %105 = tpu.memref_slice %arg11[%c0_i32_45] : memref<3x!tpu.dma_semaphore, #tpu.memory_space<semaphore_mem>> -> memref<1x!tpu.dma_semaphore, #tpu.memory_space<semaphore_mem>>
    %106 = tpu.memref_squeeze %105 : memref<1x!tpu.dma_semaphore, #tpu.memory_space<semaphore_mem>> -> memref<!tpu.dma_semaphore, #tpu.memory_space<semaphore_mem>>
    tpu.enqueue_dma source(%102 : memref<128xf32, #tpu.memory_space<any>>) target(%104 : memref<128xf32, #tpu.memory_space<vmem>>) target_semaphore(%106 : memref<!tpu.dma_semaphore, #tpu.memory_space<semaphore_mem>>)
    %c0_i32_48 = arith.constant 0 : i32
    %c9_i32_49 = arith.constant 9 : i32
    %c0_i32_50 = arith.constant 0 : i32
    %c0_i32_51 = arith.constant 0 : i32
    %107 = tpu.memref_slice %arg3[%34, %c0_i32_51] : memref<96x128xf32, #tpu.memory_space<any>> -> memref<1x128xf32, #tpu.memory_space<any>>
    %108 = tpu.memref_squeeze %107 : memref<1x128xf32, #tpu.memory_space<any>> -> memref<128xf32, #tpu.memory_space<any>>
    %c0_i32_52 = arith.constant 0 : i32
    %109 = tpu.memref_slice %arg10[%c0_i32_48, %c9_i32_49, %c0_i32_52] : memref<3x16x128xf32, #tpu.memory_space<vmem>> -> memref<1x1x128xf32, #tpu.memory_space<vmem>>
    %110 = tpu.memref_squeeze %109 : memref<1x1x128xf32, #tpu.memory_space<vmem>> -> memref<128xf32, #tpu.memory_space<vmem>>
    %111 = tpu.memref_slice %arg11[%c0_i32_50] : memref<3x!tpu.dma_semaphore, #tpu.memory_space<semaphore_mem>> -> memref<1x!tpu.dma_semaphore, #tpu.memory_space<semaphore_mem>>
    %112 = tpu.memref_squeeze %111 : memref<1x!tpu.dma_semaphore, #tpu.memory_space<semaphore_mem>> -> memref<!tpu.dma_semaphore, #tpu.memory_space<semaphore_mem>>
    tpu.enqueue_dma source(%108 : memref<128xf32, #tpu.memory_space<any>>) target(%110 : memref<128xf32, #tpu.memory_space<vmem>>) target_semaphore(%112 : memref<!tpu.dma_semaphore, #tpu.memory_space<semaphore_mem>>)
    %c0_i32_53 = arith.constant 0 : i32
    %c10_i32_54 = arith.constant 10 : i32
    %c0_i32_55 = arith.constant 0 : i32
    %c0_i32_56 = arith.constant 0 : i32
    %113 = tpu.memref_slice %arg3[%37, %c0_i32_56] : memref<96x128xf32, #tpu.memory_space<any>> -> memref<1x128xf32, #tpu.memory_space<any>>
    %114 = tpu.memref_squeeze %113 : memref<1x128xf32, #tpu.memory_space<any>> -> memref<128xf32, #tpu.memory_space<any>>
    %c0_i32_57 = arith.constant 0 : i32
    %115 = tpu.memref_slice %arg10[%c0_i32_53, %c10_i32_54, %c0_i32_57] : memref<3x16x128xf32, #tpu.memory_space<vmem>> -> memref<1x1x128xf32, #tpu.memory_space<vmem>>
    %116 = tpu.memref_squeeze %115 : memref<1x1x128xf32, #tpu.memory_space<vmem>> -> memref<128xf32, #tpu.memory_space<vmem>>
    %117 = tpu.memref_slice %arg11[%c0_i32_55] : memref<3x!tpu.dma_semaphore, #tpu.memory_space<semaphore_mem>> -> memref<1x!tpu.dma_semaphore, #tpu.memory_space<semaphore_mem>>
    %118 = tpu.memref_squeeze %117 : memref<1x!tpu.dma_semaphore, #tpu.memory_space<semaphore_mem>> -> memref<!tpu.dma_semaphore, #tpu.memory_space<semaphore_mem>>
    tpu.enqueue_dma source(%114 : memref<128xf32, #tpu.memory_space<any>>) target(%116 : memref<128xf32, #tpu.memory_space<vmem>>) target_semaphore(%118 : memref<!tpu.dma_semaphore, #tpu.memory_space<semaphore_mem>>)
    %c0_i32_58 = arith.constant 0 : i32
    %c11_i32_59 = arith.constant 11 : i32
    %c0_i32_60 = arith.constant 0 : i32
    %c0_i32_61 = arith.constant 0 : i32
    %119 = tpu.memref_slice %arg3[%40, %c0_i32_61] : memref<96x128xf32, #tpu.memory_space<any>> -> memref<1x128xf32, #tpu.memory_space<any>>
    %120 = tpu.memref_squeeze %119 : memref<1x128xf32, #tpu.memory_space<any>> -> memref<128xf32, #tpu.memory_space<any>>
    %c0_i32_62 = arith.constant 0 : i32
    %121 = tpu.memref_slice %arg10[%c0_i32_58, %c11_i32_59, %c0_i32_62] : memref<3x16x128xf32, #tpu.memory_space<vmem>> -> memref<1x1x128xf32, #tpu.memory_space<vmem>>
    %122 = tpu.memref_squeeze %121 : memref<1x1x128xf32, #tpu.memory_space<vmem>> -> memref<128xf32, #tpu.memory_space<vmem>>
    %123 = tpu.memref_slice %arg11[%c0_i32_60] : memref<3x!tpu.dma_semaphore, #tpu.memory_space<semaphore_mem>> -> memref<1x!tpu.dma_semaphore, #tpu.memory_space<semaphore_mem>>
    %124 = tpu.memref_squeeze %123 : memref<1x!tpu.dma_semaphore, #tpu.memory_space<semaphore_mem>> -> memref<!tpu.dma_semaphore, #tpu.memory_space<semaphore_mem>>
    tpu.enqueue_dma source(%120 : memref<128xf32, #tpu.memory_space<any>>) target(%122 : memref<128xf32, #tpu.memory_space<vmem>>) target_semaphore(%124 : memref<!tpu.dma_semaphore, #tpu.memory_space<semaphore_mem>>)
    %c0_i32_63 = arith.constant 0 : i32
    %c12_i32_64 = arith.constant 12 : i32
    %c0_i32_65 = arith.constant 0 : i32
    %c0_i32_66 = arith.constant 0 : i32
    %125 = tpu.memref_slice %arg3[%43, %c0_i32_66] : memref<96x128xf32, #tpu.memory_space<any>> -> memref<1x128xf32, #tpu.memory_space<any>>
    %126 = tpu.memref_squeeze %125 : memref<1x128xf32, #tpu.memory_space<any>> -> memref<128xf32, #tpu.memory_space<any>>
    %c0_i32_67 = arith.constant 0 : i32
    %127 = tpu.memref_slice %arg10[%c0_i32_63, %c12_i32_64, %c0_i32_67] : memref<3x16x128xf32, #tpu.memory_space<vmem>> -> memref<1x1x128xf32, #tpu.memory_space<vmem>>
    %128 = tpu.memref_squeeze %127 : memref<1x1x128xf32, #tpu.memory_space<vmem>> -> memref<128xf32, #tpu.memory_space<vmem>>
    %129 = tpu.memref_slice %arg11[%c0_i32_65] : memref<3x!tpu.dma_semaphore, #tpu.memory_space<semaphore_mem>> -> memref<1x!tpu.dma_semaphore, #tpu.memory_space<semaphore_mem>>
    %130 = tpu.memref_squeeze %129 : memref<1x!tpu.dma_semaphore, #tpu.memory_space<semaphore_mem>> -> memref<!tpu.dma_semaphore, #tpu.memory_space<semaphore_mem>>
    tpu.enqueue_dma source(%126 : memref<128xf32, #tpu.memory_space<any>>) target(%128 : memref<128xf32, #tpu.memory_space<vmem>>) target_semaphore(%130 : memref<!tpu.dma_semaphore, #tpu.memory_space<semaphore_mem>>)
    %c0_i32_68 = arith.constant 0 : i32
    %c13_i32_69 = arith.constant 13 : i32
    %c0_i32_70 = arith.constant 0 : i32
    %c0_i32_71 = arith.constant 0 : i32
    %131 = tpu.memref_slice %arg3[%46, %c0_i32_71] : memref<96x128xf32, #tpu.memory_space<any>> -> memref<1x128xf32, #tpu.memory_space<any>>
    %132 = tpu.memref_squeeze %131 : memref<1x128xf32, #tpu.memory_space<any>> -> memref<128xf32, #tpu.memory_space<any>>
    %c0_i32_72 = arith.constant 0 : i32
    %133 = tpu.memref_slice %arg10[%c0_i32_68, %c13_i32_69, %c0_i32_72] : memref<3x16x128xf32, #tpu.memory_space<vmem>> -> memref<1x1x128xf32, #tpu.memory_space<vmem>>
    %134 = tpu.memref_squeeze %133 : memref<1x1x128xf32, #tpu.memory_space<vmem>> -> memref<128xf32, #tpu.memory_space<vmem>>
    %135 = tpu.memref_slice %arg11[%c0_i32_70] : memref<3x!tpu.dma_semaphore, #tpu.memory_space<semaphore_mem>> -> memref<1x!tpu.dma_semaphore, #tpu.memory_space<semaphore_mem>>
    %136 = tpu.memref_squeeze %135 : memref<1x!tpu.dma_semaphore, #tpu.memory_space<semaphore_mem>> -> memref<!tpu.dma_semaphore, #tpu.memory_space<semaphore_mem>>
    tpu.enqueue_dma source(%132 : memref<128xf32, #tpu.memory_space<any>>) target(%134 : memref<128xf32, #tpu.memory_space<vmem>>) target_semaphore(%136 : memref<!tpu.dma_semaphore, #tpu.memory_space<semaphore_mem>>)
    %c0_i32_73 = arith.constant 0 : i32
    %c14_i32_74 = arith.constant 14 : i32
    %c0_i32_75 = arith.constant 0 : i32
    %c0_i32_76 = arith.constant 0 : i32
    %137 = tpu.memref_slice %arg3[%49, %c0_i32_76] : memref<96x128xf32, #tpu.memory_space<any>> -> memref<1x128xf32, #tpu.memory_space<any>>
    %138 = tpu.memref_squeeze %137 : memref<1x128xf32, #tpu.memory_space<any>> -> memref<128xf32, #tpu.memory_space<any>>
    %c0_i32_77 = arith.constant 0 : i32
    %139 = tpu.memref_slice %arg10[%c0_i32_73, %c14_i32_74, %c0_i32_77] : memref<3x16x128xf32, #tpu.memory_space<vmem>> -> memref<1x1x128xf32, #tpu.memory_space<vmem>>
    %140 = tpu.memref_squeeze %139 : memref<1x1x128xf32, #tpu.memory_space<vmem>> -> memref<128xf32, #tpu.memory_space<vmem>>
    %141 = tpu.memref_slice %arg11[%c0_i32_75] : memref<3x!tpu.dma_semaphore, #tpu.memory_space<semaphore_mem>> -> memref<1x!tpu.dma_semaphore, #tpu.memory_space<semaphore_mem>>
    %142 = tpu.memref_squeeze %141 : memref<1x!tpu.dma_semaphore, #tpu.memory_space<semaphore_mem>> -> memref<!tpu.dma_semaphore, #tpu.memory_space<semaphore_mem>>
    tpu.enqueue_dma source(%138 : memref<128xf32, #tpu.memory_space<any>>) target(%140 : memref<128xf32, #tpu.memory_space<vmem>>) target_semaphore(%142 : memref<!tpu.dma_semaphore, #tpu.memory_space<semaphore_mem>>)
    %c0_i32_78 = arith.constant 0 : i32
    %c15_i32_79 = arith.constant 15 : i32
    %c0_i32_80 = arith.constant 0 : i32
    %c0_i32_81 = arith.constant 0 : i32
    %143 = tpu.memref_slice %arg3[%52, %c0_i32_81] : memref<96x128xf32, #tpu.memory_space<any>> -> memref<1x128xf32, #tpu.memory_space<any>>
    %144 = tpu.memref_squeeze %143 : memref<1x128xf32, #tpu.memory_space<any>> -> memref<128xf32, #tpu.memory_space<any>>
    %c0_i32_82 = arith.constant 0 : i32
    %145 = tpu.memref_slice %arg10[%c0_i32_78, %c15_i32_79, %c0_i32_82] : memref<3x16x128xf32, #tpu.memory_space<vmem>> -> memref<1x1x128xf32, #tpu.memory_space<vmem>>
    %146 = tpu.memref_squeeze %145 : memref<1x1x128xf32, #tpu.memory_space<vmem>> -> memref<128xf32, #tpu.memory_space<vmem>>
    %147 = tpu.memref_slice %arg11[%c0_i32_80] : memref<3x!tpu.dma_semaphore, #tpu.memory_space<semaphore_mem>> -> memref<1x!tpu.dma_semaphore, #tpu.memory_space<semaphore_mem>>
    %148 = tpu.memref_squeeze %147 : memref<1x!tpu.dma_semaphore, #tpu.memory_space<semaphore_mem>> -> memref<!tpu.dma_semaphore, #tpu.memory_space<semaphore_mem>>
    tpu.enqueue_dma source(%144 : memref<128xf32, #tpu.memory_space<any>>) target(%146 : memref<128xf32, #tpu.memory_space<vmem>>) target_semaphore(%148 : memref<!tpu.dma_semaphore, #tpu.memory_space<semaphore_mem>>)
    %c16_i32 = arith.constant 16 : i32
    %149 = arith.addi %2, %c16_i32 : i32
    %c0_i32_83 = arith.constant 0 : i32
    %150 = arith.addi %149, %c0_i32_83 : i32
    %151 = arith.index_cast %150 : i32 to index
    %152 = memref.load %arg2[%151] : memref<128xi32, #tpu.memory_space<smem>>
    %c1_i32_84 = arith.constant 1 : i32
    %153 = arith.addi %149, %c1_i32_84 : i32
    %154 = arith.index_cast %153 : i32 to index
    %155 = memref.load %arg2[%154] : memref<128xi32, #tpu.memory_space<smem>>
    %c2_i32_85 = arith.constant 2 : i32
    %156 = arith.addi %149, %c2_i32_85 : i32
    %157 = arith.index_cast %156 : i32 to index
    %158 = memref.load %arg2[%157] : memref<128xi32, #tpu.memory_space<smem>>
    %c3_i32_86 = arith.constant 3 : i32
    %159 = arith.addi %149, %c3_i32_86 : i32
    %160 = arith.index_cast %159 : i32 to index
    %161 = memref.load %arg2[%160] : memref<128xi32, #tpu.memory_space<smem>>
    %c4_i32_87 = arith.constant 4 : i32
    %162 = arith.addi %149, %c4_i32_87 : i32
    %163 = arith.index_cast %162 : i32 to index
    %164 = memref.load %arg2[%163] : memref<128xi32, #tpu.memory_space<smem>>
    %c5_i32_88 = arith.constant 5 : i32
    %165 = arith.addi %149, %c5_i32_88 : i32
    %166 = arith.index_cast %165 : i32 to index
    %167 = memref.load %arg2[%166] : memref<128xi32, #tpu.memory_space<smem>>
    %c6_i32_89 = arith.constant 6 : i32
    %168 = arith.addi %149, %c6_i32_89 : i32
    %169 = arith.index_cast %168 : i32 to index
    %170 = memref.load %arg2[%169] : memref<128xi32, #tpu.memory_space<smem>>
    %c7_i32_90 = arith.constant 7 : i32
    %171 = arith.addi %149, %c7_i32_90 : i32
    %172 = arith.index_cast %171 : i32 to index
    %173 = memref.load %arg2[%172] : memref<128xi32, #tpu.memory_space<smem>>
    %c8_i32_91 = arith.constant 8 : i32
    %174 = arith.addi %149, %c8_i32_91 : i32
    %175 = arith.index_cast %174 : i32 to index
    %176 = memref.load %arg2[%175] : memref<128xi32, #tpu.memory_space<smem>>
    %c9_i32_92 = arith.constant 9 : i32
    %177 = arith.addi %149, %c9_i32_92 : i32
    %178 = arith.index_cast %177 : i32 to index
    %179 = memref.load %arg2[%178] : memref<128xi32, #tpu.memory_space<smem>>
    %c10_i32_93 = arith.constant 10 : i32
    %180 = arith.addi %149, %c10_i32_93 : i32
    %181 = arith.index_cast %180 : i32 to index
    %182 = memref.load %arg2[%181] : memref<128xi32, #tpu.memory_space<smem>>
    %c11_i32_94 = arith.constant 11 : i32
    %183 = arith.addi %149, %c11_i32_94 : i32
    %184 = arith.index_cast %183 : i32 to index
    %185 = memref.load %arg2[%184] : memref<128xi32, #tpu.memory_space<smem>>
    %c12_i32_95 = arith.constant 12 : i32
    %186 = arith.addi %149, %c12_i32_95 : i32
    %187 = arith.index_cast %186 : i32 to index
    %188 = memref.load %arg2[%187] : memref<128xi32, #tpu.memory_space<smem>>
    %c13_i32_96 = arith.constant 13 : i32
    %189 = arith.addi %149, %c13_i32_96 : i32
    %190 = arith.index_cast %189 : i32 to index
    %191 = memref.load %arg2[%190] : memref<128xi32, #tpu.memory_space<smem>>
    %c14_i32_97 = arith.constant 14 : i32
    %192 = arith.addi %149, %c14_i32_97 : i32
    %193 = arith.index_cast %192 : i32 to index
    %194 = memref.load %arg2[%193] : memref<128xi32, #tpu.memory_space<smem>>
    %c15_i32_98 = arith.constant 15 : i32
    %195 = arith.addi %149, %c15_i32_98 : i32
    %196 = arith.index_cast %195 : i32 to index
    %197 = memref.load %arg2[%196] : memref<128xi32, #tpu.memory_space<smem>>
    %c1_i32_99 = arith.constant 1 : i32
    %c0_i32_100 = arith.constant 0 : i32
    %c1_i32_101 = arith.constant 1 : i32
    %c0_i32_102 = arith.constant 0 : i32
    %198 = tpu.memref_slice %arg3[%152, %c0_i32_102] : memref<96x128xf32, #tpu.memory_space<any>> -> memref<1x128xf32, #tpu.memory_space<any>>
    %199 = tpu.memref_squeeze %198 : memref<1x128xf32, #tpu.memory_space<any>> -> memref<128xf32, #tpu.memory_space<any>>
    %c0_i32_103 = arith.constant 0 : i32
    %200 = tpu.memref_slice %arg10[%c1_i32_99, %c0_i32_100, %c0_i32_103] : memref<3x16x128xf32, #tpu.memory_space<vmem>> -> memref<1x1x128xf32, #tpu.memory_space<vmem>>
    %201 = tpu.memref_squeeze %200 : memref<1x1x128xf32, #tpu.memory_space<vmem>> -> memref<128xf32, #tpu.memory_space<vmem>>
    %202 = tpu.memref_slice %arg11[%c1_i32_101] : memref<3x!tpu.dma_semaphore, #tpu.memory_space<semaphore_mem>> -> memref<1x!tpu.dma_semaphore, #tpu.memory_space<semaphore_mem>>
    %203 = tpu.memref_squeeze %202 : memref<1x!tpu.dma_semaphore, #tpu.memory_space<semaphore_mem>> -> memref<!tpu.dma_semaphore, #tpu.memory_space<semaphore_mem>>
    tpu.enqueue_dma source(%199 : memref<128xf32, #tpu.memory_space<any>>) target(%201 : memref<128xf32, #tpu.memory_space<vmem>>) target_semaphore(%203 : memref<!tpu.dma_semaphore, #tpu.memory_space<semaphore_mem>>)
    %c1_i32_104 = arith.constant 1 : i32
    %c1_i32_105 = arith.constant 1 : i32
    %c1_i32_106 = arith.constant 1 : i32
    %c0_i32_107 = arith.constant 0 : i32
    %204 = tpu.memref_slice %arg3[%155, %c0_i32_107] : memref<96x128xf32, #tpu.memory_space<any>> -> memref<1x128xf32, #tpu.memory_space<any>>
    %205 = tpu.memref_squeeze %204 : memref<1x128xf32, #tpu.memory_space<any>> -> memref<128xf32, #tpu.memory_space<any>>
    %c0_i32_108 = arith.constant 0 : i32
    %206 = tpu.memref_slice %arg10[%c1_i32_104, %c1_i32_105, %c0_i32_108] : memref<3x16x128xf32, #tpu.memory_space<vmem>> -> memref<1x1x128xf32, #tpu.memory_space<vmem>>
    %207 = tpu.memref_squeeze %206 : memref<1x1x128xf32, #tpu.memory_space<vmem>> -> memref<128xf32, #tpu.memory_space<vmem>>
    %208 = tpu.memref_slice %arg11[%c1_i32_106] : memref<3x!tpu.dma_semaphore, #tpu.memory_space<semaphore_mem>> -> memref<1x!tpu.dma_semaphore, #tpu.memory_space<semaphore_mem>>
    %209 = tpu.memref_squeeze %208 : memref<1x!tpu.dma_semaphore, #tpu.memory_space<semaphore_mem>> -> memref<!tpu.dma_semaphore, #tpu.memory_space<semaphore_mem>>
    tpu.enqueue_dma source(%205 : memref<128xf32, #tpu.memory_space<any>>) target(%207 : memref<128xf32, #tpu.memory_space<vmem>>) target_semaphore(%209 : memref<!tpu.dma_semaphore, #tpu.memory_space<semaphore_mem>>)
    %c1_i32_109 = arith.constant 1 : i32
    %c2_i32_110 = arith.constant 2 : i32
    %c1_i32_111 = arith.constant 1 : i32
    %c0_i32_112 = arith.constant 0 : i32
    %210 = tpu.memref_slice %arg3[%158, %c0_i32_112] : memref<96x128xf32, #tpu.memory_space<any>> -> memref<1x128xf32, #tpu.memory_space<any>>
    %211 = tpu.memref_squeeze %210 : memref<1x128xf32, #tpu.memory_space<any>> -> memref<128xf32, #tpu.memory_space<any>>
    %c0_i32_113 = arith.constant 0 : i32
    %212 = tpu.memref_slice %arg10[%c1_i32_109, %c2_i32_110, %c0_i32_113] : memref<3x16x128xf32, #tpu.memory_space<vmem>> -> memref<1x1x128xf32, #tpu.memory_space<vmem>>
    %213 = tpu.memref_squeeze %212 : memref<1x1x128xf32, #tpu.memory_space<vmem>> -> memref<128xf32, #tpu.memory_space<vmem>>
    %214 = tpu.memref_slice %arg11[%c1_i32_111] : memref<3x!tpu.dma_semaphore, #tpu.memory_space<semaphore_mem>> -> memref<1x!tpu.dma_semaphore, #tpu.memory_space<semaphore_mem>>
    %215 = tpu.memref_squeeze %214 : memref<1x!tpu.dma_semaphore, #tpu.memory_space<semaphore_mem>> -> memref<!tpu.dma_semaphore, #tpu.memory_space<semaphore_mem>>
    tpu.enqueue_dma source(%211 : memref<128xf32, #tpu.memory_space<any>>) target(%213 : memref<128xf32, #tpu.memory_space<vmem>>) target_semaphore(%215 : memref<!tpu.dma_semaphore, #tpu.memory_space<semaphore_mem>>)
    %c1_i32_114 = arith.constant 1 : i32
    %c3_i32_115 = arith.constant 3 : i32
    %c1_i32_116 = arith.constant 1 : i32
    %c0_i32_117 = arith.constant 0 : i32
    %216 = tpu.memref_slice %arg3[%161, %c0_i32_117] : memref<96x128xf32, #tpu.memory_space<any>> -> memref<1x128xf32, #tpu.memory_space<any>>
    %217 = tpu.memref_squeeze %216 : memref<1x128xf32, #tpu.memory_space<any>> -> memref<128xf32, #tpu.memory_space<any>>
    %c0_i32_118 = arith.constant 0 : i32
    %218 = tpu.memref_slice %arg10[%c1_i32_114, %c3_i32_115, %c0_i32_118] : memref<3x16x128xf32, #tpu.memory_space<vmem>> -> memref<1x1x128xf32, #tpu.memory_space<vmem>>
    %219 = tpu.memref_squeeze %218 : memref<1x1x128xf32, #tpu.memory_space<vmem>> -> memref<128xf32, #tpu.memory_space<vmem>>
    %220 = tpu.memref_slice %arg11[%c1_i32_116] : memref<3x!tpu.dma_semaphore, #tpu.memory_space<semaphore_mem>> -> memref<1x!tpu.dma_semaphore, #tpu.memory_space<semaphore_mem>>
    %221 = tpu.memref_squeeze %220 : memref<1x!tpu.dma_semaphore, #tpu.memory_space<semaphore_mem>> -> memref<!tpu.dma_semaphore, #tpu.memory_space<semaphore_mem>>
    tpu.enqueue_dma source(%217 : memref<128xf32, #tpu.memory_space<any>>) target(%219 : memref<128xf32, #tpu.memory_space<vmem>>) target_semaphore(%221 : memref<!tpu.dma_semaphore, #tpu.memory_space<semaphore_mem>>)
    %c1_i32_119 = arith.constant 1 : i32
    %c4_i32_120 = arith.constant 4 : i32
    %c1_i32_121 = arith.constant 1 : i32
    %c0_i32_122 = arith.constant 0 : i32
    %222 = tpu.memref_slice %arg3[%164, %c0_i32_122] : memref<96x128xf32, #tpu.memory_space<any>> -> memref<1x128xf32, #tpu.memory_space<any>>
    %223 = tpu.memref_squeeze %222 : memref<1x128xf32, #tpu.memory_space<any>> -> memref<128xf32, #tpu.memory_space<any>>
    %c0_i32_123 = arith.constant 0 : i32
    %224 = tpu.memref_slice %arg10[%c1_i32_119, %c4_i32_120, %c0_i32_123] : memref<3x16x128xf32, #tpu.memory_space<vmem>> -> memref<1x1x128xf32, #tpu.memory_space<vmem>>
    %225 = tpu.memref_squeeze %224 : memref<1x1x128xf32, #tpu.memory_space<vmem>> -> memref<128xf32, #tpu.memory_space<vmem>>
    %226 = tpu.memref_slice %arg11[%c1_i32_121] : memref<3x!tpu.dma_semaphore, #tpu.memory_space<semaphore_mem>> -> memref<1x!tpu.dma_semaphore, #tpu.memory_space<semaphore_mem>>
    %227 = tpu.memref_squeeze %226 : memref<1x!tpu.dma_semaphore, #tpu.memory_space<semaphore_mem>> -> memref<!tpu.dma_semaphore, #tpu.memory_space<semaphore_mem>>
    tpu.enqueue_dma source(%223 : memref<128xf32, #tpu.memory_space<any>>) target(%225 : memref<128xf32, #tpu.memory_space<vmem>>) target_semaphore(%227 : memref<!tpu.dma_semaphore, #tpu.memory_space<semaphore_mem>>)
    %c1_i32_124 = arith.constant 1 : i32
    %c5_i32_125 = arith.constant 5 : i32
    %c1_i32_126 = arith.constant 1 : i32
    %c0_i32_127 = arith.constant 0 : i32
    %228 = tpu.memref_slice %arg3[%167, %c0_i32_127] : memref<96x128xf32, #tpu.memory_space<any>> -> memref<1x128xf32, #tpu.memory_space<any>>
    %229 = tpu.memref_squeeze %228 : memref<1x128xf32, #tpu.memory_space<any>> -> memref<128xf32, #tpu.memory_space<any>>
    %c0_i32_128 = arith.constant 0 : i32
    %230 = tpu.memref_slice %arg10[%c1_i32_124, %c5_i32_125, %c0_i32_128] : memref<3x16x128xf32, #tpu.memory_space<vmem>> -> memref<1x1x128xf32, #tpu.memory_space<vmem>>
    %231 = tpu.memref_squeeze %230 : memref<1x1x128xf32, #tpu.memory_space<vmem>> -> memref<128xf32, #tpu.memory_space<vmem>>
    %232 = tpu.memref_slice %arg11[%c1_i32_126] : memref<3x!tpu.dma_semaphore, #tpu.memory_space<semaphore_mem>> -> memref<1x!tpu.dma_semaphore, #tpu.memory_space<semaphore_mem>>
    %233 = tpu.memref_squeeze %232 : memref<1x!tpu.dma_semaphore, #tpu.memory_space<semaphore_mem>> -> memref<!tpu.dma_semaphore, #tpu.memory_space<semaphore_mem>>
    tpu.enqueue_dma source(%229 : memref<128xf32, #tpu.memory_space<any>>) target(%231 : memref<128xf32, #tpu.memory_space<vmem>>) target_semaphore(%233 : memref<!tpu.dma_semaphore, #tpu.memory_space<semaphore_mem>>)
    %c1_i32_129 = arith.constant 1 : i32
    %c6_i32_130 = arith.constant 6 : i32
    %c1_i32_131 = arith.constant 1 : i32
    %c0_i32_132 = arith.constant 0 : i32
    %234 = tpu.memref_slice %arg3[%170, %c0_i32_132] : memref<96x128xf32, #tpu.memory_space<any>> -> memref<1x128xf32, #tpu.memory_space<any>>
    %235 = tpu.memref_squeeze %234 : memref<1x128xf32, #tpu.memory_space<any>> -> memref<128xf32, #tpu.memory_space<any>>
    %c0_i32_133 = arith.constant 0 : i32
    %236 = tpu.memref_slice %arg10[%c1_i32_129, %c6_i32_130, %c0_i32_133] : memref<3x16x128xf32, #tpu.memory_space<vmem>> -> memref<1x1x128xf32, #tpu.memory_space<vmem>>
    %237 = tpu.memref_squeeze %236 : memref<1x1x128xf32, #tpu.memory_space<vmem>> -> memref<128xf32, #tpu.memory_space<vmem>>
    %238 = tpu.memref_slice %arg11[%c1_i32_131] : memref<3x!tpu.dma_semaphore, #tpu.memory_space<semaphore_mem>> -> memref<1x!tpu.dma_semaphore, #tpu.memory_space<semaphore_mem>>
    %239 = tpu.memref_squeeze %238 : memref<1x!tpu.dma_semaphore, #tpu.memory_space<semaphore_mem>> -> memref<!tpu.dma_semaphore, #tpu.memory_space<semaphore_mem>>
    tpu.enqueue_dma source(%235 : memref<128xf32, #tpu.memory_space<any>>) target(%237 : memref<128xf32, #tpu.memory_space<vmem>>) target_semaphore(%239 : memref<!tpu.dma_semaphore, #tpu.memory_space<semaphore_mem>>)
    %c1_i32_134 = arith.constant 1 : i32
    %c7_i32_135 = arith.constant 7 : i32
    %c1_i32_136 = arith.constant 1 : i32
    %c0_i32_137 = arith.constant 0 : i32
    %240 = tpu.memref_slice %arg3[%173, %c0_i32_137] : memref<96x128xf32, #tpu.memory_space<any>> -> memref<1x128xf32, #tpu.memory_space<any>>
    %241 = tpu.memref_squeeze %240 : memref<1x128xf32, #tpu.memory_space<any>> -> memref<128xf32, #tpu.memory_space<any>>
    %c0_i32_138 = arith.constant 0 : i32
    %242 = tpu.memref_slice %arg10[%c1_i32_134, %c7_i32_135, %c0_i32_138] : memref<3x16x128xf32, #tpu.memory_space<vmem>> -> memref<1x1x128xf32, #tpu.memory_space<vmem>>
    %243 = tpu.memref_squeeze %242 : memref<1x1x128xf32, #tpu.memory_space<vmem>> -> memref<128xf32, #tpu.memory_space<vmem>>
    %244 = tpu.memref_slice %arg11[%c1_i32_136] : memref<3x!tpu.dma_semaphore, #tpu.memory_space<semaphore_mem>> -> memref<1x!tpu.dma_semaphore, #tpu.memory_space<semaphore_mem>>
    %245 = tpu.memref_squeeze %244 : memref<1x!tpu.dma_semaphore, #tpu.memory_space<semaphore_mem>> -> memref<!tpu.dma_semaphore, #tpu.memory_space<semaphore_mem>>
    tpu.enqueue_dma source(%241 : memref<128xf32, #tpu.memory_space<any>>) target(%243 : memref<128xf32, #tpu.memory_space<vmem>>) target_semaphore(%245 : memref<!tpu.dma_semaphore, #tpu.memory_space<semaphore_mem>>)
    %c1_i32_139 = arith.constant 1 : i32
    %c8_i32_140 = arith.constant 8 : i32
    %c1_i32_141 = arith.constant 1 : i32
    %c0_i32_142 = arith.constant 0 : i32
    %246 = tpu.memref_slice %arg3[%176, %c0_i32_142] : memref<96x128xf32, #tpu.memory_space<any>> -> memref<1x128xf32, #tpu.memory_space<any>>
    %247 = tpu.memref_squeeze %246 : memref<1x128xf32, #tpu.memory_space<any>> -> memref<128xf32, #tpu.memory_space<any>>
    %c0_i32_143 = arith.constant 0 : i32
    %248 = tpu.memref_slice %arg10[%c1_i32_139, %c8_i32_140, %c0_i32_143] : memref<3x16x128xf32, #tpu.memory_space<vmem>> -> memref<1x1x128xf32, #tpu.memory_space<vmem>>
    %249 = tpu.memref_squeeze %248 : memref<1x1x128xf32, #tpu.memory_space<vmem>> -> memref<128xf32, #tpu.memory_space<vmem>>
    %250 = tpu.memref_slice %arg11[%c1_i32_141] : memref<3x!tpu.dma_semaphore, #tpu.memory_space<semaphore_mem>> -> memref<1x!tpu.dma_semaphore, #tpu.memory_space<semaphore_mem>>
    %251 = tpu.memref_squeeze %250 : memref<1x!tpu.dma_semaphore, #tpu.memory_space<semaphore_mem>> -> memref<!tpu.dma_semaphore, #tpu.memory_space<semaphore_mem>>
    tpu.enqueue_dma source(%247 : memref<128xf32, #tpu.memory_space<any>>) target(%249 : memref<128xf32, #tpu.memory_space<vmem>>) target_semaphore(%251 : memref<!tpu.dma_semaphore, #tpu.memory_space<semaphore_mem>>)
    %c1_i32_144 = arith.constant 1 : i32
    %c9_i32_145 = arith.constant 9 : i32
    %c1_i32_146 = arith.constant 1 : i32
    %c0_i32_147 = arith.constant 0 : i32
    %252 = tpu.memref_slice %arg3[%179, %c0_i32_147] : memref<96x128xf32, #tpu.memory_space<any>> -> memref<1x128xf32, #tpu.memory_space<any>>
    %253 = tpu.memref_squeeze %252 : memref<1x128xf32, #tpu.memory_space<any>> -> memref<128xf32, #tpu.memory_space<any>>
    %c0_i32_148 = arith.constant 0 : i32
    %254 = tpu.memref_slice %arg10[%c1_i32_144, %c9_i32_145, %c0_i32_148] : memref<3x16x128xf32, #tpu.memory_space<vmem>> -> memref<1x1x128xf32, #tpu.memory_space<vmem>>
    %255 = tpu.memref_squeeze %254 : memref<1x1x128xf32, #tpu.memory_space<vmem>> -> memref<128xf32, #tpu.memory_space<vmem>>
    %256 = tpu.memref_slice %arg11[%c1_i32_146] : memref<3x!tpu.dma_semaphore, #tpu.memory_space<semaphore_mem>> -> memref<1x!tpu.dma_semaphore, #tpu.memory_space<semaphore_mem>>
    %257 = tpu.memref_squeeze %256 : memref<1x!tpu.dma_semaphore, #tpu.memory_space<semaphore_mem>> -> memref<!tpu.dma_semaphore, #tpu.memory_space<semaphore_mem>>
    tpu.enqueue_dma source(%253 : memref<128xf32, #tpu.memory_space<any>>) target(%255 : memref<128xf32, #tpu.memory_space<vmem>>) target_semaphore(%257 : memref<!tpu.dma_semaphore, #tpu.memory_space<semaphore_mem>>)
    %c1_i32_149 = arith.constant 1 : i32
    %c10_i32_150 = arith.constant 10 : i32
    %c1_i32_151 = arith.constant 1 : i32
    %c0_i32_152 = arith.constant 0 : i32
    %258 = tpu.memref_slice %arg3[%182, %c0_i32_152] : memref<96x128xf32, #tpu.memory_space<any>> -> memref<1x128xf32, #tpu.memory_space<any>>
    %259 = tpu.memref_squeeze %258 : memref<1x128xf32, #tpu.memory_space<any>> -> memref<128xf32, #tpu.memory_space<any>>
    %c0_i32_153 = arith.constant 0 : i32
    %260 = tpu.memref_slice %arg10[%c1_i32_149, %c10_i32_150, %c0_i32_153] : memref<3x16x128xf32, #tpu.memory_space<vmem>> -> memref<1x1x128xf32, #tpu.memory_space<vmem>>
    %261 = tpu.memref_squeeze %260 : memref<1x1x128xf32, #tpu.memory_space<vmem>> -> memref<128xf32, #tpu.memory_space<vmem>>
    %262 = tpu.memref_slice %arg11[%c1_i32_151] : memref<3x!tpu.dma_semaphore, #tpu.memory_space<semaphore_mem>> -> memref<1x!tpu.dma_semaphore, #tpu.memory_space<semaphore_mem>>
    %263 = tpu.memref_squeeze %262 : memref<1x!tpu.dma_semaphore, #tpu.memory_space<semaphore_mem>> -> memref<!tpu.dma_semaphore, #tpu.memory_space<semaphore_mem>>
    tpu.enqueue_dma source(%259 : memref<128xf32, #tpu.memory_space<any>>) target(%261 : memref<128xf32, #tpu.memory_space<vmem>>) target_semaphore(%263 : memref<!tpu.dma_semaphore, #tpu.memory_space<semaphore_mem>>)
    %c1_i32_154 = arith.constant 1 : i32
    %c11_i32_155 = arith.constant 11 : i32
    %c1_i32_156 = arith.constant 1 : i32
    %c0_i32_157 = arith.constant 0 : i32
    %264 = tpu.memref_slice %arg3[%185, %c0_i32_157] : memref<96x128xf32, #tpu.memory_space<any>> -> memref<1x128xf32, #tpu.memory_space<any>>
    %265 = tpu.memref_squeeze %264 : memref<1x128xf32, #tpu.memory_space<any>> -> memref<128xf32, #tpu.memory_space<any>>
    %c0_i32_158 = arith.constant 0 : i32
    %266 = tpu.memref_slice %arg10[%c1_i32_154, %c11_i32_155, %c0_i32_158] : memref<3x16x128xf32, #tpu.memory_space<vmem>> -> memref<1x1x128xf32, #tpu.memory_space<vmem>>
    %267 = tpu.memref_squeeze %266 : memref<1x1x128xf32, #tpu.memory_space<vmem>> -> memref<128xf32, #tpu.memory_space<vmem>>
    %268 = tpu.memref_slice %arg11[%c1_i32_156] : memref<3x!tpu.dma_semaphore, #tpu.memory_space<semaphore_mem>> -> memref<1x!tpu.dma_semaphore, #tpu.memory_space<semaphore_mem>>
    %269 = tpu.memref_squeeze %268 : memref<1x!tpu.dma_semaphore, #tpu.memory_space<semaphore_mem>> -> memref<!tpu.dma_semaphore, #tpu.memory_space<semaphore_mem>>
    tpu.enqueue_dma source(%265 : memref<128xf32, #tpu.memory_space<any>>) target(%267 : memref<128xf32, #tpu.memory_space<vmem>>) target_semaphore(%269 : memref<!tpu.dma_semaphore, #tpu.memory_space<semaphore_mem>>)
    %c1_i32_159 = arith.constant 1 : i32
    %c12_i32_160 = arith.constant 12 : i32
    %c1_i32_161 = arith.constant 1 : i32
    %c0_i32_162 = arith.constant 0 : i32
    %270 = tpu.memref_slice %arg3[%188, %c0_i32_162] : memref<96x128xf32, #tpu.memory_space<any>> -> memref<1x128xf32, #tpu.memory_space<any>>
    %271 = tpu.memref_squeeze %270 : memref<1x128xf32, #tpu.memory_space<any>> -> memref<128xf32, #tpu.memory_space<any>>
    %c0_i32_163 = arith.constant 0 : i32
    %272 = tpu.memref_slice %arg10[%c1_i32_159, %c12_i32_160, %c0_i32_163] : memref<3x16x128xf32, #tpu.memory_space<vmem>> -> memref<1x1x128xf32, #tpu.memory_space<vmem>>
    %273 = tpu.memref_squeeze %272 : memref<1x1x128xf32, #tpu.memory_space<vmem>> -> memref<128xf32, #tpu.memory_space<vmem>>
    %274 = tpu.memref_slice %arg11[%c1_i32_161] : memref<3x!tpu.dma_semaphore, #tpu.memory_space<semaphore_mem>> -> memref<1x!tpu.dma_semaphore, #tpu.memory_space<semaphore_mem>>
    %275 = tpu.memref_squeeze %274 : memref<1x!tpu.dma_semaphore, #tpu.memory_space<semaphore_mem>> -> memref<!tpu.dma_semaphore, #tpu.memory_space<semaphore_mem>>
    tpu.enqueue_dma source(%271 : memref<128xf32, #tpu.memory_space<any>>) target(%273 : memref<128xf32, #tpu.memory_space<vmem>>) target_semaphore(%275 : memref<!tpu.dma_semaphore, #tpu.memory_space<semaphore_mem>>)
    %c1_i32_164 = arith.constant 1 : i32
    %c13_i32_165 = arith.constant 13 : i32
    %c1_i32_166 = arith.constant 1 : i32
    %c0_i32_167 = arith.constant 0 : i32
    %276 = tpu.memref_slice %arg3[%191, %c0_i32_167] : memref<96x128xf32, #tpu.memory_space<any>> -> memref<1x128xf32, #tpu.memory_space<any>>
    %277 = tpu.memref_squeeze %276 : memref<1x128xf32, #tpu.memory_space<any>> -> memref<128xf32, #tpu.memory_space<any>>
    %c0_i32_168 = arith.constant 0 : i32
    %278 = tpu.memref_slice %arg10[%c1_i32_164, %c13_i32_165, %c0_i32_168] : memref<3x16x128xf32, #tpu.memory_space<vmem>> -> memref<1x1x128xf32, #tpu.memory_space<vmem>>
    %279 = tpu.memref_squeeze %278 : memref<1x1x128xf32, #tpu.memory_space<vmem>> -> memref<128xf32, #tpu.memory_space<vmem>>
    %280 = tpu.memref_slice %arg11[%c1_i32_166] : memref<3x!tpu.dma_semaphore, #tpu.memory_space<semaphore_mem>> -> memref<1x!tpu.dma_semaphore, #tpu.memory_space<semaphore_mem>>
    %281 = tpu.memref_squeeze %280 : memref<1x!tpu.dma_semaphore, #tpu.memory_space<semaphore_mem>> -> memref<!tpu.dma_semaphore, #tpu.memory_space<semaphore_mem>>
    tpu.enqueue_dma source(%277 : memref<128xf32, #tpu.memory_space<any>>) target(%279 : memref<128xf32, #tpu.memory_space<vmem>>) target_semaphore(%281 : memref<!tpu.dma_semaphore, #tpu.memory_space<semaphore_mem>>)
    %c1_i32_169 = arith.constant 1 : i32
    %c14_i32_170 = arith.constant 14 : i32
    %c1_i32_171 = arith.constant 1 : i32
    %c0_i32_172 = arith.constant 0 : i32
    %282 = tpu.memref_slice %arg3[%194, %c0_i32_172] : memref<96x128xf32, #tpu.memory_space<any>> -> memref<1x128xf32, #tpu.memory_space<any>>
    %283 = tpu.memref_squeeze %282 : memref<1x128xf32, #tpu.memory_space<any>> -> memref<128xf32, #tpu.memory_space<any>>
    %c0_i32_173 = arith.constant 0 : i32
    %284 = tpu.memref_slice %arg10[%c1_i32_169, %c14_i32_170, %c0_i32_173] : memref<3x16x128xf32, #tpu.memory_space<vmem>> -> memref<1x1x128xf32, #tpu.memory_space<vmem>>
    %285 = tpu.memref_squeeze %284 : memref<1x1x128xf32, #tpu.memory_space<vmem>> -> memref<128xf32, #tpu.memory_space<vmem>>
    %286 = tpu.memref_slice %arg11[%c1_i32_171] : memref<3x!tpu.dma_semaphore, #tpu.memory_space<semaphore_mem>> -> memref<1x!tpu.dma_semaphore, #tpu.memory_space<semaphore_mem>>
    %287 = tpu.memref_squeeze %286 : memref<1x!tpu.dma_semaphore, #tpu.memory_space<semaphore_mem>> -> memref<!tpu.dma_semaphore, #tpu.memory_space<semaphore_mem>>
    tpu.enqueue_dma source(%283 : memref<128xf32, #tpu.memory_space<any>>) target(%285 : memref<128xf32, #tpu.memory_space<vmem>>) target_semaphore(%287 : memref<!tpu.dma_semaphore, #tpu.memory_space<semaphore_mem>>)
    %c1_i32_174 = arith.constant 1 : i32
    %c15_i32_175 = arith.constant 15 : i32
    %c1_i32_176 = arith.constant 1 : i32
    %c0_i32_177 = arith.constant 0 : i32
    %288 = tpu.memref_slice %arg3[%197, %c0_i32_177] : memref<96x128xf32, #tpu.memory_space<any>> -> memref<1x128xf32, #tpu.memory_space<any>>
    %289 = tpu.memref_squeeze %288 : memref<1x128xf32, #tpu.memory_space<any>> -> memref<128xf32, #tpu.memory_space<any>>
    %c0_i32_178 = arith.constant 0 : i32
    %290 = tpu.memref_slice %arg10[%c1_i32_174, %c15_i32_175, %c0_i32_178] : memref<3x16x128xf32, #tpu.memory_space<vmem>> -> memref<1x1x128xf32, #tpu.memory_space<vmem>>
    %291 = tpu.memref_squeeze %290 : memref<1x1x128xf32, #tpu.memory_space<vmem>> -> memref<128xf32, #tpu.memory_space<vmem>>
    %292 = tpu.memref_slice %arg11[%c1_i32_176] : memref<3x!tpu.dma_semaphore, #tpu.memory_space<semaphore_mem>> -> memref<1x!tpu.dma_semaphore, #tpu.memory_space<semaphore_mem>>
    %293 = tpu.memref_squeeze %292 : memref<1x!tpu.dma_semaphore, #tpu.memory_space<semaphore_mem>> -> memref<!tpu.dma_semaphore, #tpu.memory_space<semaphore_mem>>
    tpu.enqueue_dma source(%289 : memref<128xf32, #tpu.memory_space<any>>) target(%291 : memref<128xf32, #tpu.memory_space<vmem>>) target_semaphore(%293 : memref<!tpu.dma_semaphore, #tpu.memory_space<semaphore_mem>>)
    %c32_i32 = arith.constant 32 : i32
    %294 = arith.addi %2, %c32_i32 : i32
    %c0_i32_179 = arith.constant 0 : i32
    %295 = arith.addi %294, %c0_i32_179 : i32
    %296 = arith.index_cast %295 : i32 to index
    %297 = memref.load %arg2[%296] : memref<128xi32, #tpu.memory_space<smem>>
    %c1_i32_180 = arith.constant 1 : i32
    %298 = arith.addi %294, %c1_i32_180 : i32
    %299 = arith.index_cast %298 : i32 to index
    %300 = memref.load %arg2[%299] : memref<128xi32, #tpu.memory_space<smem>>
    %c2_i32_181 = arith.constant 2 : i32
    %301 = arith.addi %294, %c2_i32_181 : i32
    %302 = arith.index_cast %301 : i32 to index
    %303 = memref.load %arg2[%302] : memref<128xi32, #tpu.memory_space<smem>>
    %c3_i32_182 = arith.constant 3 : i32
    %304 = arith.addi %294, %c3_i32_182 : i32
    %305 = arith.index_cast %304 : i32 to index
    %306 = memref.load %arg2[%305] : memref<128xi32, #tpu.memory_space<smem>>
    %c4_i32_183 = arith.constant 4 : i32
    %307 = arith.addi %294, %c4_i32_183 : i32
    %308 = arith.index_cast %307 : i32 to index
    %309 = memref.load %arg2[%308] : memref<128xi32, #tpu.memory_space<smem>>
    %c5_i32_184 = arith.constant 5 : i32
    %310 = arith.addi %294, %c5_i32_184 : i32
    %311 = arith.index_cast %310 : i32 to index
    %312 = memref.load %arg2[%311] : memref<128xi32, #tpu.memory_space<smem>>
    %c6_i32_185 = arith.constant 6 : i32
    %313 = arith.addi %294, %c6_i32_185 : i32
    %314 = arith.index_cast %313 : i32 to index
    %315 = memref.load %arg2[%314] : memref<128xi32, #tpu.memory_space<smem>>
    %c7_i32_186 = arith.constant 7 : i32
    %316 = arith.addi %294, %c7_i32_186 : i32
    %317 = arith.index_cast %316 : i32 to index
    %318 = memref.load %arg2[%317] : memref<128xi32, #tpu.memory_space<smem>>
    %c8_i32_187 = arith.constant 8 : i32
    %319 = arith.addi %294, %c8_i32_187 : i32
    %320 = arith.index_cast %319 : i32 to index
    %321 = memref.load %arg2[%320] : memref<128xi32, #tpu.memory_space<smem>>
    %c9_i32_188 = arith.constant 9 : i32
    %322 = arith.addi %294, %c9_i32_188 : i32
    %323 = arith.index_cast %322 : i32 to index
    %324 = memref.load %arg2[%323] : memref<128xi32, #tpu.memory_space<smem>>
    %c10_i32_189 = arith.constant 10 : i32
    %325 = arith.addi %294, %c10_i32_189 : i32
    %326 = arith.index_cast %325 : i32 to index
    %327 = memref.load %arg2[%326] : memref<128xi32, #tpu.memory_space<smem>>
    %c11_i32_190 = arith.constant 11 : i32
    %328 = arith.addi %294, %c11_i32_190 : i32
    %329 = arith.index_cast %328 : i32 to index
    %330 = memref.load %arg2[%329] : memref<128xi32, #tpu.memory_space<smem>>
    %c12_i32_191 = arith.constant 12 : i32
    %331 = arith.addi %294, %c12_i32_191 : i32
    %332 = arith.index_cast %331 : i32 to index
    %333 = memref.load %arg2[%332] : memref<128xi32, #tpu.memory_space<smem>>
    %c13_i32_192 = arith.constant 13 : i32
    %334 = arith.addi %294, %c13_i32_192 : i32
    %335 = arith.index_cast %334 : i32 to index
    %336 = memref.load %arg2[%335] : memref<128xi32, #tpu.memory_space<smem>>
    %c14_i32_193 = arith.constant 14 : i32
    %337 = arith.addi %294, %c14_i32_193 : i32
    %338 = arith.index_cast %337 : i32 to index
    %339 = memref.load %arg2[%338] : memref<128xi32, #tpu.memory_space<smem>>
    %c15_i32_194 = arith.constant 15 : i32
    %340 = arith.addi %294, %c15_i32_194 : i32
    %341 = arith.index_cast %340 : i32 to index
    %342 = memref.load %arg2[%341] : memref<128xi32, #tpu.memory_space<smem>>
    %c2_i32_195 = arith.constant 2 : i32
    %c0_i32_196 = arith.constant 0 : i32
    %c2_i32_197 = arith.constant 2 : i32
    %c0_i32_198 = arith.constant 0 : i32
    %343 = tpu.memref_slice %arg3[%297, %c0_i32_198] : memref<96x128xf32, #tpu.memory_space<any>> -> memref<1x128xf32, #tpu.memory_space<any>>
    %344 = tpu.memref_squeeze %343 : memref<1x128xf32, #tpu.memory_space<any>> -> memref<128xf32, #tpu.memory_space<any>>
    %c0_i32_199 = arith.constant 0 : i32
    %345 = tpu.memref_slice %arg10[%c2_i32_195, %c0_i32_196, %c0_i32_199] : memref<3x16x128xf32, #tpu.memory_space<vmem>> -> memref<1x1x128xf32, #tpu.memory_space<vmem>>
    %346 = tpu.memref_squeeze %345 : memref<1x1x128xf32, #tpu.memory_space<vmem>> -> memref<128xf32, #tpu.memory_space<vmem>>
    %347 = tpu.memref_slice %arg11[%c2_i32_197] : memref<3x!tpu.dma_semaphore, #tpu.memory_space<semaphore_mem>> -> memref<1x!tpu.dma_semaphore, #tpu.memory_space<semaphore_mem>>
    %348 = tpu.memref_squeeze %347 : memref<1x!tpu.dma_semaphore, #tpu.memory_space<semaphore_mem>> -> memref<!tpu.dma_semaphore, #tpu.memory_space<semaphore_mem>>
    tpu.enqueue_dma source(%344 : memref<128xf32, #tpu.memory_space<any>>) target(%346 : memref<128xf32, #tpu.memory_space<vmem>>) target_semaphore(%348 : memref<!tpu.dma_semaphore, #tpu.memory_space<semaphore_mem>>)
    %c2_i32_200 = arith.constant 2 : i32
    %c1_i32_201 = arith.constant 1 : i32
    %c2_i32_202 = arith.constant 2 : i32
    %c0_i32_203 = arith.constant 0 : i32
    %349 = tpu.memref_slice %arg3[%300, %c0_i32_203] : memref<96x128xf32, #tpu.memory_space<any>> -> memref<1x128xf32, #tpu.memory_space<any>>
    %350 = tpu.memref_squeeze %349 : memref<1x128xf32, #tpu.memory_space<any>> -> memref<128xf32, #tpu.memory_space<any>>
    %c0_i32_204 = arith.constant 0 : i32
    %351 = tpu.memref_slice %arg10[%c2_i32_200, %c1_i32_201, %c0_i32_204] : memref<3x16x128xf32, #tpu.memory_space<vmem>> -> memref<1x1x128xf32, #tpu.memory_space<vmem>>
    %352 = tpu.memref_squeeze %351 : memref<1x1x128xf32, #tpu.memory_space<vmem>> -> memref<128xf32, #tpu.memory_space<vmem>>
    %353 = tpu.memref_slice %arg11[%c2_i32_202] : memref<3x!tpu.dma_semaphore, #tpu.memory_space<semaphore_mem>> -> memref<1x!tpu.dma_semaphore, #tpu.memory_space<semaphore_mem>>
    %354 = tpu.memref_squeeze %353 : memref<1x!tpu.dma_semaphore, #tpu.memory_space<semaphore_mem>> -> memref<!tpu.dma_semaphore, #tpu.memory_space<semaphore_mem>>
    tpu.enqueue_dma source(%350 : memref<128xf32, #tpu.memory_space<any>>) target(%352 : memref<128xf32, #tpu.memory_space<vmem>>) target_semaphore(%354 : memref<!tpu.dma_semaphore, #tpu.memory_space<semaphore_mem>>)
    %c2_i32_205 = arith.constant 2 : i32
    %c2_i32_206 = arith.constant 2 : i32
    %c2_i32_207 = arith.constant 2 : i32
    %c0_i32_208 = arith.constant 0 : i32
    %355 = tpu.memref_slice %arg3[%303, %c0_i32_208] : memref<96x128xf32, #tpu.memory_space<any>> -> memref<1x128xf32, #tpu.memory_space<any>>
    %356 = tpu.memref_squeeze %355 : memref<1x128xf32, #tpu.memory_space<any>> -> memref<128xf32, #tpu.memory_space<any>>
    %c0_i32_209 = arith.constant 0 : i32
    %357 = tpu.memref_slice %arg10[%c2_i32_205, %c2_i32_206, %c0_i32_209] : memref<3x16x128xf32, #tpu.memory_space<vmem>> -> memref<1x1x128xf32, #tpu.memory_space<vmem>>
    %358 = tpu.memref_squeeze %357 : memref<1x1x128xf32, #tpu.memory_space<vmem>> -> memref<128xf32, #tpu.memory_space<vmem>>
    %359 = tpu.memref_slice %arg11[%c2_i32_207] : memref<3x!tpu.dma_semaphore, #tpu.memory_space<semaphore_mem>> -> memref<1x!tpu.dma_semaphore, #tpu.memory_space<semaphore_mem>>
    %360 = tpu.memref_squeeze %359 : memref<1x!tpu.dma_semaphore, #tpu.memory_space<semaphore_mem>> -> memref<!tpu.dma_semaphore, #tpu.memory_space<semaphore_mem>>
    tpu.enqueue_dma source(%356 : memref<128xf32, #tpu.memory_space<any>>) target(%358 : memref<128xf32, #tpu.memory_space<vmem>>) target_semaphore(%360 : memref<!tpu.dma_semaphore, #tpu.memory_space<semaphore_mem>>)
    %c2_i32_210 = arith.constant 2 : i32
    %c3_i32_211 = arith.constant 3 : i32
    %c2_i32_212 = arith.constant 2 : i32
    %c0_i32_213 = arith.constant 0 : i32
    %361 = tpu.memref_slice %arg3[%306, %c0_i32_213] : memref<96x128xf32, #tpu.memory_space<any>> -> memref<1x128xf32, #tpu.memory_space<any>>
    %362 = tpu.memref_squeeze %361 : memref<1x128xf32, #tpu.memory_space<any>> -> memref<128xf32, #tpu.memory_space<any>>
    %c0_i32_214 = arith.constant 0 : i32
    %363 = tpu.memref_slice %arg10[%c2_i32_210, %c3_i32_211, %c0_i32_214] : memref<3x16x128xf32, #tpu.memory_space<vmem>> -> memref<1x1x128xf32, #tpu.memory_space<vmem>>
    %364 = tpu.memref_squeeze %363 : memref<1x1x128xf32, #tpu.memory_space<vmem>> -> memref<128xf32, #tpu.memory_space<vmem>>
    %365 = tpu.memref_slice %arg11[%c2_i32_212] : memref<3x!tpu.dma_semaphore, #tpu.memory_space<semaphore_mem>> -> memref<1x!tpu.dma_semaphore, #tpu.memory_space<semaphore_mem>>
    %366 = tpu.memref_squeeze %365 : memref<1x!tpu.dma_semaphore, #tpu.memory_space<semaphore_mem>> -> memref<!tpu.dma_semaphore, #tpu.memory_space<semaphore_mem>>
    tpu.enqueue_dma source(%362 : memref<128xf32, #tpu.memory_space<any>>) target(%364 : memref<128xf32, #tpu.memory_space<vmem>>) target_semaphore(%366 : memref<!tpu.dma_semaphore, #tpu.memory_space<semaphore_mem>>)
    %c2_i32_215 = arith.constant 2 : i32
    %c4_i32_216 = arith.constant 4 : i32
    %c2_i32_217 = arith.constant 2 : i32
    %c0_i32_218 = arith.constant 0 : i32
    %367 = tpu.memref_slice %arg3[%309, %c0_i32_218] : memref<96x128xf32, #tpu.memory_space<any>> -> memref<1x128xf32, #tpu.memory_space<any>>
    %368 = tpu.memref_squeeze %367 : memref<1x128xf32, #tpu.memory_space<any>> -> memref<128xf32, #tpu.memory_space<any>>
    %c0_i32_219 = arith.constant 0 : i32
    %369 = tpu.memref_slice %arg10[%c2_i32_215, %c4_i32_216, %c0_i32_219] : memref<3x16x128xf32, #tpu.memory_space<vmem>> -> memref<1x1x128xf32, #tpu.memory_space<vmem>>
    %370 = tpu.memref_squeeze %369 : memref<1x1x128xf32, #tpu.memory_space<vmem>> -> memref<128xf32, #tpu.memory_space<vmem>>
    %371 = tpu.memref_slice %arg11[%c2_i32_217] : memref<3x!tpu.dma_semaphore, #tpu.memory_space<semaphore_mem>> -> memref<1x!tpu.dma_semaphore, #tpu.memory_space<semaphore_mem>>
    %372 = tpu.memref_squeeze %371 : memref<1x!tpu.dma_semaphore, #tpu.memory_space<semaphore_mem>> -> memref<!tpu.dma_semaphore, #tpu.memory_space<semaphore_mem>>
    tpu.enqueue_dma source(%368 : memref<128xf32, #tpu.memory_space<any>>) target(%370 : memref<128xf32, #tpu.memory_space<vmem>>) target_semaphore(%372 : memref<!tpu.dma_semaphore, #tpu.memory_space<semaphore_mem>>)
    %c2_i32_220 = arith.constant 2 : i32
    %c5_i32_221 = arith.constant 5 : i32
    %c2_i32_222 = arith.constant 2 : i32
    %c0_i32_223 = arith.constant 0 : i32
    %373 = tpu.memref_slice %arg3[%312, %c0_i32_223] : memref<96x128xf32, #tpu.memory_space<any>> -> memref<1x128xf32, #tpu.memory_space<any>>
    %374 = tpu.memref_squeeze %373 : memref<1x128xf32, #tpu.memory_space<any>> -> memref<128xf32, #tpu.memory_space<any>>
    %c0_i32_224 = arith.constant 0 : i32
    %375 = tpu.memref_slice %arg10[%c2_i32_220, %c5_i32_221, %c0_i32_224] : memref<3x16x128xf32, #tpu.memory_space<vmem>> -> memref<1x1x128xf32, #tpu.memory_space<vmem>>
    %376 = tpu.memref_squeeze %375 : memref<1x1x128xf32, #tpu.memory_space<vmem>> -> memref<128xf32, #tpu.memory_space<vmem>>
    %377 = tpu.memref_slice %arg11[%c2_i32_222] : memref<3x!tpu.dma_semaphore, #tpu.memory_space<semaphore_mem>> -> memref<1x!tpu.dma_semaphore, #tpu.memory_space<semaphore_mem>>
    %378 = tpu.memref_squeeze %377 : memref<1x!tpu.dma_semaphore, #tpu.memory_space<semaphore_mem>> -> memref<!tpu.dma_semaphore, #tpu.memory_space<semaphore_mem>>
    tpu.enqueue_dma source(%374 : memref<128xf32, #tpu.memory_space<any>>) target(%376 : memref<128xf32, #tpu.memory_space<vmem>>) target_semaphore(%378 : memref<!tpu.dma_semaphore, #tpu.memory_space<semaphore_mem>>)
    %c2_i32_225 = arith.constant 2 : i32
    %c6_i32_226 = arith.constant 6 : i32
    %c2_i32_227 = arith.constant 2 : i32
    %c0_i32_228 = arith.constant 0 : i32
    %379 = tpu.memref_slice %arg3[%315, %c0_i32_228] : memref<96x128xf32, #tpu.memory_space<any>> -> memref<1x128xf32, #tpu.memory_space<any>>
    %380 = tpu.memref_squeeze %379 : memref<1x128xf32, #tpu.memory_space<any>> -> memref<128xf32, #tpu.memory_space<any>>
    %c0_i32_229 = arith.constant 0 : i32
    %381 = tpu.memref_slice %arg10[%c2_i32_225, %c6_i32_226, %c0_i32_229] : memref<3x16x128xf32, #tpu.memory_space<vmem>> -> memref<1x1x128xf32, #tpu.memory_space<vmem>>
    %382 = tpu.memref_squeeze %381 : memref<1x1x128xf32, #tpu.memory_space<vmem>> -> memref<128xf32, #tpu.memory_space<vmem>>
    %383 = tpu.memref_slice %arg11[%c2_i32_227] : memref<3x!tpu.dma_semaphore, #tpu.memory_space<semaphore_mem>> -> memref<1x!tpu.dma_semaphore, #tpu.memory_space<semaphore_mem>>
    %384 = tpu.memref_squeeze %383 : memref<1x!tpu.dma_semaphore, #tpu.memory_space<semaphore_mem>> -> memref<!tpu.dma_semaphore, #tpu.memory_space<semaphore_mem>>
    tpu.enqueue_dma source(%380 : memref<128xf32, #tpu.memory_space<any>>) target(%382 : memref<128xf32, #tpu.memory_space<vmem>>) target_semaphore(%384 : memref<!tpu.dma_semaphore, #tpu.memory_space<semaphore_mem>>)
    %c2_i32_230 = arith.constant 2 : i32
    %c7_i32_231 = arith.constant 7 : i32
    %c2_i32_232 = arith.constant 2 : i32
    %c0_i32_233 = arith.constant 0 : i32
    %385 = tpu.memref_slice %arg3[%318, %c0_i32_233] : memref<96x128xf32, #tpu.memory_space<any>> -> memref<1x128xf32, #tpu.memory_space<any>>
    %386 = tpu.memref_squeeze %385 : memref<1x128xf32, #tpu.memory_space<any>> -> memref<128xf32, #tpu.memory_space<any>>
    %c0_i32_234 = arith.constant 0 : i32
    %387 = tpu.memref_slice %arg10[%c2_i32_230, %c7_i32_231, %c0_i32_234] : memref<3x16x128xf32, #tpu.memory_space<vmem>> -> memref<1x1x128xf32, #tpu.memory_space<vmem>>
    %388 = tpu.memref_squeeze %387 : memref<1x1x128xf32, #tpu.memory_space<vmem>> -> memref<128xf32, #tpu.memory_space<vmem>>
    %389 = tpu.memref_slice %arg11[%c2_i32_232] : memref<3x!tpu.dma_semaphore, #tpu.memory_space<semaphore_mem>> -> memref<1x!tpu.dma_semaphore, #tpu.memory_space<semaphore_mem>>
    %390 = tpu.memref_squeeze %389 : memref<1x!tpu.dma_semaphore, #tpu.memory_space<semaphore_mem>> -> memref<!tpu.dma_semaphore, #tpu.memory_space<semaphore_mem>>
    tpu.enqueue_dma source(%386 : memref<128xf32, #tpu.memory_space<any>>) target(%388 : memref<128xf32, #tpu.memory_space<vmem>>) target_semaphore(%390 : memref<!tpu.dma_semaphore, #tpu.memory_space<semaphore_mem>>)
    %c2_i32_235 = arith.constant 2 : i32
    %c8_i32_236 = arith.constant 8 : i32
    %c2_i32_237 = arith.constant 2 : i32
    %c0_i32_238 = arith.constant 0 : i32
    %391 = tpu.memref_slice %arg3[%321, %c0_i32_238] : memref<96x128xf32, #tpu.memory_space<any>> -> memref<1x128xf32, #tpu.memory_space<any>>
    %392 = tpu.memref_squeeze %391 : memref<1x128xf32, #tpu.memory_space<any>> -> memref<128xf32, #tpu.memory_space<any>>
    %c0_i32_239 = arith.constant 0 : i32
    %393 = tpu.memref_slice %arg10[%c2_i32_235, %c8_i32_236, %c0_i32_239] : memref<3x16x128xf32, #tpu.memory_space<vmem>> -> memref<1x1x128xf32, #tpu.memory_space<vmem>>
    %394 = tpu.memref_squeeze %393 : memref<1x1x128xf32, #tpu.memory_space<vmem>> -> memref<128xf32, #tpu.memory_space<vmem>>
    %395 = tpu.memref_slice %arg11[%c2_i32_237] : memref<3x!tpu.dma_semaphore, #tpu.memory_space<semaphore_mem>> -> memref<1x!tpu.dma_semaphore, #tpu.memory_space<semaphore_mem>>
    %396 = tpu.memref_squeeze %395 : memref<1x!tpu.dma_semaphore, #tpu.memory_space<semaphore_mem>> -> memref<!tpu.dma_semaphore, #tpu.memory_space<semaphore_mem>>
    tpu.enqueue_dma source(%392 : memref<128xf32, #tpu.memory_space<any>>) target(%394 : memref<128xf32, #tpu.memory_space<vmem>>) target_semaphore(%396 : memref<!tpu.dma_semaphore, #tpu.memory_space<semaphore_mem>>)
    %c2_i32_240 = arith.constant 2 : i32
    %c9_i32_241 = arith.constant 9 : i32
    %c2_i32_242 = arith.constant 2 : i32
    %c0_i32_243 = arith.constant 0 : i32
    %397 = tpu.memref_slice %arg3[%324, %c0_i32_243] : memref<96x128xf32, #tpu.memory_space<any>> -> memref<1x128xf32, #tpu.memory_space<any>>
    %398 = tpu.memref_squeeze %397 : memref<1x128xf32, #tpu.memory_space<any>> -> memref<128xf32, #tpu.memory_space<any>>
    %c0_i32_244 = arith.constant 0 : i32
    %399 = tpu.memref_slice %arg10[%c2_i32_240, %c9_i32_241, %c0_i32_244] : memref<3x16x128xf32, #tpu.memory_space<vmem>> -> memref<1x1x128xf32, #tpu.memory_space<vmem>>
    %400 = tpu.memref_squeeze %399 : memref<1x1x128xf32, #tpu.memory_space<vmem>> -> memref<128xf32, #tpu.memory_space<vmem>>
    %401 = tpu.memref_slice %arg11[%c2_i32_242] : memref<3x!tpu.dma_semaphore, #tpu.memory_space<semaphore_mem>> -> memref<1x!tpu.dma_semaphore, #tpu.memory_space<semaphore_mem>>
    %402 = tpu.memref_squeeze %401 : memref<1x!tpu.dma_semaphore, #tpu.memory_space<semaphore_mem>> -> memref<!tpu.dma_semaphore, #tpu.memory_space<semaphore_mem>>
    tpu.enqueue_dma source(%398 : memref<128xf32, #tpu.memory_space<any>>) target(%400 : memref<128xf32, #tpu.memory_space<vmem>>) target_semaphore(%402 : memref<!tpu.dma_semaphore, #tpu.memory_space<semaphore_mem>>)
    %c2_i32_245 = arith.constant 2 : i32
    %c10_i32_246 = arith.constant 10 : i32
    %c2_i32_247 = arith.constant 2 : i32
    %c0_i32_248 = arith.constant 0 : i32
    %403 = tpu.memref_slice %arg3[%327, %c0_i32_248] : memref<96x128xf32, #tpu.memory_space<any>> -> memref<1x128xf32, #tpu.memory_space<any>>
    %404 = tpu.memref_squeeze %403 : memref<1x128xf32, #tpu.memory_space<any>> -> memref<128xf32, #tpu.memory_space<any>>
    %c0_i32_249 = arith.constant 0 : i32
    %405 = tpu.memref_slice %arg10[%c2_i32_245, %c10_i32_246, %c0_i32_249] : memref<3x16x128xf32, #tpu.memory_space<vmem>> -> memref<1x1x128xf32, #tpu.memory_space<vmem>>
    %406 = tpu.memref_squeeze %405 : memref<1x1x128xf32, #tpu.memory_space<vmem>> -> memref<128xf32, #tpu.memory_space<vmem>>
    %407 = tpu.memref_slice %arg11[%c2_i32_247] : memref<3x!tpu.dma_semaphore, #tpu.memory_space<semaphore_mem>> -> memref<1x!tpu.dma_semaphore, #tpu.memory_space<semaphore_mem>>
    %408 = tpu.memref_squeeze %407 : memref<1x!tpu.dma_semaphore, #tpu.memory_space<semaphore_mem>> -> memref<!tpu.dma_semaphore, #tpu.memory_space<semaphore_mem>>
    tpu.enqueue_dma source(%404 : memref<128xf32, #tpu.memory_space<any>>) target(%406 : memref<128xf32, #tpu.memory_space<vmem>>) target_semaphore(%408 : memref<!tpu.dma_semaphore, #tpu.memory_space<semaphore_mem>>)
    %c2_i32_250 = arith.constant 2 : i32
    %c11_i32_251 = arith.constant 11 : i32
    %c2_i32_252 = arith.constant 2 : i32
    %c0_i32_253 = arith.constant 0 : i32
    %409 = tpu.memref_slice %arg3[%330, %c0_i32_253] : memref<96x128xf32, #tpu.memory_space<any>> -> memref<1x128xf32, #tpu.memory_space<any>>
    %410 = tpu.memref_squeeze %409 : memref<1x128xf32, #tpu.memory_space<any>> -> memref<128xf32, #tpu.memory_space<any>>
    %c0_i32_254 = arith.constant 0 : i32
    %411 = tpu.memref_slice %arg10[%c2_i32_250, %c11_i32_251, %c0_i32_254] : memref<3x16x128xf32, #tpu.memory_space<vmem>> -> memref<1x1x128xf32, #tpu.memory_space<vmem>>
    %412 = tpu.memref_squeeze %411 : memref<1x1x128xf32, #tpu.memory_space<vmem>> -> memref<128xf32, #tpu.memory_space<vmem>>
    %413 = tpu.memref_slice %arg11[%c2_i32_252] : memref<3x!tpu.dma_semaphore, #tpu.memory_space<semaphore_mem>> -> memref<1x!tpu.dma_semaphore, #tpu.memory_space<semaphore_mem>>
    %414 = tpu.memref_squeeze %413 : memref<1x!tpu.dma_semaphore, #tpu.memory_space<semaphore_mem>> -> memref<!tpu.dma_semaphore, #tpu.memory_space<semaphore_mem>>
    tpu.enqueue_dma source(%410 : memref<128xf32, #tpu.memory_space<any>>) target(%412 : memref<128xf32, #tpu.memory_space<vmem>>) target_semaphore(%414 : memref<!tpu.dma_semaphore, #tpu.memory_space<semaphore_mem>>)
    %c2_i32_255 = arith.constant 2 : i32
    %c12_i32_256 = arith.constant 12 : i32
    %c2_i32_257 = arith.constant 2 : i32
    %c0_i32_258 = arith.constant 0 : i32
    %415 = tpu.memref_slice %arg3[%333, %c0_i32_258] : memref<96x128xf32, #tpu.memory_space<any>> -> memref<1x128xf32, #tpu.memory_space<any>>
    %416 = tpu.memref_squeeze %415 : memref<1x128xf32, #tpu.memory_space<any>> -> memref<128xf32, #tpu.memory_space<any>>
    %c0_i32_259 = arith.constant 0 : i32
    %417 = tpu.memref_slice %arg10[%c2_i32_255, %c12_i32_256, %c0_i32_259] : memref<3x16x128xf32, #tpu.memory_space<vmem>> -> memref<1x1x128xf32, #tpu.memory_space<vmem>>
    %418 = tpu.memref_squeeze %417 : memref<1x1x128xf32, #tpu.memory_space<vmem>> -> memref<128xf32, #tpu.memory_space<vmem>>
    %419 = tpu.memref_slice %arg11[%c2_i32_257] : memref<3x!tpu.dma_semaphore, #tpu.memory_space<semaphore_mem>> -> memref<1x!tpu.dma_semaphore, #tpu.memory_space<semaphore_mem>>
    %420 = tpu.memref_squeeze %419 : memref<1x!tpu.dma_semaphore, #tpu.memory_space<semaphore_mem>> -> memref<!tpu.dma_semaphore, #tpu.memory_space<semaphore_mem>>
    tpu.enqueue_dma source(%416 : memref<128xf32, #tpu.memory_space<any>>) target(%418 : memref<128xf32, #tpu.memory_space<vmem>>) target_semaphore(%420 : memref<!tpu.dma_semaphore, #tpu.memory_space<semaphore_mem>>)
    %c2_i32_260 = arith.constant 2 : i32
    %c13_i32_261 = arith.constant 13 : i32
    %c2_i32_262 = arith.constant 2 : i32
    %c0_i32_263 = arith.constant 0 : i32
    %421 = tpu.memref_slice %arg3[%336, %c0_i32_263] : memref<96x128xf32, #tpu.memory_space<any>> -> memref<1x128xf32, #tpu.memory_space<any>>
    %422 = tpu.memref_squeeze %421 : memref<1x128xf32, #tpu.memory_space<any>> -> memref<128xf32, #tpu.memory_space<any>>
    %c0_i32_264 = arith.constant 0 : i32
    %423 = tpu.memref_slice %arg10[%c2_i32_260, %c13_i32_261, %c0_i32_264] : memref<3x16x128xf32, #tpu.memory_space<vmem>> -> memref<1x1x128xf32, #tpu.memory_space<vmem>>
    %424 = tpu.memref_squeeze %423 : memref<1x1x128xf32, #tpu.memory_space<vmem>> -> memref<128xf32, #tpu.memory_space<vmem>>
    %425 = tpu.memref_slice %arg11[%c2_i32_262] : memref<3x!tpu.dma_semaphore, #tpu.memory_space<semaphore_mem>> -> memref<1x!tpu.dma_semaphore, #tpu.memory_space<semaphore_mem>>
    %426 = tpu.memref_squeeze %425 : memref<1x!tpu.dma_semaphore, #tpu.memory_space<semaphore_mem>> -> memref<!tpu.dma_semaphore, #tpu.memory_space<semaphore_mem>>
    tpu.enqueue_dma source(%422 : memref<128xf32, #tpu.memory_space<any>>) target(%424 : memref<128xf32, #tpu.memory_space<vmem>>) target_semaphore(%426 : memref<!tpu.dma_semaphore, #tpu.memory_space<semaphore_mem>>)
    %c2_i32_265 = arith.constant 2 : i32
    %c14_i32_266 = arith.constant 14 : i32
    %c2_i32_267 = arith.constant 2 : i32
    %c0_i32_268 = arith.constant 0 : i32
    %427 = tpu.memref_slice %arg3[%339, %c0_i32_268] : memref<96x128xf32, #tpu.memory_space<any>> -> memref<1x128xf32, #tpu.memory_space<any>>
    %428 = tpu.memref_squeeze %427 : memref<1x128xf32, #tpu.memory_space<any>> -> memref<128xf32, #tpu.memory_space<any>>
    %c0_i32_269 = arith.constant 0 : i32
    %429 = tpu.memref_slice %arg10[%c2_i32_265, %c14_i32_266, %c0_i32_269] : memref<3x16x128xf32, #tpu.memory_space<vmem>> -> memref<1x1x128xf32, #tpu.memory_space<vmem>>
    %430 = tpu.memref_squeeze %429 : memref<1x1x128xf32, #tpu.memory_space<vmem>> -> memref<128xf32, #tpu.memory_space<vmem>>
    %431 = tpu.memref_slice %arg11[%c2_i32_267] : memref<3x!tpu.dma_semaphore, #tpu.memory_space<semaphore_mem>> -> memref<1x!tpu.dma_semaphore, #tpu.memory_space<semaphore_mem>>
    %432 = tpu.memref_squeeze %431 : memref<1x!tpu.dma_semaphore, #tpu.memory_space<semaphore_mem>> -> memref<!tpu.dma_semaphore, #tpu.memory_space<semaphore_mem>>
    tpu.enqueue_dma source(%428 : memref<128xf32, #tpu.memory_space<any>>) target(%430 : memref<128xf32, #tpu.memory_space<vmem>>) target_semaphore(%432 : memref<!tpu.dma_semaphore, #tpu.memory_space<semaphore_mem>>)
    %c2_i32_270 = arith.constant 2 : i32
    %c15_i32_271 = arith.constant 15 : i32
    %c2_i32_272 = arith.constant 2 : i32
    %c0_i32_273 = arith.constant 0 : i32
    %433 = tpu.memref_slice %arg3[%342, %c0_i32_273] : memref<96x128xf32, #tpu.memory_space<any>> -> memref<1x128xf32, #tpu.memory_space<any>>
    %434 = tpu.memref_squeeze %433 : memref<1x128xf32, #tpu.memory_space<any>> -> memref<128xf32, #tpu.memory_space<any>>
    %c0_i32_274 = arith.constant 0 : i32
    %435 = tpu.memref_slice %arg10[%c2_i32_270, %c15_i32_271, %c0_i32_274] : memref<3x16x128xf32, #tpu.memory_space<vmem>> -> memref<1x1x128xf32, #tpu.memory_space<vmem>>
    %436 = tpu.memref_squeeze %435 : memref<1x1x128xf32, #tpu.memory_space<vmem>> -> memref<128xf32, #tpu.memory_space<vmem>>
    %437 = tpu.memref_slice %arg11[%c2_i32_272] : memref<3x!tpu.dma_semaphore, #tpu.memory_space<semaphore_mem>> -> memref<1x!tpu.dma_semaphore, #tpu.memory_space<semaphore_mem>>
    %438 = tpu.memref_squeeze %437 : memref<1x!tpu.dma_semaphore, #tpu.memory_space<semaphore_mem>> -> memref<!tpu.dma_semaphore, #tpu.memory_space<semaphore_mem>>
    tpu.enqueue_dma source(%434 : memref<128xf32, #tpu.memory_space<any>>) target(%436 : memref<128xf32, #tpu.memory_space<vmem>>) target_semaphore(%438 : memref<!tpu.dma_semaphore, #tpu.memory_space<semaphore_mem>>)
    %c0 = arith.constant 0 : index
    %c0_275 = arith.constant 0 : index
    %439 = vector.load %arg7[%c0, %c0_275] : memref<1x128xf32, #tpu.memory_space<vmem>>, vector<1x128xf32>
    %c0_276 = arith.constant 0 : index
    %c0_277 = arith.constant 0 : index
    %440 = vector.load %arg8[%c0_276, %c0_277] : memref<1x128xf32, #tpu.memory_space<vmem>>, vector<1x128xf32>
    %c0_278 = arith.constant 0 : index
    %c0_279 = arith.constant 0 : index
    %441 = vector.load %arg5[%c0_278, %c0_279] : memref<2x128xf32, #tpu.memory_space<vmem>>, vector<1x128xf32>
    %c1 = arith.constant 1 : index
    %c0_280 = arith.constant 0 : index
    %442 = vector.load %arg5[%c1, %c0_280] : memref<2x128xf32, #tpu.memory_space<vmem>>, vector<1x128xf32>
    %cst = arith.constant 7.812500e-03 : f32
    %c0_i32_281 = arith.constant 0 : i32
    %c4_i32_282 = arith.constant 4 : i32
    %443 = arith.addi %c0_i32_281, %c4_i32_282 : i32
    %c1_i32_283 = arith.constant 1 : i32
    scf.for %arg12 = %c0_i32_281 to %443 step %c1_i32_283  : i32 {
      %c1_i32_285 = arith.constant 1 : i32
      %444 = arith.muli %arg12, %c1_i32_285 : i32
      %c0_i32_286 = arith.constant 0 : i32
      %445 = arith.addi %c0_i32_286, %444 : i32
      %c3_i32_287 = arith.constant 3 : i32
      %c0_i32_288 = arith.constant 0 : i32
      %446 = arith.cmpi eq, %c3_i32_287, %c0_i32_288 : i32
      %c1_i32_289 = arith.constant 1 : i32
      %447 = arith.select %446, %c1_i32_289, %c3_i32_287 : i32
      %448 = arith.remsi %445, %447 : i32
      %c0_i32_290 = arith.constant 0 : i32
      %449 = arith.cmpi ne, %448, %c0_i32_290 : i32
      %c0_i32_291 = arith.constant 0 : i32
      %450 = arith.cmpi slt, %448, %c0_i32_291 : i32
      %c0_i32_292 = arith.constant 0 : i32
      %451 = arith.cmpi slt, %447, %c0_i32_292 : i32
      %452 = arith.xori %450, %451 : i1
      %453 = arith.andi %452, %449 : i1
      %454 = arith.addi %448, %447 : i32
      %455 = arith.select %453, %454, %448 : i32
      %c3_i32_293 = arith.constant 3 : i32
      %456 = arith.addi %445, %c3_i32_293 : i32
      %c3_i32_294 = arith.constant 3 : i32
      %457 = arith.minsi %456, %c3_i32_294 : i32
      %c16_i32_295 = arith.constant 16 : i32
      %458 = arith.muli %457, %c16_i32_295 : i32
      %459 = arith.addi %2, %458 : i32
      %c0_i32_296 = arith.constant 0 : i32
      %460 = arith.addi %459, %c0_i32_296 : i32
      %461 = arith.index_cast %460 : i32 to index
      %462 = memref.load %arg2[%461] : memref<128xi32, #tpu.memory_space<smem>>
      %c1_i32_297 = arith.constant 1 : i32
      %463 = arith.addi %459, %c1_i32_297 : i32
      %464 = arith.index_cast %463 : i32 to index
      %465 = memref.load %arg2[%464] : memref<128xi32, #tpu.memory_space<smem>>
      %c2_i32_298 = arith.constant 2 : i32
      %466 = arith.addi %459, %c2_i32_298 : i32
      %467 = arith.index_cast %466 : i32 to index
      %468 = memref.load %arg2[%467] : memref<128xi32, #tpu.memory_space<smem>>
      %c3_i32_299 = arith.constant 3 : i32
      %469 = arith.addi %459, %c3_i32_299 : i32
      %470 = arith.index_cast %469 : i32 to index
      %471 = memref.load %arg2[%470] : memref<128xi32, #tpu.memory_space<smem>>
      %c4_i32_300 = arith.constant 4 : i32
      %472 = arith.addi %459, %c4_i32_300 : i32
      %473 = arith.index_cast %472 : i32 to index
      %474 = memref.load %arg2[%473] : memref<128xi32, #tpu.memory_space<smem>>
      %c5_i32_301 = arith.constant 5 : i32
      %475 = arith.addi %459, %c5_i32_301 : i32
      %476 = arith.index_cast %475 : i32 to index
      %477 = memref.load %arg2[%476] : memref<128xi32, #tpu.memory_space<smem>>
      %c6_i32_302 = arith.constant 6 : i32
      %478 = arith.addi %459, %c6_i32_302 : i32
      %479 = arith.index_cast %478 : i32 to index
      %480 = memref.load %arg2[%479] : memref<128xi32, #tpu.memory_space<smem>>
      %c7_i32_303 = arith.constant 7 : i32
      %481 = arith.addi %459, %c7_i32_303 : i32
      %482 = arith.index_cast %481 : i32 to index
      %483 = memref.load %arg2[%482] : memref<128xi32, #tpu.memory_space<smem>>
      %c8_i32_304 = arith.constant 8 : i32
      %484 = arith.addi %459, %c8_i32_304 : i32
      %485 = arith.index_cast %484 : i32 to index
      %486 = memref.load %arg2[%485] : memref<128xi32, #tpu.memory_space<smem>>
      %c9_i32_305 = arith.constant 9 : i32
      %487 = arith.addi %459, %c9_i32_305 : i32
      %488 = arith.index_cast %487 : i32 to index
      %489 = memref.load %arg2[%488] : memref<128xi32, #tpu.memory_space<smem>>
      %c10_i32_306 = arith.constant 10 : i32
      %490 = arith.addi %459, %c10_i32_306 : i32
      %491 = arith.index_cast %490 : i32 to index
      %492 = memref.load %arg2[%491] : memref<128xi32, #tpu.memory_space<smem>>
      %c11_i32_307 = arith.constant 11 : i32
      %493 = arith.addi %459, %c11_i32_307 : i32
      %494 = arith.index_cast %493 : i32 to index
      %495 = memref.load %arg2[%494] : memref<128xi32, #tpu.memory_space<smem>>
      %c12_i32_308 = arith.constant 12 : i32
      %496 = arith.addi %459, %c12_i32_308 : i32
      %497 = arith.index_cast %496 : i32 to index
      %498 = memref.load %arg2[%497] : memref<128xi32, #tpu.memory_space<smem>>
      %c13_i32_309 = arith.constant 13 : i32
      %499 = arith.addi %459, %c13_i32_309 : i32
      %500 = arith.index_cast %499 : i32 to index
      %501 = memref.load %arg2[%500] : memref<128xi32, #tpu.memory_space<smem>>
      %c14_i32_310 = arith.constant 14 : i32
      %502 = arith.addi %459, %c14_i32_310 : i32
      %503 = arith.index_cast %502 : i32 to index
      %504 = memref.load %arg2[%503] : memref<128xi32, #tpu.memory_space<smem>>
      %c15_i32_311 = arith.constant 15 : i32
      %505 = arith.addi %459, %c15_i32_311 : i32
      %506 = arith.index_cast %505 : i32 to index
      %507 = memref.load %arg2[%506] : memref<128xi32, #tpu.memory_space<smem>>
      %c0_i32_312 = arith.constant 0 : i32
      %c0_i32_313 = arith.constant 0 : i32
      %508 = tpu.memref_slice %arg3[%c0_i32_312, %c0_i32_313] : memref<96x128xf32, #tpu.memory_space<any>> -> memref<16x128xf32, #tpu.memory_space<any>>
      %c0_i32_314 = arith.constant 0 : i32
      %c0_i32_315 = arith.constant 0 : i32
      %509 = tpu.memref_slice %arg10[%455, %c0_i32_314, %c0_i32_315] : memref<3x16x128xf32, #tpu.memory_space<vmem>> -> memref<1x16x128xf32, #tpu.memory_space<vmem>>
      %510 = tpu.memref_squeeze %509 : memref<1x16x128xf32, #tpu.memory_space<vmem>> -> memref<16x128xf32, #tpu.memory_space<vmem>>
      %511 = tpu.memref_slice %arg11[%455] : memref<3x!tpu.dma_semaphore, #tpu.memory_space<semaphore_mem>> -> memref<1x!tpu.dma_semaphore, #tpu.memory_space<semaphore_mem>>
      %512 = tpu.memref_squeeze %511 : memref<1x!tpu.dma_semaphore, #tpu.memory_space<semaphore_mem>> -> memref<!tpu.dma_semaphore, #tpu.memory_space<semaphore_mem>>
      tpu.wait_dma2 semaphore(%512 : memref<!tpu.dma_semaphore, #tpu.memory_space<semaphore_mem>>) src(%508 : memref<16x128xf32, #tpu.memory_space<any>>) dst(%510 : memref<16x128xf32, #tpu.memory_space<vmem>>)
      %513 = arith.index_cast %455 : i32 to index
      %c0_316 = arith.constant 0 : index
      %c0_317 = arith.constant 0 : index
      %514 = vector.load %arg10[%513, %c0_316, %c0_317] : memref<3x16x128xf32, #tpu.memory_space<vmem>>, vector<1x16x128xf32>
      %515 = vector.shape_cast %514 : vector<1x16x128xf32> to vector<16x128xf32>
      %c3_i32_318 = arith.constant 3 : i32
      %516 = arith.addi %445, %c3_i32_318 : i32
      %c4_i32_319 = arith.constant 4 : i32
      %517 = arith.cmpi slt, %516, %c4_i32_319 : i32
      %518 = arith.extui %517 : i1 to i32
      %c0_i32_320 = arith.constant 0 : i32
      %519 = arith.cmpi ne, %518, %c0_i32_320 : i32
      scf.if %519 {
        %c0_i32_333 = arith.constant 0 : i32
        %c0_i32_334 = arith.constant 0 : i32
        %569 = tpu.memref_slice %arg3[%462, %c0_i32_334] : memref<96x128xf32, #tpu.memory_space<any>> -> memref<1x128xf32, #tpu.memory_space<any>>
        %570 = tpu.memref_squeeze %569 : memref<1x128xf32, #tpu.memory_space<any>> -> memref<128xf32, #tpu.memory_space<any>>
        %c0_i32_335 = arith.constant 0 : i32
        %571 = tpu.memref_slice %arg10[%455, %c0_i32_333, %c0_i32_335] : memref<3x16x128xf32, #tpu.memory_space<vmem>> -> memref<1x1x128xf32, #tpu.memory_space<vmem>>
        %572 = tpu.memref_squeeze %571 : memref<1x1x128xf32, #tpu.memory_space<vmem>> -> memref<128xf32, #tpu.memory_space<vmem>>
        %573 = tpu.memref_slice %arg11[%455] : memref<3x!tpu.dma_semaphore, #tpu.memory_space<semaphore_mem>> -> memref<1x!tpu.dma_semaphore, #tpu.memory_space<semaphore_mem>>
        %574 = tpu.memref_squeeze %573 : memref<1x!tpu.dma_semaphore, #tpu.memory_space<semaphore_mem>> -> memref<!tpu.dma_semaphore, #tpu.memory_space<semaphore_mem>>
        tpu.enqueue_dma source(%570 : memref<128xf32, #tpu.memory_space<any>>) target(%572 : memref<128xf32, #tpu.memory_space<vmem>>) target_semaphore(%574 : memref<!tpu.dma_semaphore, #tpu.memory_space<semaphore_mem>>)
        %c1_i32_336 = arith.constant 1 : i32
        %c0_i32_337 = arith.constant 0 : i32
        %575 = tpu.memref_slice %arg3[%465, %c0_i32_337] : memref<96x128xf32, #tpu.memory_space<any>> -> memref<1x128xf32, #tpu.memory_space<any>>
        %576 = tpu.memref_squeeze %575 : memref<1x128xf32, #tpu.memory_space<any>> -> memref<128xf32, #tpu.memory_space<any>>
        %c0_i32_338 = arith.constant 0 : i32
        %577 = tpu.memref_slice %arg10[%455, %c1_i32_336, %c0_i32_338] : memref<3x16x128xf32, #tpu.memory_space<vmem>> -> memref<1x1x128xf32, #tpu.memory_space<vmem>>
        %578 = tpu.memref_squeeze %577 : memref<1x1x128xf32, #tpu.memory_space<vmem>> -> memref<128xf32, #tpu.memory_space<vmem>>
        %579 = tpu.memref_slice %arg11[%455] : memref<3x!tpu.dma_semaphore, #tpu.memory_space<semaphore_mem>> -> memref<1x!tpu.dma_semaphore, #tpu.memory_space<semaphore_mem>>
        %580 = tpu.memref_squeeze %579 : memref<1x!tpu.dma_semaphore, #tpu.memory_space<semaphore_mem>> -> memref<!tpu.dma_semaphore, #tpu.memory_space<semaphore_mem>>
        tpu.enqueue_dma source(%576 : memref<128xf32, #tpu.memory_space<any>>) target(%578 : memref<128xf32, #tpu.memory_space<vmem>>) target_semaphore(%580 : memref<!tpu.dma_semaphore, #tpu.memory_space<semaphore_mem>>)
        %c2_i32_339 = arith.constant 2 : i32
        %c0_i32_340 = arith.constant 0 : i32
        %581 = tpu.memref_slice %arg3[%468, %c0_i32_340] : memref<96x128xf32, #tpu.memory_space<any>> -> memref<1x128xf32, #tpu.memory_space<any>>
        %582 = tpu.memref_squeeze %581 : memref<1x128xf32, #tpu.memory_space<any>> -> memref<128xf32, #tpu.memory_space<any>>
        %c0_i32_341 = arith.constant 0 : i32
        %583 = tpu.memref_slice %arg10[%455, %c2_i32_339, %c0_i32_341] : memref<3x16x128xf32, #tpu.memory_space<vmem>> -> memref<1x1x128xf32, #tpu.memory_space<vmem>>
        %584 = tpu.memref_squeeze %583 : memref<1x1x128xf32, #tpu.memory_space<vmem>> -> memref<128xf32, #tpu.memory_space<vmem>>
        %585 = tpu.memref_slice %arg11[%455] : memref<3x!tpu.dma_semaphore, #tpu.memory_space<semaphore_mem>> -> memref<1x!tpu.dma_semaphore, #tpu.memory_space<semaphore_mem>>
        %586 = tpu.memref_squeeze %585 : memref<1x!tpu.dma_semaphore, #tpu.memory_space<semaphore_mem>> -> memref<!tpu.dma_semaphore, #tpu.memory_space<semaphore_mem>>
        tpu.enqueue_dma source(%582 : memref<128xf32, #tpu.memory_space<any>>) target(%584 : memref<128xf32, #tpu.memory_space<vmem>>) target_semaphore(%586 : memref<!tpu.dma_semaphore, #tpu.memory_space<semaphore_mem>>)
        %c3_i32_342 = arith.constant 3 : i32
        %c0_i32_343 = arith.constant 0 : i32
        %587 = tpu.memref_slice %arg3[%471, %c0_i32_343] : memref<96x128xf32, #tpu.memory_space<any>> -> memref<1x128xf32, #tpu.memory_space<any>>
        %588 = tpu.memref_squeeze %587 : memref<1x128xf32, #tpu.memory_space<any>> -> memref<128xf32, #tpu.memory_space<any>>
        %c0_i32_344 = arith.constant 0 : i32
        %589 = tpu.memref_slice %arg10[%455, %c3_i32_342, %c0_i32_344] : memref<3x16x128xf32, #tpu.memory_space<vmem>> -> memref<1x1x128xf32, #tpu.memory_space<vmem>>
        %590 = tpu.memref_squeeze %589 : memref<1x1x128xf32, #tpu.memory_space<vmem>> -> memref<128xf32, #tpu.memory_space<vmem>>
        %591 = tpu.memref_slice %arg11[%455] : memref<3x!tpu.dma_semaphore, #tpu.memory_space<semaphore_mem>> -> memref<1x!tpu.dma_semaphore, #tpu.memory_space<semaphore_mem>>
        %592 = tpu.memref_squeeze %591 : memref<1x!tpu.dma_semaphore, #tpu.memory_space<semaphore_mem>> -> memref<!tpu.dma_semaphore, #tpu.memory_space<semaphore_mem>>
        tpu.enqueue_dma source(%588 : memref<128xf32, #tpu.memory_space<any>>) target(%590 : memref<128xf32, #tpu.memory_space<vmem>>) target_semaphore(%592 : memref<!tpu.dma_semaphore, #tpu.memory_space<semaphore_mem>>)
        %c4_i32_345 = arith.constant 4 : i32
        %c0_i32_346 = arith.constant 0 : i32
        %593 = tpu.memref_slice %arg3[%474, %c0_i32_346] : memref<96x128xf32, #tpu.memory_space<any>> -> memref<1x128xf32, #tpu.memory_space<any>>
        %594 = tpu.memref_squeeze %593 : memref<1x128xf32, #tpu.memory_space<any>> -> memref<128xf32, #tpu.memory_space<any>>
        %c0_i32_347 = arith.constant 0 : i32
        %595 = tpu.memref_slice %arg10[%455, %c4_i32_345, %c0_i32_347] : memref<3x16x128xf32, #tpu.memory_space<vmem>> -> memref<1x1x128xf32, #tpu.memory_space<vmem>>
        %596 = tpu.memref_squeeze %595 : memref<1x1x128xf32, #tpu.memory_space<vmem>> -> memref<128xf32, #tpu.memory_space<vmem>>
        %597 = tpu.memref_slice %arg11[%455] : memref<3x!tpu.dma_semaphore, #tpu.memory_space<semaphore_mem>> -> memref<1x!tpu.dma_semaphore, #tpu.memory_space<semaphore_mem>>
        %598 = tpu.memref_squeeze %597 : memref<1x!tpu.dma_semaphore, #tpu.memory_space<semaphore_mem>> -> memref<!tpu.dma_semaphore, #tpu.memory_space<semaphore_mem>>
        tpu.enqueue_dma source(%594 : memref<128xf32, #tpu.memory_space<any>>) target(%596 : memref<128xf32, #tpu.memory_space<vmem>>) target_semaphore(%598 : memref<!tpu.dma_semaphore, #tpu.memory_space<semaphore_mem>>)
        %c5_i32_348 = arith.constant 5 : i32
        %c0_i32_349 = arith.constant 0 : i32
        %599 = tpu.memref_slice %arg3[%477, %c0_i32_349] : memref<96x128xf32, #tpu.memory_space<any>> -> memref<1x128xf32, #tpu.memory_space<any>>
        %600 = tpu.memref_squeeze %599 : memref<1x128xf32, #tpu.memory_space<any>> -> memref<128xf32, #tpu.memory_space<any>>
        %c0_i32_350 = arith.constant 0 : i32
        %601 = tpu.memref_slice %arg10[%455, %c5_i32_348, %c0_i32_350] : memref<3x16x128xf32, #tpu.memory_space<vmem>> -> memref<1x1x128xf32, #tpu.memory_space<vmem>>
        %602 = tpu.memref_squeeze %601 : memref<1x1x128xf32, #tpu.memory_space<vmem>> -> memref<128xf32, #tpu.memory_space<vmem>>
        %603 = tpu.memref_slice %arg11[%455] : memref<3x!tpu.dma_semaphore, #tpu.memory_space<semaphore_mem>> -> memref<1x!tpu.dma_semaphore, #tpu.memory_space<semaphore_mem>>
        %604 = tpu.memref_squeeze %603 : memref<1x!tpu.dma_semaphore, #tpu.memory_space<semaphore_mem>> -> memref<!tpu.dma_semaphore, #tpu.memory_space<semaphore_mem>>
        tpu.enqueue_dma source(%600 : memref<128xf32, #tpu.memory_space<any>>) target(%602 : memref<128xf32, #tpu.memory_space<vmem>>) target_semaphore(%604 : memref<!tpu.dma_semaphore, #tpu.memory_space<semaphore_mem>>)
        %c6_i32_351 = arith.constant 6 : i32
        %c0_i32_352 = arith.constant 0 : i32
        %605 = tpu.memref_slice %arg3[%480, %c0_i32_352] : memref<96x128xf32, #tpu.memory_space<any>> -> memref<1x128xf32, #tpu.memory_space<any>>
        %606 = tpu.memref_squeeze %605 : memref<1x128xf32, #tpu.memory_space<any>> -> memref<128xf32, #tpu.memory_space<any>>
        %c0_i32_353 = arith.constant 0 : i32
        %607 = tpu.memref_slice %arg10[%455, %c6_i32_351, %c0_i32_353] : memref<3x16x128xf32, #tpu.memory_space<vmem>> -> memref<1x1x128xf32, #tpu.memory_space<vmem>>
        %608 = tpu.memref_squeeze %607 : memref<1x1x128xf32, #tpu.memory_space<vmem>> -> memref<128xf32, #tpu.memory_space<vmem>>
        %609 = tpu.memref_slice %arg11[%455] : memref<3x!tpu.dma_semaphore, #tpu.memory_space<semaphore_mem>> -> memref<1x!tpu.dma_semaphore, #tpu.memory_space<semaphore_mem>>
        %610 = tpu.memref_squeeze %609 : memref<1x!tpu.dma_semaphore, #tpu.memory_space<semaphore_mem>> -> memref<!tpu.dma_semaphore, #tpu.memory_space<semaphore_mem>>
        tpu.enqueue_dma source(%606 : memref<128xf32, #tpu.memory_space<any>>) target(%608 : memref<128xf32, #tpu.memory_space<vmem>>) target_semaphore(%610 : memref<!tpu.dma_semaphore, #tpu.memory_space<semaphore_mem>>)
        %c7_i32_354 = arith.constant 7 : i32
        %c0_i32_355 = arith.constant 0 : i32
        %611 = tpu.memref_slice %arg3[%483, %c0_i32_355] : memref<96x128xf32, #tpu.memory_space<any>> -> memref<1x128xf32, #tpu.memory_space<any>>
        %612 = tpu.memref_squeeze %611 : memref<1x128xf32, #tpu.memory_space<any>> -> memref<128xf32, #tpu.memory_space<any>>
        %c0_i32_356 = arith.constant 0 : i32
        %613 = tpu.memref_slice %arg10[%455, %c7_i32_354, %c0_i32_356] : memref<3x16x128xf32, #tpu.memory_space<vmem>> -> memref<1x1x128xf32, #tpu.memory_space<vmem>>
        %614 = tpu.memref_squeeze %613 : memref<1x1x128xf32, #tpu.memory_space<vmem>> -> memref<128xf32, #tpu.memory_space<vmem>>
        %615 = tpu.memref_slice %arg11[%455] : memref<3x!tpu.dma_semaphore, #tpu.memory_space<semaphore_mem>> -> memref<1x!tpu.dma_semaphore, #tpu.memory_space<semaphore_mem>>
        %616 = tpu.memref_squeeze %615 : memref<1x!tpu.dma_semaphore, #tpu.memory_space<semaphore_mem>> -> memref<!tpu.dma_semaphore, #tpu.memory_space<semaphore_mem>>
        tpu.enqueue_dma source(%612 : memref<128xf32, #tpu.memory_space<any>>) target(%614 : memref<128xf32, #tpu.memory_space<vmem>>) target_semaphore(%616 : memref<!tpu.dma_semaphore, #tpu.memory_space<semaphore_mem>>)
        %c8_i32_357 = arith.constant 8 : i32
        %c0_i32_358 = arith.constant 0 : i32
        %617 = tpu.memref_slice %arg3[%486, %c0_i32_358] : memref<96x128xf32, #tpu.memory_space<any>> -> memref<1x128xf32, #tpu.memory_space<any>>
        %618 = tpu.memref_squeeze %617 : memref<1x128xf32, #tpu.memory_space<any>> -> memref<128xf32, #tpu.memory_space<any>>
        %c0_i32_359 = arith.constant 0 : i32
        %619 = tpu.memref_slice %arg10[%455, %c8_i32_357, %c0_i32_359] : memref<3x16x128xf32, #tpu.memory_space<vmem>> -> memref<1x1x128xf32, #tpu.memory_space<vmem>>
        %620 = tpu.memref_squeeze %619 : memref<1x1x128xf32, #tpu.memory_space<vmem>> -> memref<128xf32, #tpu.memory_space<vmem>>
        %621 = tpu.memref_slice %arg11[%455] : memref<3x!tpu.dma_semaphore, #tpu.memory_space<semaphore_mem>> -> memref<1x!tpu.dma_semaphore, #tpu.memory_space<semaphore_mem>>
        %622 = tpu.memref_squeeze %621 : memref<1x!tpu.dma_semaphore, #tpu.memory_space<semaphore_mem>> -> memref<!tpu.dma_semaphore, #tpu.memory_space<semaphore_mem>>
        tpu.enqueue_dma source(%618 : memref<128xf32, #tpu.memory_space<any>>) target(%620 : memref<128xf32, #tpu.memory_space<vmem>>) target_semaphore(%622 : memref<!tpu.dma_semaphore, #tpu.memory_space<semaphore_mem>>)
        %c9_i32_360 = arith.constant 9 : i32
        %c0_i32_361 = arith.constant 0 : i32
        %623 = tpu.memref_slice %arg3[%489, %c0_i32_361] : memref<96x128xf32, #tpu.memory_space<any>> -> memref<1x128xf32, #tpu.memory_space<any>>
        %624 = tpu.memref_squeeze %623 : memref<1x128xf32, #tpu.memory_space<any>> -> memref<128xf32, #tpu.memory_space<any>>
        %c0_i32_362 = arith.constant 0 : i32
        %625 = tpu.memref_slice %arg10[%455, %c9_i32_360, %c0_i32_362] : memref<3x16x128xf32, #tpu.memory_space<vmem>> -> memref<1x1x128xf32, #tpu.memory_space<vmem>>
        %626 = tpu.memref_squeeze %625 : memref<1x1x128xf32, #tpu.memory_space<vmem>> -> memref<128xf32, #tpu.memory_space<vmem>>
        %627 = tpu.memref_slice %arg11[%455] : memref<3x!tpu.dma_semaphore, #tpu.memory_space<semaphore_mem>> -> memref<1x!tpu.dma_semaphore, #tpu.memory_space<semaphore_mem>>
        %628 = tpu.memref_squeeze %627 : memref<1x!tpu.dma_semaphore, #tpu.memory_space<semaphore_mem>> -> memref<!tpu.dma_semaphore, #tpu.memory_space<semaphore_mem>>
        tpu.enqueue_dma source(%624 : memref<128xf32, #tpu.memory_space<any>>) target(%626 : memref<128xf32, #tpu.memory_space<vmem>>) target_semaphore(%628 : memref<!tpu.dma_semaphore, #tpu.memory_space<semaphore_mem>>)
        %c10_i32_363 = arith.constant 10 : i32
        %c0_i32_364 = arith.constant 0 : i32
        %629 = tpu.memref_slice %arg3[%492, %c0_i32_364] : memref<96x128xf32, #tpu.memory_space<any>> -> memref<1x128xf32, #tpu.memory_space<any>>
        %630 = tpu.memref_squeeze %629 : memref<1x128xf32, #tpu.memory_space<any>> -> memref<128xf32, #tpu.memory_space<any>>
        %c0_i32_365 = arith.constant 0 : i32
        %631 = tpu.memref_slice %arg10[%455, %c10_i32_363, %c0_i32_365] : memref<3x16x128xf32, #tpu.memory_space<vmem>> -> memref<1x1x128xf32, #tpu.memory_space<vmem>>
        %632 = tpu.memref_squeeze %631 : memref<1x1x128xf32, #tpu.memory_space<vmem>> -> memref<128xf32, #tpu.memory_space<vmem>>
        %633 = tpu.memref_slice %arg11[%455] : memref<3x!tpu.dma_semaphore, #tpu.memory_space<semaphore_mem>> -> memref<1x!tpu.dma_semaphore, #tpu.memory_space<semaphore_mem>>
        %634 = tpu.memref_squeeze %633 : memref<1x!tpu.dma_semaphore, #tpu.memory_space<semaphore_mem>> -> memref<!tpu.dma_semaphore, #tpu.memory_space<semaphore_mem>>
        tpu.enqueue_dma source(%630 : memref<128xf32, #tpu.memory_space<any>>) target(%632 : memref<128xf32, #tpu.memory_space<vmem>>) target_semaphore(%634 : memref<!tpu.dma_semaphore, #tpu.memory_space<semaphore_mem>>)
        %c11_i32_366 = arith.constant 11 : i32
        %c0_i32_367 = arith.constant 0 : i32
        %635 = tpu.memref_slice %arg3[%495, %c0_i32_367] : memref<96x128xf32, #tpu.memory_space<any>> -> memref<1x128xf32, #tpu.memory_space<any>>
        %636 = tpu.memref_squeeze %635 : memref<1x128xf32, #tpu.memory_space<any>> -> memref<128xf32, #tpu.memory_space<any>>
        %c0_i32_368 = arith.constant 0 : i32
        %637 = tpu.memref_slice %arg10[%455, %c11_i32_366, %c0_i32_368] : memref<3x16x128xf32, #tpu.memory_space<vmem>> -> memref<1x1x128xf32, #tpu.memory_space<vmem>>
        %638 = tpu.memref_squeeze %637 : memref<1x1x128xf32, #tpu.memory_space<vmem>> -> memref<128xf32, #tpu.memory_space<vmem>>
        %639 = tpu.memref_slice %arg11[%455] : memref<3x!tpu.dma_semaphore, #tpu.memory_space<semaphore_mem>> -> memref<1x!tpu.dma_semaphore, #tpu.memory_space<semaphore_mem>>
        %640 = tpu.memref_squeeze %639 : memref<1x!tpu.dma_semaphore, #tpu.memory_space<semaphore_mem>> -> memref<!tpu.dma_semaphore, #tpu.memory_space<semaphore_mem>>
        tpu.enqueue_dma source(%636 : memref<128xf32, #tpu.memory_space<any>>) target(%638 : memref<128xf32, #tpu.memory_space<vmem>>) target_semaphore(%640 : memref<!tpu.dma_semaphore, #tpu.memory_space<semaphore_mem>>)
        %c12_i32_369 = arith.constant 12 : i32
        %c0_i32_370 = arith.constant 0 : i32
        %641 = tpu.memref_slice %arg3[%498, %c0_i32_370] : memref<96x128xf32, #tpu.memory_space<any>> -> memref<1x128xf32, #tpu.memory_space<any>>
        %642 = tpu.memref_squeeze %641 : memref<1x128xf32, #tpu.memory_space<any>> -> memref<128xf32, #tpu.memory_space<any>>
        %c0_i32_371 = arith.constant 0 : i32
        %643 = tpu.memref_slice %arg10[%455, %c12_i32_369, %c0_i32_371] : memref<3x16x128xf32, #tpu.memory_space<vmem>> -> memref<1x1x128xf32, #tpu.memory_space<vmem>>
        %644 = tpu.memref_squeeze %643 : memref<1x1x128xf32, #tpu.memory_space<vmem>> -> memref<128xf32, #tpu.memory_space<vmem>>
        %645 = tpu.memref_slice %arg11[%455] : memref<3x!tpu.dma_semaphore, #tpu.memory_space<semaphore_mem>> -> memref<1x!tpu.dma_semaphore, #tpu.memory_space<semaphore_mem>>
        %646 = tpu.memref_squeeze %645 : memref<1x!tpu.dma_semaphore, #tpu.memory_space<semaphore_mem>> -> memref<!tpu.dma_semaphore, #tpu.memory_space<semaphore_mem>>
        tpu.enqueue_dma source(%642 : memref<128xf32, #tpu.memory_space<any>>) target(%644 : memref<128xf32, #tpu.memory_space<vmem>>) target_semaphore(%646 : memref<!tpu.dma_semaphore, #tpu.memory_space<semaphore_mem>>)
        %c13_i32_372 = arith.constant 13 : i32
        %c0_i32_373 = arith.constant 0 : i32
        %647 = tpu.memref_slice %arg3[%501, %c0_i32_373] : memref<96x128xf32, #tpu.memory_space<any>> -> memref<1x128xf32, #tpu.memory_space<any>>
        %648 = tpu.memref_squeeze %647 : memref<1x128xf32, #tpu.memory_space<any>> -> memref<128xf32, #tpu.memory_space<any>>
        %c0_i32_374 = arith.constant 0 : i32
        %649 = tpu.memref_slice %arg10[%455, %c13_i32_372, %c0_i32_374] : memref<3x16x128xf32, #tpu.memory_space<vmem>> -> memref<1x1x128xf32, #tpu.memory_space<vmem>>
        %650 = tpu.memref_squeeze %649 : memref<1x1x128xf32, #tpu.memory_space<vmem>> -> memref<128xf32, #tpu.memory_space<vmem>>
        %651 = tpu.memref_slice %arg11[%455] : memref<3x!tpu.dma_semaphore, #tpu.memory_space<semaphore_mem>> -> memref<1x!tpu.dma_semaphore, #tpu.memory_space<semaphore_mem>>
        %652 = tpu.memref_squeeze %651 : memref<1x!tpu.dma_semaphore, #tpu.memory_space<semaphore_mem>> -> memref<!tpu.dma_semaphore, #tpu.memory_space<semaphore_mem>>
        tpu.enqueue_dma source(%648 : memref<128xf32, #tpu.memory_space<any>>) target(%650 : memref<128xf32, #tpu.memory_space<vmem>>) target_semaphore(%652 : memref<!tpu.dma_semaphore, #tpu.memory_space<semaphore_mem>>)
        %c14_i32_375 = arith.constant 14 : i32
        %c0_i32_376 = arith.constant 0 : i32
        %653 = tpu.memref_slice %arg3[%504, %c0_i32_376] : memref<96x128xf32, #tpu.memory_space<any>> -> memref<1x128xf32, #tpu.memory_space<any>>
        %654 = tpu.memref_squeeze %653 : memref<1x128xf32, #tpu.memory_space<any>> -> memref<128xf32, #tpu.memory_space<any>>
        %c0_i32_377 = arith.constant 0 : i32
        %655 = tpu.memref_slice %arg10[%455, %c14_i32_375, %c0_i32_377] : memref<3x16x128xf32, #tpu.memory_space<vmem>> -> memref<1x1x128xf32, #tpu.memory_space<vmem>>
        %656 = tpu.memref_squeeze %655 : memref<1x1x128xf32, #tpu.memory_space<vmem>> -> memref<128xf32, #tpu.memory_space<vmem>>
        %657 = tpu.memref_slice %arg11[%455] : memref<3x!tpu.dma_semaphore, #tpu.memory_space<semaphore_mem>> -> memref<1x!tpu.dma_semaphore, #tpu.memory_space<semaphore_mem>>
        %658 = tpu.memref_squeeze %657 : memref<1x!tpu.dma_semaphore, #tpu.memory_space<semaphore_mem>> -> memref<!tpu.dma_semaphore, #tpu.memory_space<semaphore_mem>>
        tpu.enqueue_dma source(%654 : memref<128xf32, #tpu.memory_space<any>>) target(%656 : memref<128xf32, #tpu.memory_space<vmem>>) target_semaphore(%658 : memref<!tpu.dma_semaphore, #tpu.memory_space<semaphore_mem>>)
        %c15_i32_378 = arith.constant 15 : i32
        %c0_i32_379 = arith.constant 0 : i32
        %659 = tpu.memref_slice %arg3[%507, %c0_i32_379] : memref<96x128xf32, #tpu.memory_space<any>> -> memref<1x128xf32, #tpu.memory_space<any>>
        %660 = tpu.memref_squeeze %659 : memref<1x128xf32, #tpu.memory_space<any>> -> memref<128xf32, #tpu.memory_space<any>>
        %c0_i32_380 = arith.constant 0 : i32
        %661 = tpu.memref_slice %arg10[%455, %c15_i32_378, %c0_i32_380] : memref<3x16x128xf32, #tpu.memory_space<vmem>> -> memref<1x1x128xf32, #tpu.memory_space<vmem>>
        %662 = tpu.memref_squeeze %661 : memref<1x1x128xf32, #tpu.memory_space<vmem>> -> memref<128xf32, #tpu.memory_space<vmem>>
        %663 = tpu.memref_slice %arg11[%455] : memref<3x!tpu.dma_semaphore, #tpu.memory_space<semaphore_mem>> -> memref<1x!tpu.dma_semaphore, #tpu.memory_space<semaphore_mem>>
        %664 = tpu.memref_squeeze %663 : memref<1x!tpu.dma_semaphore, #tpu.memory_space<semaphore_mem>> -> memref<!tpu.dma_semaphore, #tpu.memory_space<semaphore_mem>>
        tpu.enqueue_dma source(%660 : memref<128xf32, #tpu.memory_space<any>>) target(%662 : memref<128xf32, #tpu.memory_space<vmem>>) target_semaphore(%664 : memref<!tpu.dma_semaphore, #tpu.memory_space<semaphore_mem>>)
      } else {
      }
      %c16_i32_321 = arith.constant 16 : i32
      %520 = arith.muli %445, %c16_i32_321 : i32
      %521 = tpu.assume_multiple %520, 16 : i32
      %c16_i32_322 = arith.constant 16 : i32
      %522 = arith.muli %445, %c16_i32_322 : i32
      %523 = arith.addi %3, %522 : i32
      %524 = tpu.assume_multiple %523, 16 : i32
      %c0_323 = arith.constant 0 : index
      %525 = arith.index_cast %521 : i32 to index
      %c0_324 = arith.constant 0 : index
      %526 = vector.load %arg6[%c0_323, %525, %c0_324] : memref<1x64x1xi32, #tpu.memory_space<vmem>>, vector<1x16x1xi32>
      %527 = vector.shape_cast %526 : vector<1x16x1xi32> to vector<16x1xi32>
      %c0_i32_325 = arith.constant 0 : i32
      %528 = vector.broadcast %c0_i32_325 : i32 to vector<16x1xi32>
      %529 = arith.cmpi eq, %527, %528 : vector<16x1xi32>
      %530 = vector.shape_cast %529 : vector<16x1xi1> to vector<16x1xi1>
      %531 = vector.broadcast %530 : vector<16x1xi1> to vector<16x128xi1>
      %532 = vector.shape_cast %441 : vector<1x128xf32> to vector<1x128xf32>
      %533 = vector.broadcast %532 : vector<1x128xf32> to vector<16x128xf32>
      %534 = vector.shape_cast %442 : vector<1x128xf32> to vector<1x128xf32>
      %535 = vector.broadcast %534 : vector<1x128xf32> to vector<16x128xf32>
      %536 = arith.select %531, %533, %535 : vector<16x128xi1>, vector<16x128xf32>
      %537 = arith.index_cast %524 : i32 to index
      %c0_326 = arith.constant 0 : index
      %538 = vector.load %arg4[%537, %c0_326] : memref<128x128xf32, #tpu.memory_space<vmem>>, vector<16x128xf32>
      %539 = arith.addf %515, %538 : vector<16x128xf32>
      %540 = arith.addf %539, %536 : vector<16x128xf32>
      %cst_327 = arith.constant dense<0.000000e+00> : vector<16xf32>
      %541 = vector.multi_reduction <add>, %540, %cst_327 [1] : vector<16x128xf32> to vector<16xf32>
      %542 = vector.shape_cast %541 : vector<16xf32> to vector<16x1xf32>
      %543 = arith.mulf %540, %540 : vector<16x128xf32>
      %cst_328 = arith.constant dense<0.000000e+00> : vector<16xf32>
      %544 = vector.multi_reduction <add>, %543, %cst_328 [1] : vector<16x128xf32> to vector<16xf32>
      %545 = vector.shape_cast %544 : vector<16xf32> to vector<16x1xf32>
      %546 = vector.broadcast %cst : f32 to vector<16x1xf32>
      %547 = arith.mulf %542, %546 : vector<16x1xf32>
      %548 = vector.broadcast %cst : f32 to vector<16x1xf32>
      %549 = arith.mulf %545, %548 : vector<16x1xf32>
      %550 = arith.mulf %547, %547 : vector<16x1xf32>
      %551 = arith.subf %549, %550 : vector<16x1xf32>
      %cst_329 = arith.constant 0.000000e+00 : f32
      %552 = vector.broadcast %cst_329 : f32 to vector<16x1xf32>
      %553 = arith.maximumf %551, %552 : vector<16x1xf32>
      %554 = vector.broadcast %547 : vector<16x1xf32> to vector<16x128xf32>
      %555 = arith.subf %540, %554 : vector<16x128xf32>
      %cst_330 = arith.constant 9.99999996E-13 : f32
      %556 = vector.broadcast %cst_330 : f32 to vector<16x1xf32>
      %557 = arith.addf %553, %556 : vector<16x1xf32>
      %558 = math.rsqrt %557 : vector<16x1xf32>
      %559 = vector.broadcast %558 : vector<16x1xf32> to vector<16x128xf32>
      %560 = arith.mulf %555, %559 : vector<16x128xf32>
      %561 = vector.broadcast %439 : vector<1x128xf32> to vector<16x128xf32>
      %562 = arith.mulf %560, %561 : vector<16x128xf32>
      %563 = vector.broadcast %440 : vector<1x128xf32> to vector<16x128xf32>
      %564 = arith.addf %562, %563 : vector<16x128xf32>
      %c0_331 = arith.constant 0 : index
      %565 = arith.index_cast %521 : i32 to index
      %c0_332 = arith.constant 0 : index
      %566 = vector.load %arg9[%c0_331, %565, %c0_332] : memref<1x64x128xf32, #tpu.memory_space<vmem>>, vector<1x16x128xf32>
      %567 = vector.shape_cast %566 : vector<1x16x128xf32> to vector<16x128xf32>
      %568 = vector.shape_cast %564 : vector<16x128xf32> to vector<1x16x128xf32>
      tpu.vector_store %arg9[%c0_331, %565, %c0_332], %568 {strides = array<i32>} : memref<1x64x128xf32, #tpu.memory_space<vmem>>, vector<1x16x128xf32>,
    }
    %c4_i32_284 = arith.constant 4 : i32
    return
  }
  func.func @transform_1(%arg0: i32, %arg1: i32, %arg2: memref<128xi32, #tpu.memory_space<smem>>) -> (i32, i32) {
    %c0_i32 = arith.constant 0 : i32
    %c0_i32_0 = arith.constant 0 : i32
    %c0_i32_1 = arith.constant 0 : i32
    return %c0_i32, %c0_i32_0 : i32, i32
  }
  func.func @transform_2(%arg0: i32, %arg1: i32, %arg2: memref<128xi32, #tpu.memory_space<smem>>) -> (i32, i32) {
    %c0_i32 = arith.constant 0 : i32
    %c0_i32_0 = arith.constant 0 : i32
    %c0_i32_1 = arith.constant 0 : i32
    return %c0_i32, %c0_i32_0 : i32, i32
  }
  func.func @transform_3(%arg0: i32, %arg1: i32, %arg2: memref<128xi32, #tpu.memory_space<smem>>) -> (i32, i32, i32) {
    %c0_i32 = arith.constant 0 : i32
    %c0_i32_0 = arith.constant 0 : i32
    return %arg0, %arg1, %c0_i32 : i32, i32, i32
  }
  func.func @transform_4(%arg0: i32, %arg1: i32, %arg2: memref<128xi32, #tpu.memory_space<smem>>) -> (i32, i32) {
    %c0_i32 = arith.constant 0 : i32
    %c0_i32_0 = arith.constant 0 : i32
    %c0_i32_1 = arith.constant 0 : i32
    return %c0_i32, %c0_i32_0 : i32, i32
  }
  func.func @transform_5(%arg0: i32, %arg1: i32, %arg2: memref<128xi32, #tpu.memory_space<smem>>) -> (i32, i32) {
    %c0_i32 = arith.constant 0 : i32
    %c0_i32_0 = arith.constant 0 : i32
    %c0_i32_1 = arith.constant 0 : i32
    return %c0_i32, %c0_i32_0 : i32, i32
  }
  func.func @transform_6(%arg0: i32, %arg1: i32, %arg2: memref<128xi32, #tpu.memory_space<smem>>) -> (i32, i32, i32) {
    %c0_i32 = arith.constant 0 : i32
    %c0_i32_0 = arith.constant 0 : i32
    return %arg0, %arg1, %c0_i32 : i32, i32, i32
  }
}

</mosaic_0001>

<llo_original>
// kernel: tpu_custom_call.1
$region0: #{tpu_custom_call.1}
  #allocation0 [shape = 'u32[]', space=smem, size = 0x4, offset = 0x4, fixed_abs, tag = 'smem constant byte address 0x4 - core index']
  #allocation1 [shape = 'u32[72,128]{1,0:T(1,128)}', space=vmem, size = 0x9000, scoped, tag = 'internal scratch']
  #allocation2 [shape = 'f32[3,16,128]{2,1,0:T(8,128)}', space=vmem, size = 0x6000, scoped, tag = 'scratch operand']
  #allocation3 [shape = 's32[3]{0}', space=sflag, size = 0xc, scoped, tag = 'scratch operand']
  #allocation4 [shape = 's32[1]{0}', space=sflag, size = 0x4, scoped, tag = 'scoped memory for tpu_custom_call.1']
  #allocation5 [shape = 'u8[512]{0}', space=smem, size = 0x200, scoped, tag = 'prefetched SMEM operand 0']
  #allocation10 [shape = 's32[]', space=sflag, size = 0x4, offset = 0, fixed_abs, tag = 'sflag constant byte address 0x0 - dummy sync flag']
  #allocation11 [shape = 's32[]', space=sflag, size = 0x4, offset = 0, fixed_abs, tag = 'sflag constant byte address 0x0 - dummy sync flag']
  #allocation12 [shape = 'u32[]', space=smem, size = 0x4, offset = 0x44, fixed_abs, tag = 'smem constant byte address 0x44 - assertion arg 0']
  #allocation13 [shape = 'u32[]', space=smem, size = 0x4, offset = 0x48, fixed_abs, tag = 'smem constant byte address 0x48 - assertion arg 1']
  #allocation14 [shape = 's32[]', space=sflag, size = 0x4, offset = 0, fixed_abs, tag = 'sflag constant byte address 0x0 - dummy sync flag']
  #allocation15 [shape = 's32[]', space=sflag, size = 0x4, offset = 0, fixed_abs, tag = 'sflag constant byte address 0x0 - dummy sync flag']
  #allocation16 [shape = 's32[]', space=sflag, size = 0x4, offset = 0, fixed_abs, tag = 'sflag constant byte address 0x0 - dummy sync flag']
  #allocation17 [shape = 's32[]', space=sflag, size = 0x4, offset = 0, fixed_abs, tag = 'sflag constant byte address 0x0 - dummy sync flag']
  #allocation18 [shape = 's32[]', space=sflag, size = 0x4, offset = 0, fixed_abs, tag = 'sflag constant byte address 0x0 - dummy sync flag']
  #allocation19 [shape = 's32[]', space=sflag, size = 0x4, offset = 0, fixed_abs, tag = 'sflag constant byte address 0x0 - dummy sync flag']
  #allocation20 [shape = 's32[]', space=sflag, size = 0x4, offset = 0, fixed_abs, tag = 'sflag constant byte address 0x0 - dummy sync flag']
  #allocation21 [shape = 's32[]', space=sflag, size = 0x4, offset = 0, fixed_abs, tag = 'sflag constant byte address 0x0 - dummy sync flag']
  #allocation22 [shape = 's32[]', space=sflag, size = 0x4, offset = 0, fixed_abs, tag = 'sflag constant byte address 0x0 - dummy sync flag']
  #allocation23 [shape = 's32[]', space=sflag, size = 0x4, offset = 0, fixed_abs, tag = 'sflag constant byte address 0x0 - dummy sync flag']
  #allocation24 [shape = 's32[]', space=sflag, size = 0x4, offset = 0, fixed_abs, tag = 'sflag constant byte address 0x0 - dummy sync flag']
  #allocation25 [shape = 's32[]', space=sflag, size = 0x4, offset = 0, fixed_abs, tag = 'sflag constant byte address 0x0 - dummy sync flag']
  #allocation26 [shape = 's32[]', space=sflag, size = 0x4, offset = 0, fixed_abs, tag = 'sflag constant byte address 0x0 - dummy sync flag']
  #allocation27 [shape = 's32[]', space=sflag, size = 0x4, offset = 0, fixed_abs, tag = 'sflag constant byte address 0x0 - dummy sync flag']
  #allocation28 [shape = 's32[]', space=sflag, size = 0x4, offset = 0, fixed_abs, tag = 'sflag constant byte address 0x0 - dummy sync flag']
  #allocation29 [shape = 's32[]', space=sflag, size = 0x4, offset = 0, fixed_abs, tag = 'sflag constant byte address 0x0 - dummy sync flag']
  #allocation30 [shape = 's32[]', space=sflag, size = 0x4, offset = 0, fixed_abs, tag = 'sflag constant byte address 0x0 - dummy sync flag']
  #allocation31 [shape = 's32[]', space=sflag, size = 0x4, offset = 0, fixed_abs, tag = 'sflag constant byte address 0x0 - dummy sync flag']
  #allocation32 [shape = 's32[]', space=sflag, size = 0x4, offset = 0, fixed_abs, tag = 'sflag constant byte address 0x0 - dummy sync flag']
  #allocation33 [shape = 's32[]', space=sflag, size = 0x4, offset = 0, fixed_abs, tag = 'sflag constant byte address 0x0 - dummy sync flag']
  #allocation34 [shape = 's32[]', space=sflag, size = 0x4, offset = 0, fixed_abs, tag = 'sflag constant byte address 0x0 - dummy sync flag']
  #allocation35 [shape = 's32[]', space=sflag, size = 0x4, offset = 0, fixed_abs, tag = 'sflag constant byte address 0x0 - dummy sync flag']
  #allocation36 [shape = 's32[]', space=sflag, size = 0x4, offset = 0, fixed_abs, tag = 'sflag constant byte address 0x0 - dummy sync flag']
  #allocation37 [shape = 's32[]', space=sflag, size = 0x4, offset = 0, fixed_abs, tag = 'sflag constant byte address 0x0 - dummy sync flag']
  #allocation38 [shape = 's32[]', space=sflag, size = 0x4, offset = 0, fixed_abs, tag = 'sflag constant byte address 0x0 - dummy sync flag']
  #allocation39 [shape = 's32[]', space=sflag, size = 0x4, offset = 0, fixed_abs, tag = 'sflag constant byte address 0x0 - dummy sync flag']
  #allocation40 [shape = 's32[]', space=sflag, size = 0x4, offset = 0, fixed_abs, tag = 'sflag constant byte address 0x0 - dummy sync flag']
  #allocation41 [shape = 's32[]', space=sflag, size = 0x4, offset = 0, fixed_abs, tag = 'sflag constant byte address 0x0 - dummy sync flag']
  #allocation42 [shape = 's32[]', space=sflag, size = 0x4, offset = 0, fixed_abs, tag = 'sflag constant byte address 0x0 - dummy sync flag']
  #allocation43 [shape = 's32[]', space=sflag, size = 0x4, offset = 0, fixed_abs, tag = 'sflag constant byte address 0x0 - dummy sync flag']
  #allocation44 [shape = 's32[]', space=sflag, size = 0x4, offset = 0, fixed_abs, tag = 'sflag constant byte address 0x0 - dummy sync flag']
  #allocation45 [shape = 's32[]', space=sflag, size = 0x4, offset = 0, fixed_abs, tag = 'sflag constant byte address 0x0 - dummy sync flag']
  #allocation46 [shape = 's32[]', space=sflag, size = 0x4, offset = 0, fixed_abs, tag = 'sflag constant byte address 0x0 - dummy sync flag']
  #allocation47 [shape = 's32[]', space=sflag, size = 0x4, offset = 0, fixed_abs, tag = 'sflag constant byte address 0x0 - dummy sync flag']
  #allocation48 [shape = 's32[]', space=sflag, size = 0x4, offset = 0, fixed_abs, tag = 'sflag constant byte address 0x0 - dummy sync flag']
  #allocation49 [shape = 's32[]', space=sflag, size = 0x4, offset = 0, fixed_abs, tag = 'sflag constant byte address 0x0 - dummy sync flag']
  #allocation50 [shape = 's32[]', space=sflag, size = 0x4, offset = 0, fixed_abs, tag = 'sflag constant byte address 0x0 - dummy sync flag']
  #allocation51 [shape = 's32[]', space=sflag, size = 0x4, offset = 0, fixed_abs, tag = 'sflag constant byte address 0x0 - dummy sync flag']
  #allocation52 [shape = 's32[]', space=sflag, size = 0x4, offset = 0, fixed_abs, tag = 'sflag constant byte address 0x0 - dummy sync flag']
  #allocation53 [shape = 's32[]', space=sflag, size = 0x4, offset = 0, fixed_abs, tag = 'sflag constant byte address 0x0 - dummy sync flag']
  #allocation54 [shape = 's32[]', space=sflag, size = 0x4, offset = 0, fixed_abs, tag = 'sflag constant byte address 0x0 - dummy sync flag']
  #allocation55 [shape = 's32[]', space=sflag, size = 0x4, offset = 0, fixed_abs, tag = 'sflag constant byte address 0x0 - dummy sync flag']
  #allocation56 [shape = 's32[]', space=sflag, size = 0x4, offset = 0, fixed_abs, tag = 'sflag constant byte address 0x0 - dummy sync flag']
  #allocation57 [shape = 's32[]', space=sflag, size = 0x4, offset = 0, fixed_abs, tag = 'sflag constant byte address 0x0 - dummy sync flag']
  #allocation58 [shape = 's32[]', space=sflag, size = 0x4, offset = 0, fixed_abs, tag = 'sflag constant byte address 0x0 - dummy sync flag']
  #allocation59 [shape = 's32[]', space=sflag, size = 0x4, offset = 0, fixed_abs, tag = 'sflag constant byte address 0x0 - dummy sync flag']
  #allocation60 [shape = 's32[]', space=sflag, size = 0x4, offset = 0, fixed_abs, tag = 'sflag constant byte address 0x0 - dummy sync flag']
  #allocation61 [shape = 's32[]', space=sflag, size = 0x4, offset = 0, fixed_abs, tag = 'sflag constant byte address 0x0 - dummy sync flag']
  #allocation62 [shape = 's32[]', space=sflag, size = 0x4, offset = 0, fixed_abs, tag = 'sflag constant byte address 0x0 - dummy sync flag']
  #allocation63 [shape = 's32[]', space=sflag, size = 0x4, offset = 0, fixed_abs, tag = 'sflag constant byte address 0x0 - dummy sync flag']
  #allocation64 [shape = 's32[]', space=sflag, size = 0x4, offset = 0, fixed_abs, tag = 'sflag constant byte address 0x0 - dummy sync flag']
  #allocation65 [shape = 's32[]', space=sflag, size = 0x4, offset = 0, fixed_abs, tag = 'sflag constant byte address 0x0 - dummy sync flag']
  #allocation66 [shape = 's32[]', space=sflag, size = 0x4, offset = 0, fixed_abs, tag = 'sflag constant byte address 0x0 - dummy sync flag']
  #allocation67 [shape = 's32[]', space=sflag, size = 0x4, offset = 0, fixed_abs, tag = 'sflag constant byte address 0x0 - dummy sync flag']
  #allocation68 [shape = 's32[]', space=sflag, size = 0x4, offset = 0, fixed_abs, tag = 'sflag constant byte address 0x0 - dummy sync flag']
  #allocation69 [shape = 's32[]', space=sflag, size = 0x4, offset = 0, fixed_abs, tag = 'sflag constant byte address 0x0 - dummy sync flag']
  #allocation70 [shape = 's32[]', space=sflag, size = 0x4, offset = 0, fixed_abs, tag = 'sflag constant byte address 0x0 - dummy sync flag']
  #allocation71 [shape = 's32[]', space=sflag, size = 0x4, offset = 0, fixed_abs, tag = 'sflag constant byte address 0x0 - dummy sync flag']
  #allocation72 [shape = 's32[]', space=sflag, size = 0x4, offset = 0, fixed_abs, tag = 'sflag constant byte address 0x0 - dummy sync flag']
  #allocation73 [shape = 's32[]', space=sflag, size = 0x4, offset = 0, fixed_abs, tag = 'sflag constant byte address 0x0 - dummy sync flag']
  #allocation74 [shape = 's32[]', space=sflag, size = 0x4, offset = 0, fixed_abs, tag = 'sflag constant byte address 0x0 - dummy sync flag']
  #allocation75 [shape = 's32[]', space=sflag, size = 0x4, offset = 0, fixed_abs, tag = 'sflag constant byte address 0x0 - dummy sync flag']
  #allocation76 [shape = 's32[]', space=sflag, size = 0x4, offset = 0, fixed_abs, tag = 'sflag constant byte address 0x0 - dummy sync flag']
  #allocation77 [shape = 's32[]', space=sflag, size = 0x4, offset = 0, fixed_abs, tag = 'sflag constant byte address 0x0 - dummy sync flag']
  #allocation78 [shape = 's32[]', space=sflag, size = 0x4, offset = 0, fixed_abs, tag = 'sflag constant byte address 0x0 - dummy sync flag']
  #allocation79 [shape = 's32[]', space=sflag, size = 0x4, offset = 0, fixed_abs, tag = 'sflag constant byte address 0x0 - dummy sync flag']
  #allocation80 [shape = 's32[]', space=sflag, size = 0x4, offset = 0, fixed_abs, tag = 'sflag constant byte address 0x0 - dummy sync flag']
  #allocation81 [shape = 's32[]', space=sflag, size = 0x4, offset = 0, fixed_abs, tag = 'sflag constant byte address 0x0 - dummy sync flag']
  #allocation82 [shape = 's32[]', space=sflag, size = 0x4, offset = 0, fixed_abs, tag = 'sflag constant byte address 0x0 - dummy sync flag']
  #allocation83 [shape = 's32[]', space=sflag, size = 0x4, offset = 0, fixed_abs, tag = 'sflag constant byte address 0x0 - dummy sync flag']
  #allocation84 [shape = 's32[]', space=sflag, size = 0x4, offset = 0, fixed_abs, tag = 'sflag constant byte address 0x0 - dummy sync flag']
  #allocation85 [shape = 's32[]', space=sflag, size = 0x4, offset = 0, fixed_abs, tag = 'sflag constant byte address 0x0 - dummy sync flag']
  #allocation86 [shape = 's32[]', space=sflag, size = 0x4, offset = 0, fixed_abs, tag = 'sflag constant byte address 0x0 - dummy sync flag']
  #allocation87 [shape = 's32[]', space=sflag, size = 0x4, offset = 0, fixed_abs, tag = 'sflag constant byte address 0x0 - dummy sync flag']
  #allocation88 [shape = 's32[]', space=sflag, size = 0x4, offset = 0, fixed_abs, tag = 'sflag constant byte address 0x0 - dummy sync flag']
  #allocation89 [shape = 's32[]', space=sflag, size = 0x4, offset = 0, fixed_abs, tag = 'sflag constant byte address 0x0 - dummy sync flag']
  #allocation90 [shape = 's32[]', space=sflag, size = 0x4, offset = 0, fixed_abs, tag = 'sflag constant byte address 0x0 - dummy sync flag']
  #allocation91 [shape = 's32[]', space=sflag, size = 0x4, offset = 0, fixed_abs, tag = 'sflag constant byte address 0x0 - dummy sync flag']
  #allocation92 [shape = 's32[]', space=sflag, size = 0x4, offset = 0, fixed_abs, tag = 'sflag constant byte address 0x0 - dummy sync flag']
  #allocation93 [shape = 's32[]', space=sflag, size = 0x4, offset = 0, fixed_abs, tag = 'sflag constant byte address 0x0 - dummy sync flag']
  #allocation94 [shape = 's32[]', space=sflag, size = 0x4, offset = 0, fixed_abs, tag = 'sflag constant byte address 0x0 - dummy sync flag']
  #allocation95 [shape = 's32[]', space=sflag, size = 0x4, offset = 0, fixed_abs, tag = 'sflag constant byte address 0x0 - dummy sync flag']
  #allocation96 [shape = 's32[]', space=sflag, size = 0x4, offset = 0, fixed_abs, tag = 'sflag constant byte address 0x0 - dummy sync flag']
  #allocation97 [shape = 's32[]', space=sflag, size = 0x4, offset = 0, fixed_abs, tag = 'sflag constant byte address 0x0 - dummy sync flag']
  #allocation98 [shape = 's32[]', space=sflag, size = 0x4, offset = 0, fixed_abs, tag = 'sflag constant byte address 0x0 - dummy sync flag']
  #allocation99 [shape = 's32[]', space=sflag, size = 0x4, offset = 0, fixed_abs, tag = 'sflag constant byte address 0x0 - dummy sync flag']
  #allocation100 [shape = 's32[]', space=sflag, size = 0x4, offset = 0, fixed_abs, tag = 'sflag constant byte address 0x0 - dummy sync flag']
  #allocation101 [shape = 's32[]', space=sflag, size = 0x4, offset = 0, fixed_abs, tag = 'sflag constant byte address 0x0 - dummy sync flag']
  #allocation102 [shape = 's32[]', space=sflag, size = 0x4, offset = 0, fixed_abs, tag = 'sflag constant byte address 0x0 - dummy sync flag']
  #allocation103 [shape = 's32[]', space=sflag, size = 0x4, offset = 0, fixed_abs, tag = 'sflag constant byte address 0x0 - dummy sync flag']
  #allocation104 [shape = 's32[]', space=sflag, size = 0x4, offset = 0, fixed_abs, tag = 'sflag constant byte address 0x0 - dummy sync flag']
  #allocation105 [shape = 's32[]', space=sflag, size = 0x4, offset = 0, fixed_abs, tag = 'sflag constant byte address 0x0 - dummy sync flag']
  #allocation106 [shape = 's32[]', space=sflag, size = 0x4, offset = 0, fixed_abs, tag = 'sflag constant byte address 0x0 - dummy sync flag']
  #allocation107 [shape = 's32[]', space=sflag, size = 0x4, offset = 0, fixed_abs, tag = 'sflag constant byte address 0x0 - dummy sync flag']
  #allocation108 [shape = 's32[]', space=sflag, size = 0x4, offset = 0, fixed_abs, tag = 'sflag constant byte address 0x0 - dummy sync flag']
  #allocation109 [shape = 's32[]', space=sflag, size = 0x4, offset = 0, fixed_abs, tag = 'sflag constant byte address 0x0 - dummy sync flag']
  #allocation110 [shape = 's32[]', space=sflag, size = 0x4, offset = 0, fixed_abs, tag = 'sflag constant byte address 0x0 - dummy sync flag']
  #allocation111 [shape = 's32[]', space=sflag, size = 0x4, offset = 0, fixed_abs, tag = 'sflag constant byte address 0x0 - dummy sync flag']
  #allocation112 [shape = 's32[]', space=sflag, size = 0x4, offset = 0, fixed_abs, tag = 'sflag constant byte address 0x0 - dummy sync flag']
  #allocation113 [shape = 's32[]', space=sflag, size = 0x4, offset = 0, fixed_abs, tag = 'sflag constant byte address 0x0 - dummy sync flag']
  #allocation114 [shape = 's32[]', space=sflag, size = 0x4, offset = 0, fixed_abs, tag = 'sflag constant byte address 0x0 - dummy sync flag']
  #allocation115 [shape = 's32[]', space=sflag, size = 0x4, offset = 0, fixed_abs, tag = 'sflag constant byte address 0x0 - dummy sync flag']
  #allocation116 [shape = 's32[]', space=sflag, size = 0x4, offset = 0, fixed_abs, tag = 'sflag constant byte address 0x0 - dummy sync flag']
  #allocation117 [shape = 's32[]', space=sflag, size = 0x4, offset = 0, fixed_abs, tag = 'sflag constant byte address 0x0 - dummy sync flag']
  #allocation118 [shape = 's32[]', space=sflag, size = 0x4, offset = 0, fixed_abs, tag = 'sflag constant byte address 0x0 - dummy sync flag']
  #allocation119 [shape = 's32[]', space=sflag, size = 0x4, offset = 0, fixed_abs, tag = 'sflag constant byte address 0x0 - dummy sync flag']
  #allocation120 [shape = 's32[]', space=sflag, size = 0x4, offset = 0, fixed_abs, tag = 'sflag constant byte address 0x0 - dummy sync flag']
  #allocation121 [shape = 's32[]', space=sflag, size = 0x4, offset = 0, fixed_abs, tag = 'sflag constant byte address 0x0 - dummy sync flag']
  #allocation122 [shape = 's32[]', space=sflag, size = 0x4, offset = 0, fixed_abs, tag = 'sflag constant byte address 0x0 - dummy sync flag']
  #allocation123 [shape = 's32[]', space=sflag, size = 0x4, offset = 0, fixed_abs, tag = 'sflag constant byte address 0x0 - dummy sync flag']
  #allocation124 [shape = 's32[]', space=sflag, size = 0x4, offset = 0, fixed_abs, tag = 'sflag constant byte address 0x0 - dummy sync flag']
  #allocation125 [shape = 's32[]', space=sflag, size = 0x4, offset = 0, fixed_abs, tag = 'sflag constant byte address 0x0 - dummy sync flag']
  #allocation126 [shape = 's32[]', space=sflag, size = 0x4, offset = 0, fixed_abs, tag = 'sflag constant byte address 0x0 - dummy sync flag']
  #allocation127 [shape = 's32[]', space=sflag, size = 0x4, offset = 0, fixed_abs, tag = 'sflag constant byte address 0x0 - dummy sync flag']
  #allocation128 [shape = 's32[]', space=sflag, size = 0x4, offset = 0, fixed_abs, tag = 'sflag constant byte address 0x0 - dummy sync flag']
  #allocation129 [shape = 's32[]', space=sflag, size = 0x4, offset = 0, fixed_abs, tag = 'sflag constant byte address 0x0 - dummy sync flag']
  #allocation130 [shape = 's32[]', space=sflag, size = 0x4, offset = 0, fixed_abs, tag = 'sflag constant byte address 0x0 - dummy sync flag']
  #allocation131 [shape = 's32[]', space=sflag, size = 0x4, offset = 0, fixed_abs, tag = 'sflag constant byte address 0x0 - dummy sync flag']
  #allocation132 [shape = 's32[]', space=sflag, size = 0x4, offset = 0, fixed_abs, tag = 'sflag constant byte address 0x0 - dummy sync flag']
  #allocation133 [shape = 's32[]', space=sflag, size = 0x4, offset = 0, fixed_abs, tag = 'sflag constant byte address 0x0 - dummy sync flag']
  #allocation134 [shape = 's32[]', space=sflag, size = 0x4, offset = 0, fixed_abs, tag = 'sflag constant byte address 0x0 - dummy sync flag']
  #allocation135 [shape = 's32[]', space=sflag, size = 0x4, offset = 0, fixed_abs, tag = 'sflag constant byte address 0x0 - dummy sync flag']
  #allocation136 [shape = 's32[]', space=sflag, size = 0x4, offset = 0, fixed_abs, tag = 'sflag constant byte address 0x0 - dummy sync flag']
  #allocation137 [shape = 's32[]', space=sflag, size = 0x4, offset = 0, fixed_abs, tag = 'sflag constant byte address 0x0 - dummy sync flag']
  #allocation138 [shape = 's32[]', space=sflag, size = 0x4, offset = 0, fixed_abs, tag = 'sflag constant byte address 0x0 - dummy sync flag']
  #allocation139 [shape = 's32[]', space=sflag, size = 0x4, offset = 0, fixed_abs, tag = 'sflag constant byte address 0x0 - dummy sync flag']
  %s0 = inlined_call_operand.vmem [shape: s32[128], index: 0, kind: input, shape index: {}]
  %s1 = inlined_call_operand.hbm [shape: f32[96,128], index: 1, kind: input, shape index: {}]
  %s2 = inlined_call_operand.vmem [shape: f32[128,128], index: 2, kind: input, shape index: {}]
  %s3 = inlined_call_operand.vmem [shape: f32[2,128], index: 3, kind: input, shape index: {}]
  %s4 = inlined_call_operand.vmem [shape: s32[2,64,1], index: 4, kind: input, shape index: {}]
  %s5 = inlined_call_operand.hbm [shape: f32[1,128], index: 5, kind: input, shape index: {}]
  %s6 = inlined_call_operand.vmem [shape: f32[1,128], index: 6, kind: input, shape index: {}]
  %s7 = inlined_call_operand.hbm [shape: f32[2,64,128], index: 7, kind: output, shape index: {}]
  %s8 = sld [smem:[#allocation0]]
  $region324: #{tpu_custom_call.1} parent=0
    _
  %s10 = ssub.s32 1, %s8
  %s11 = scalar_select 0, %s10, %s8
  %s13 = sshll.u32 %s0, 4
  %s14 = int_to_ptr.vmem [resolvable:$true] %s13
  %16 = dma.vmem_to_smem %s14, 16, [#allocation5], [#allocation4]
  %18 = dma.done [#allocation4], 16
  %19 = sfence
  $region1: #{tpu_custom_call.1} parent=0
    #allocation6 [shape = 'u8[512]{0}', space=vmem, size = 0x400, scoped, tag = 'input window, operand 5, single buffered']
    #allocation7 [shape = 's32[2]{0}', space=sflag, size = 0x8, scoped, tag = 'scoped memory for tpu_custom_call.1']
    #allocation8 [shape = 's32[2]{0}', space=sflag, size = 0x8, scoped, tag = 'scoped memory for tpu_custom_call.1']
    #allocation9 [shape = 'u8[65536]{0}', space=vmem, size = 0x10000, scoped, tag = 'output window, operand 0']
    %20 = vsyncpa [#allocation7], 0
    %21 = vsyncpa [#allocation8], 0
    %s22 = scalar_lea.sflag [#allocation8], 1
    %23 = vsyncpa %s22, 0
    loop: start=0, step=1, limit=4
    $region2: #{tpu_custom_call.1} parent=1 // loop_pre_header
      _
    $region3: #{tpu_custom_call.1} parent=1 // loop_header
      %s25 = sphi 0, %s29
      %p26 = scmp.ge.s32.totalorder %s25, 4
      %s32 = sphi 0, %s44
      %s33 = sphi 0, %s40
      %s34 = sphi 0, %s32
      %s35 = sphi 0, %s33
      %s36 = sphi 0, %s34
      %s37 = sphi 0, %s35
      %s45 = sphi 0, %s45
      %s47 = sphi 0, %s45
      %s48 = sphi 0, %s47
      %s62 = sphi 0, %s48
      %s66 = sphi 0, %s66
      %s68 = sphi 0, %s66
      %s69 = sphi 0, %s68
      %s83 = sphi 0, %s69
      %s91 = sphi 0, %s93
      %s94 = sphi 0, %s91
      %s95 = sphi 0, %s94
      %s111 = sphi 0, %s95
      %s115 = sphi 0, %s115
      %s117 = sphi 0, %s115
      %s118 = sphi 0, %s117
      %s132 = sphi 0, %s118
      %s136 = sphi 0, %s136
      %s138 = sphi 0, %s136
      %s139 = sphi 0, %s138
      %s153 = sphi 0, %s139
      %s161 = sphi 0, %s163
      %s164 = sphi 0, %s161
      %s165 = sphi 0, %s164
      %s181 = sphi 0, %s165
    $region4: #{tpu_custom_call.1} parent=1 // loop_header_branch
      %28 = sbr.rel (%p26) target = $region8
    $region5: #{tpu_custom_call.1} parent=1 // loop_body
      %s30 = ssub.s32 %s25, 1
      %s31 = ssub.s32 %s25, 2
      %s38 = sadd.s32 1, %s33
      %p39 = scmp.ge.s32.totalorder %s38, 1
      %s40 = scalar_select %p39, 0, %s38
      %s41 = sadd.s32 1, %s32
      %s42 = scalar_select %p39, %s41, %s32
      %p43 = scmp.ge.s32.totalorder %s42, 2
      %s44 = scalar_select %p43, 0, %s42
      %s46 = sadd.s32 %s45, 1
      %p49 = scmp.eq.s32.totalorder %s25, 1
      %p50 = scmp.ne.s32.totalorder %s45, %s47
      %p51 = scmp.eq.s32.totalorder %s25, 0
      %p52 = por %p50, %p51
      %p53 = scmp.ne.s32.totalorder %s45, %s47
      %p54 = scmp.eq.s32.totalorder %s30, 1
      %p55 = por %p53, %p54
      %p56 = scmp.ne.s32.totalorder %s47, %s48
      %p57 = scmp.eq.s32.totalorder %s30, 0
      %p58 = por %p56, %p57
      %p59 = scmp.ne.s32.totalorder %s47, %s48
      %p60 = scmp.eq.s32.totalorder %s31, 1
      %p61 = por %p59, %p60
      %p63 = scmp.ne.s32.totalorder %s48, %s62
      %p64 = scmp.eq.s32.totalorder %s31, 0
      %p65 = por %p63, %p64
      %s67 = sadd.s32 %s66, 1
      %p70 = scmp.eq.s32.totalorder %s25, 1
      %p71 = scmp.ne.s32.totalorder %s66, %s68
      %p72 = scmp.eq.s32.totalorder %s25, 0
      %p73 = por %p71, %p72
      %p74 = scmp.ne.s32.totalorder %s66, %s68
      %p75 = scmp.eq.s32.totalorder %s30, 1
      %p76 = por %p74, %p75
      %p77 = scmp.ne.s32.totalorder %s68, %s69
      %p78 = scmp.eq.s32.totalorder %s30, 0
      %p79 = por %p77, %p78
      %p80 = scmp.ne.s32.totalorder %s68, %s69
      %p81 = scmp.eq.s32.totalorder %s31, 1
      %p82 = por %p80, %p81
      %p84 = scmp.ne.s32.totalorder %s69, %s83
      %p85 = scmp.eq.s32.totalorder %s31, 0
      %p86 = por %p84, %p85
      %s87 = ssub.s32 %s32, %s44
      %s88 = ssub.s32 %s33, %s40
      %s89 = sor.u32 %s87, %s88
      %p90 = scmp.eq.s32.totalorder %s89, 0
      %s92 = sadd.s32 %s91, 1
      %s93 = scalar_select %p90, %s91, %s92
      %p96 = pneg %p90
      %p97 = scmp.eq.s32.totalorder %s25, 1
      %p98 = por %p96, %p97
      %p99 = scmp.ne.s32.totalorder %s91, %s94
      %p100 = scmp.eq.s32.totalorder %s25, 0
      %p101 = por %p99, %p100
      %p102 = scmp.ne.s32.totalorder %s91, %s94
      %p103 = scmp.eq.s32.totalorder %s30, 1
      %p104 = por %p102, %p103
      %p105 = scmp.ne.s32.totalorder %s94, %s95
      %p106 = scmp.eq.s32.totalorder %s30, 0
      %p107 = por %p105, %p106
      %p108 = scmp.ne.s32.totalorder %s94, %s95
      %p109 = scmp.eq.s32.totalorder %s31, 1
      %p110 = por %p108, %p109
      %p112 = scmp.ne.s32.totalorder %s95, %s111
      %p113 = scmp.eq.s32.totalorder %s31, 0
      %p114 = por %p112, %p113
      %s116 = sadd.s32 %s115, 1
      %p119 = scmp.eq.s32.totalorder %s25, 1
      %p120 = scmp.ne.s32.totalorder %s115, %s117
      %p121 = scmp.eq.s32.totalorder %s25, 0
      %p122 = por %p120, %p121
      %p123 = scmp.ne.s32.totalorder %s115, %s117
      %p124 = scmp.eq.s32.totalorder %s30, 1
      %p125 = por %p123, %p124
      %p126 = scmp.ne.s32.totalorder %s117, %s118
      %p127 = scmp.eq.s32.totalorder %s30, 0
      %p128 = por %p126, %p127
      %p129 = scmp.ne.s32.totalorder %s117, %s118
      %p130 = scmp.eq.s32.totalorder %s31, 1
      %p131 = por %p129, %p130
      %p133 = scmp.ne.s32.totalorder %s118, %s132
      %p134 = scmp.eq.s32.totalorder %s31, 0
      %p135 = por %p133, %p134
      %s137 = sadd.s32 %s136, 1
      %p140 = scmp.eq.s32.totalorder %s25, 1
      %p141 = scmp.ne.s32.totalorder %s136, %s138
      %p142 = scmp.eq.s32.totalorder %s25, 0
      %p143 = por %p141, %p142
      %p144 = scmp.ne.s32.totalorder %s136, %s138
      %p145 = scmp.eq.s32.totalorder %s30, 1
      %p146 = por %p144, %p145
      %p147 = scmp.ne.s32.totalorder %s138, %s139
      %p148 = scmp.eq.s32.totalorder %s30, 0
      %p149 = por %p147, %p148
      %p150 = scmp.ne.s32.totalorder %s138, %s139
      %p151 = scmp.eq.s32.totalorder %s31, 1
      %p152 = por %p150, %p151
      %p154 = scmp.ne.s32.totalorder %s139, %s153
      %p155 = scmp.eq.s32.totalorder %s31, 0
      %p156 = por %p154, %p155
      %s157 = ssub.s32 %s32, %s44
      %s158 = ssub.s32 %s33, %s40
      %s159 = sor.u32 %s157, %s158
      %p160 = scmp.eq.s32.totalorder %s159, 0
      %s162 = sadd.s32 %s161, 1
      %s163 = scalar_select %p160, %s161, %s162
      %p166 = pneg %p160
      %p167 = scmp.eq.s32.totalorder %s25, 1
      %p168 = por %p166, %p167
      %p169 = scmp.ne.s32.totalorder %s161, %s164
      %p170 = scmp.eq.s32.totalorder %s25, 0
      %p171 = por %p169, %p170
      %p172 = scmp.ne.s32.totalorder %s161, %s164
      %p173 = scmp.eq.s32.totalorder %s30, 1
      %p174 = por %p172, %p173
      %p175 = scmp.ne.s32.totalorder %s164, %s165
      %p176 = scmp.eq.s32.totalorder %s30, 0
      %p177 = por %p175, %p176
      %p178 = scmp.ne.s32.totalorder %s164, %s165
      %p179 = scmp.eq.s32.totalorder %s31, 1
      %p180 = por %p178, %p179
      %p182 = scmp.ne.s32.totalorder %s165, %s181
      %p183 = scmp.eq.s32.totalorder %s31, 0
      %p184 = por %p182, %p183
      %p185 = scmp.le.s32.totalorder 1, %s25
      %p186 = scmp.lt.s32.totalorder %s25, 3
      %p187 = pnand %p185, %p186
      %p188 = pneg %p187
      // Predicated region
      $region9: #{tpu_custom_call.1} parent=5 // pred_check
        _
      $region10: #{tpu_custom_call.1} parent=5 // pred_check_branch
        %190 = sbr.rel (%p187) target = $region12
      $region11: #{tpu_custom_call.1} parent=5 // pred_region
        %s191 = ssub.s32 %s25, 1
        // Predicated region
        $region13: #{tpu_custom_call.1} parent=11 // pred_check
          %p192 = pneg %p58
        $region14: #{tpu_custom_call.1} parent=11 // pred_check_branch
          %194 = sbr.rel (%p192) target = $region16
        $region15: #{tpu_custom_call.1} parent=11 // pred_region
          _
        $region16: #{tpu_custom_call.1} parent=11 // pred_fallthru
          _
        // Predicated region
        $region17: #{tpu_custom_call.1} parent=11 // pred_check
          %p195 = pneg %p79
        $region18: #{tpu_custom_call.1} parent=11 // pred_check_branch
          %197 = sbr.rel (%p195) target = $region20
        $region19: #{tpu_custom_call.1} parent=11 // pred_region
          _
        $region20: #{tpu_custom_call.1} parent=11 // pred_fallthru
          _
        // Predicated region
        $region21: #{tpu_custom_call.1} parent=11 // pred_check
          %p198 = pneg %p128
        $region22: #{tpu_custom_call.1} parent=11 // pred_check_branch
          %200 = sbr.rel (%p198) target = $region24
        $region23: #{tpu_custom_call.1} parent=11 // pred_region
          %202 = vsyncadd [#allocation7], 0
          %s204 = sshll.u32 %s5, 4
          %s205 = int_to_ptr.hbm [resolvable:$true] %s204
          %s206 = sshll.u32 [#allocation6], 4
          %s207 = int_to_ptr.vmem [resolvable:$true] %s206
          %209 = dma.hbm_to_vmem [thread:$0]  %s205, 16, %s207, [#allocation7]
        $region24: #{tpu_custom_call.1} parent=11 // pred_fallthru
          _
        // Predicated region
        $region25: #{tpu_custom_call.1} parent=11 // pred_check
          %p210 = pneg %p149
        $region26: #{tpu_custom_call.1} parent=11 // pred_check_branch
          %212 = sbr.rel (%p210) target = $region28
        $region27: #{tpu_custom_call.1} parent=11 // pred_region
          _
        $region28: #{tpu_custom_call.1} parent=11 // pred_fallthru
          _
      $region12: #{tpu_custom_call.1} parent=5 // pred_fallthru
        _
      %p213 = scmp.lt.s32.totalorder %s25, 2
      // Predicated region
      $region29: #{tpu_custom_call.1} parent=5 // pred_check
        %p214 = pneg %p213
      $region30: #{tpu_custom_call.1} parent=5 // pred_check_branch
        %216 = sbr.rel (%p214) target = $region32
      $region31: #{tpu_custom_call.1} parent=5 // pred_region
        // Predicated region
        $region33: #{tpu_custom_call.1} parent=31 // pred_check
          %p217 = pneg %p101
        $region34: #{tpu_custom_call.1} parent=31 // pred_check_branch
          %219 = sbr.rel (%p217) target = $region36
        $region35: #{tpu_custom_call.1} parent=31 // pred_region
          %s220 = smul.u32 8, %s33
          %p221 = scmp.lt.s32.totalorder %s32, 1
          %s222 = scalar_select %p221, %s32, 1
          %p223 = scmp.lt.s32.totalorder %s220, 7
          %s224 = scalar_select %p223, %s220, 7
          %s225 = smul.addr %s222, 8
          %s226 = sadd.s32 %s224, %s225
          %s227 = smul.addr %s226, 8
          %s228 = scalar_lea.vmem %s4, %s227
          %s229 = smul.u32 8, %s33
        $region36: #{tpu_custom_call.1} parent=31 // pred_fallthru
          _
      $region32: #{tpu_custom_call.1} parent=5 // pred_fallthru
        _
      %p230 = scmp.le.s32.totalorder 1, %s25
      %p231 = scmp.lt.s32.totalorder %s25, 3
      %p232 = pnand %p230, %p231
      %p233 = pneg %p232
      // Predicated region
      $region37: #{tpu_custom_call.1} parent=5 // pred_check
        _
      $region38: #{tpu_custom_call.1} parent=5 // pred_check_branch
        %235 = sbr.rel (%p232) target = $region40
      $region39: #{tpu_custom_call.1} parent=5 // pred_region
        %s236 = ssub.s32 %s25, 1
        // Predicated region
        $region41: #{tpu_custom_call.1} parent=39 // pred_check
          %p237 = pneg %p128
        $region42: #{tpu_custom_call.1} parent=39 // pred_check_branch
          %239 = sbr.rel (%p237) target = $region44
        $region43: #{tpu_custom_call.1} parent=39 // pred_region
          %241 = dma.done [#allocation7], 16
        $region44: #{tpu_custom_call.1} parent=39 // pred_fallthru
          _
        %p242 = pneg %p58
        %p243 = pneg %p55
        %p244 = pneg %p79
        %p245 = pneg %p76
        %s246 = smul.u32 8, %s35
        %p247 = scmp.lt.s32.totalorder %s34, 1
        %s248 = scalar_select %p247, %s34, 1
        %p249 = scmp.lt.s32.totalorder %s246, 7
        %s250 = scalar_select %p249, %s246, 7
        %s251 = smul.addr %s248, 8
        %s252 = sadd.s32 %s250, %s251
        %s253 = smul.addr %s252, 8
        %s254 = scalar_lea.vmem %s4, %s253
        %p255 = pneg %p107
        %p256 = pneg %p104
        %p257 = pneg %p128
        %p258 = pneg %p125
        %p259 = pneg %p149
        %p260 = pneg %p146
        %p261 = pneg %p177
        %p262 = pneg %p174
        %s263 = sand.u32 %s164, 1
        %s264 = scalar_lea.sflag [#allocation8], %s263
        %s265 = sand.u32 %s164, 1
        %s266 = smul.addr %s265, 64
        %s267 = scalar_lea.vmem [#allocation9], %s266
        %s268 = smul.u32 8, %s35
        %p269 = scmp.lt.s32.totalorder %s34, 1
        %s270 = scalar_select %p269, %s34, 1
        %p271 = scmp.lt.s32.totalorder %s268, 7
        %s272 = scalar_select %p271, %s268, 7
        %s273 = smul.addr %s270, 8
        %s274 = sadd.s32 %s272, %s273
        %s275 = smul.addr %s274, 8
        %s276 = scalar_lea.vmem %s4, %s275
        %s277 = smul.u32 8, %s35
        %s278 = smul.u32 8, %s35
        %s279 = smul.u32 %s34, 64
        %s280 = smul.u32 %s35, 64
        %s281 = sadd.s32 %s279, %s280
        %s282 = sld [smem:[#allocation5 + %s281]]
        %s283 = sadd.s32 %s281, 1
        %s284 = sld [smem:[#allocation5 + %s283]]
        %s285 = sadd.s32 %s281, 2
        %s286 = sld [smem:[#allocation5 + %s285]]
        %s287 = sadd.s32 %s281, 3
        %s288 = sld [smem:[#allocation5 + %s287]]
        %s289 = sadd.s32 %s281, 4
        %s290 = sld [smem:[#allocation5 + %s289]]
        %s291 = sadd.s32 %s281, 5
        %s292 = sld [smem:[#allocation5 + %s291]]
        %s293 = sadd.s32 %s281, 6
        %s294 = sld [smem:[#allocation5 + %s293]]
        %s295 = sadd.s32 %s281, 7
        %s296 = sld [smem:[#allocation5 + %s295]]
        %s297 = sadd.s32 %s281, 8
        %s298 = sld [smem:[#allocation5 + %s297]]
        %s299 = sadd.s32 %s281, 9
        %s300 = sld [smem:[#allocation5 + %s299]]
        %s301 = sadd.s32 %s281, 10
        %s302 = sld [smem:[#allocation5 + %s301]]
        %s303 = sadd.s32 %s281, 11
        %s304 = sld [smem:[#allocation5 + %s303]]
        %s305 = sadd.s32 %s281, 12
        %s306 = sld [smem:[#allocation5 + %s305]]
        %s307 = sadd.s32 %s281, 13
        %s308 = sld [smem:[#allocation5 + %s307]]
        %s309 = sadd.s32 %s281, 14
        %s310 = sld [smem:[#allocation5 + %s309]]
        %s311 = sadd.s32 %s281, 15
        %s312 = sld [smem:[#allocation5 + %s311]]
        %s313 = scalar_lea.hbm %s1, %s282
        // Predicated region
        $region45: #{tpu_custom_call.1} parent=39 // pred_check
          _
        $region46: #{tpu_custom_call.1} parent=39 // pred_check_branch
          %315 = sbr.rel target = $region48
        $region47: #{tpu_custom_call.1} parent=39 // pred_region
          %316 = sst [smem:[#allocation12]] [#allocation11]
          %317 = sst [smem:[#allocation13]] [#allocation10]
        $region48: #{tpu_custom_call.1} parent=39 // pred_fallthru
          _
        %319 = shalt.err (0)
        %s321 = sshll.u32 %s313, 4
        %s322 = int_to_ptr.hbm [resolvable:$true] %s321
        %s323 = sshll.u32 [#allocation2], 4
        %s324 = int_to_ptr.vmem [resolvable:$true] %s323
        %326 = dma.hbm_to_vmem [thread:$0]  %s322, 16, %s324, [#allocation3]
        %s327 = scalar_lea.hbm %s1, %s284
        %s328 = scalar_lea.vmem [#allocation2], 1
        // Predicated region
        $region49: #{tpu_custom_call.1} parent=39 // pred_check
          _
        $region50: #{tpu_custom_call.1} parent=39 // pred_check_branch
          %330 = sbr.rel target = $region52
        $region51: #{tpu_custom_call.1} parent=39 // pred_region
          %331 = sst [smem:[#allocation12]] [#allocation15]
          %332 = sst [smem:[#allocation13]] [#allocation14]
        $region52: #{tpu_custom_call.1} parent=39 // pred_fallthru
          _
        %334 = shalt.err (0)
        %s336 = sshll.u32 %s327, 4
        %s337 = int_to_ptr.hbm [resolvable:$true] %s336
        %s338 = sshll.u32 %s328, 4
        %s339 = int_to_ptr.vmem [resolvable:$true] %s338
        %341 = dma.hbm_to_vmem [thread:$0]  %s337, 16, %s339, [#allocation3]
        %s342 = scalar_lea.hbm %s1, %s286
        %s343 = scalar_lea.vmem [#allocation2], 2
        // Predicated region
        $region53: #{tpu_custom_call.1} parent=39 // pred_check
          _
        $region54: #{tpu_custom_call.1} parent=39 // pred_check_branch
          %345 = sbr.rel target = $region56
        $region55: #{tpu_custom_call.1} parent=39 // pred_region
          %346 = sst [smem:[#allocation12]] [#allocation17]
          %347 = sst [smem:[#allocation13]] [#allocation16]
        $region56: #{tpu_custom_call.1} parent=39 // pred_fallthru
          _
        %349 = shalt.err (0)
        %s351 = sshll.u32 %s342, 4
        %s352 = int_to_ptr.hbm [resolvable:$true] %s351
        %s353 = sshll.u32 %s343, 4
        %s354 = int_to_ptr.vmem [resolvable:$true] %s353
        %356 = dma.hbm_to_vmem [thread:$0]  %s352, 16, %s354, [#allocation3]
        %s357 = scalar_lea.hbm %s1, %s288
        %s358 = scalar_lea.vmem [#allocation2], 3
        // Predicated region
        $region57: #{tpu_custom_call.1} parent=39 // pred_check
          _
        $region58: #{tpu_custom_call.1} parent=39 // pred_check_branch
          %360 = sbr.rel target = $region60
        $region59: #{tpu_custom_call.1} parent=39 // pred_region
          %361 = sst [smem:[#allocation12]] [#allocation19]
          %362 = sst [smem:[#allocation13]] [#allocation18]
        $region60: #{tpu_custom_call.1} parent=39 // pred_fallthru
          _
        %364 = shalt.err (0)
        %s366 = sshll.u32 %s357, 4
        %s367 = int_to_ptr.hbm [resolvable:$true] %s366
        %s368 = sshll.u32 %s358, 4
        %s369 = int_to_ptr.vmem [resolvable:$true] %s368
        %371 = dma.hbm_to_vmem [thread:$0]  %s367, 16, %s369, [#allocation3]
        %s372 = scalar_lea.hbm %s1, %s290
        %s373 = scalar_lea.vmem [#allocation2], 4
        // Predicated region
        $region61: #{tpu_custom_call.1} parent=39 // pred_check
          _
        $region62: #{tpu_custom_call.1} parent=39 // pred_check_branch
          %375 = sbr.rel target = $region64
        $region63: #{tpu_custom_call.1} parent=39 // pred_region
          %376 = sst [smem:[#allocation12]] [#allocation21]
          %377 = sst [smem:[#allocation13]] [#allocation20]
        $region64: #{tpu_custom_call.1} parent=39 // pred_fallthru
          _
        %379 = shalt.err (0)
        %s381 = sshll.u32 %s372, 4
        %s382 = int_to_ptr.hbm [resolvable:$true] %s381
        %s383 = sshll.u32 %s373, 4
        %s384 = int_to_ptr.vmem [resolvable:$true] %s383
        %386 = dma.hbm_to_vmem [thread:$0]  %s382, 16, %s384, [#allocation3]
        %s387 = scalar_lea.hbm %s1, %s292
        %s388 = scalar_lea.vmem [#allocation2], 5
        // Predicated region
        $region65: #{tpu_custom_call.1} parent=39 // pred_check
          _
        $region66: #{tpu_custom_call.1} parent=39 // pred_check_branch
          %390 = sbr.rel target = $region68
        $region67: #{tpu_custom_call.1} parent=39 // pred_region
          %391 = sst [smem:[#allocation12]] [#allocation23]
          %392 = sst [smem:[#allocation13]] [#allocation22]
        $region68: #{tpu_custom_call.1} parent=39 // pred_fallthru
          _
        %394 = shalt.err (0)
        %s396 = sshll.u32 %s387, 4
        %s397 = int_to_ptr.hbm [resolvable:$true] %s396
        %s398 = sshll.u32 %s388, 4
        %s399 = int_to_ptr.vmem [resolvable:$true] %s398
        %401 = dma.hbm_to_vmem [thread:$0]  %s397, 16, %s399, [#allocation3]
        %s402 = scalar_lea.hbm %s1, %s294
        %s403 = scalar_lea.vmem [#allocation2], 6
        // Predicated region
        $region69: #{tpu_custom_call.1} parent=39 // pred_check
          _
        $region70: #{tpu_custom_call.1} parent=39 // pred_check_branch
          %405 = sbr.rel target = $region72
        $region71: #{tpu_custom_call.1} parent=39 // pred_region
          %406 = sst [smem:[#allocation12]] [#allocation25]
          %407 = sst [smem:[#allocation13]] [#allocation24]
        $region72: #{tpu_custom_call.1} parent=39 // pred_fallthru
          _
        %409 = shalt.err (0)
        %s411 = sshll.u32 %s402, 4
        %s412 = int_to_ptr.hbm [resolvable:$true] %s411
        %s413 = sshll.u32 %s403, 4
        %s414 = int_to_ptr.vmem [resolvable:$true] %s413
        %416 = dma.hbm_to_vmem [thread:$0]  %s412, 16, %s414, [#allocation3]
        %s417 = scalar_lea.hbm %s1, %s296
        %s418 = scalar_lea.vmem [#allocation2], 7
        // Predicated region
        $region73: #{tpu_custom_call.1} parent=39 // pred_check
          _
        $region74: #{tpu_custom_call.1} parent=39 // pred_check_branch
          %420 = sbr.rel target = $region76
        $region75: #{tpu_custom_call.1} parent=39 // pred_region
          %421 = sst [smem:[#allocation12]] [#allocation27]
          %422 = sst [smem:[#allocation13]] [#allocation26]
        $region76: #{tpu_custom_call.1} parent=39 // pred_fallthru
          _
        %424 = shalt.err (0)
        %s426 = sshll.u32 %s417, 4
        %s427 = int_to_ptr.hbm [resolvable:$true] %s426
        %s428 = sshll.u32 %s418, 4
        %s429 = int_to_ptr.vmem [resolvable:$true] %s428
        %431 = dma.hbm_to_vmem [thread:$0]  %s427, 16, %s429, [#allocation3]
        %s432 = scalar_lea.hbm %s1, %s298
        %s433 = scalar_lea.vmem [#allocation2], 8
        // Predicated region
        $region77: #{tpu_custom_call.1} parent=39 // pred_check
          _
        $region78: #{tpu_custom_call.1} parent=39 // pred_check_branch
          %435 = sbr.rel target = $region80
        $region79: #{tpu_custom_call.1} parent=39 // pred_region
          %436 = sst [smem:[#allocation12]] [#allocation29]
          %437 = sst [smem:[#allocation13]] [#allocation28]
        $region80: #{tpu_custom_call.1} parent=39 // pred_fallthru
          _
        %439 = shalt.err (0)
        %s441 = sshll.u32 %s432, 4
        %s442 = int_to_ptr.hbm [resolvable:$true] %s441
        %s443 = sshll.u32 %s433, 4
        %s444 = int_to_ptr.vmem [resolvable:$true] %s443
        %446 = dma.hbm_to_vmem [thread:$0]  %s442, 16, %s444, [#allocation3]
        %s447 = scalar_lea.hbm %s1, %s300
        %s448 = scalar_lea.vmem [#allocation2], 9
        // Predicated region
        $region81: #{tpu_custom_call.1} parent=39 // pred_check
          _
        $region82: #{tpu_custom_call.1} parent=39 // pred_check_branch
          %450 = sbr.rel target = $region84
        $region83: #{tpu_custom_call.1} parent=39 // pred_region
          %451 = sst [smem:[#allocation12]] [#allocation31]
          %452 = sst [smem:[#allocation13]] [#allocation30]
        $region84: #{tpu_custom_call.1} parent=39 // pred_fallthru
          _
        %454 = shalt.err (0)
        %s456 = sshll.u32 %s447, 4
        %s457 = int_to_ptr.hbm [resolvable:$true] %s456
        %s458 = sshll.u32 %s448, 4
        %s459 = int_to_ptr.vmem [resolvable:$true] %s458
        %461 = dma.hbm_to_vmem [thread:$0]  %s457, 16, %s459, [#allocation3]
        %s462 = scalar_lea.hbm %s1, %s302
        %s463 = scalar_lea.vmem [#allocation2], 10
        // Predicated region
        $region85: #{tpu_custom_call.1} parent=39 // pred_check
          _
        $region86: #{tpu_custom_call.1} parent=39 // pred_check_branch
          %465 = sbr.rel target = $region88
        $region87: #{tpu_custom_call.1} parent=39 // pred_region
          %466 = sst [smem:[#allocation12]] [#allocation33]
          %467 = sst [smem:[#allocation13]] [#allocation32]
        $region88: #{tpu_custom_call.1} parent=39 // pred_fallthru
          _
        %469 = shalt.err (0)
        %s471 = sshll.u32 %s462, 4
        %s472 = int_to_ptr.hbm [resolvable:$true] %s471
        %s473 = sshll.u32 %s463, 4
        %s474 = int_to_ptr.vmem [resolvable:$true] %s473
        %476 = dma.hbm_to_vmem [thread:$0]  %s472, 16, %s474, [#allocation3]
        %s477 = scalar_lea.hbm %s1, %s304
        %s478 = scalar_lea.vmem [#allocation2], 11
        // Predicated region
        $region89: #{tpu_custom_call.1} parent=39 // pred_check
          _
        $region90: #{tpu_custom_call.1} parent=39 // pred_check_branch
          %480 = sbr.rel target = $region92
        $region91: #{tpu_custom_call.1} parent=39 // pred_region
          %481 = sst [smem:[#allocation12]] [#allocation35]
          %482 = sst [smem:[#allocation13]] [#allocation34]
        $region92: #{tpu_custom_call.1} parent=39 // pred_fallthru
          _
        %484 = shalt.err (0)
        %s486 = sshll.u32 %s477, 4
        %s487 = int_to_ptr.hbm [resolvable:$true] %s486
        %s488 = sshll.u32 %s478, 4
        %s489 = int_to_ptr.vmem [resolvable:$true] %s488
        %491 = dma.hbm_to_vmem [thread:$0]  %s487, 16, %s489, [#allocation3]
        %s492 = scalar_lea.hbm %s1, %s306
        %s493 = scalar_lea.vmem [#allocation2], 12
        // Predicated region
        $region93: #{tpu_custom_call.1} parent=39 // pred_check
          _
        $region94: #{tpu_custom_call.1} parent=39 // pred_check_branch
          %495 = sbr.rel target = $region96
        $region95: #{tpu_custom_call.1} parent=39 // pred_region
          %496 = sst [smem:[#allocation12]] [#allocation37]
          %497 = sst [smem:[#allocation13]] [#allocation36]
        $region96: #{tpu_custom_call.1} parent=39 // pred_fallthru
          _
        %499 = shalt.err (0)
        %s501 = sshll.u32 %s492, 4
        %s502 = int_to_ptr.hbm [resolvable:$true] %s501
        %s503 = sshll.u32 %s493, 4
        %s504 = int_to_ptr.vmem [resolvable:$true] %s503
        %506 = dma.hbm_to_vmem [thread:$0]  %s502, 16, %s504, [#allocation3]
        %s507 = scalar_lea.hbm %s1, %s308
        %s508 = scalar_lea.vmem [#allocation2], 13
        // Predicated region
        $region97: #{tpu_custom_call.1} parent=39 // pred_check
          _
        $region98: #{tpu_custom_call.1} parent=39 // pred_check_branch
          %510 = sbr.rel target = $region100
        $region99: #{tpu_custom_call.1} parent=39 // pred_region
          %511 = sst [smem:[#allocation12]] [#allocation39]
          %512 = sst [smem:[#allocation13]] [#allocation38]
        $region100: #{tpu_custom_call.1} parent=39 // pred_fallthru
          _
        %514 = shalt.err (0)
        %s516 = sshll.u32 %s507, 4
        %s517 = int_to_ptr.hbm [resolvable:$true] %s516
        %s518 = sshll.u32 %s508, 4
        %s519 = int_to_ptr.vmem [resolvable:$true] %s518
        %521 = dma.hbm_to_vmem [thread:$0]  %s517, 16, %s519, [#allocation3]
        %s522 = scalar_lea.hbm %s1, %s310
        %s523 = scalar_lea.vmem [#allocation2], 14
        // Predicated region
        $region101: #{tpu_custom_call.1} parent=39 // pred_check
          _
        $region102: #{tpu_custom_call.1} parent=39 // pred_check_branch
          %525 = sbr.rel target = $region104
        $region103: #{tpu_custom_call.1} parent=39 // pred_region
          %526 = sst [smem:[#allocation12]] [#allocation41]
          %527 = sst [smem:[#allocation13]] [#allocation40]
        $region104: #{tpu_custom_call.1} parent=39 // pred_fallthru
          _
        %529 = shalt.err (0)
        %s531 = sshll.u32 %s522, 4
        %s532 = int_to_ptr.hbm [resolvable:$true] %s531
        %s533 = sshll.u32 %s523, 4
        %s534 = int_to_ptr.vmem [resolvable:$true] %s533
        %536 = dma.hbm_to_vmem [thread:$0]  %s532, 16, %s534, [#allocation3]
        %s537 = scalar_lea.hbm %s1, %s312
        %s538 = scalar_lea.vmem [#allocation2], 15
        // Predicated region
        $region105: #{tpu_custom_call.1} parent=39 // pred_check
          _
        $region106: #{tpu_custom_call.1} parent=39 // pred_check_branch
          %540 = sbr.rel target = $region108
        $region107: #{tpu_custom_call.1} parent=39 // pred_region
          %541 = sst [smem:[#allocation12]] [#allocation43]
          %542 = sst [smem:[#allocation13]] [#allocation42]
        $region108: #{tpu_custom_call.1} parent=39 // pred_fallthru
          _
        %544 = shalt.err (0)
        %s546 = sshll.u32 %s537, 4
        %s547 = int_to_ptr.hbm [resolvable:$true] %s546
        %s548 = sshll.u32 %s538, 4
        %s549 = int_to_ptr.vmem [resolvable:$true] %s548
        %551 = dma.hbm_to_vmem [thread:$0]  %s547, 16, %s549, [#allocation3]
        %s552 = sadd.s32 %s281, 16
        %s553 = sld [smem:[#allocation5 + %s552]]
        %s554 = sadd.s32 %s281, 17
        %s555 = sld [smem:[#allocation5 + %s554]]
        %s556 = sadd.s32 %s281, 18
        %s557 = sld [smem:[#allocation5 + %s556]]
        %s558 = sadd.s32 %s281, 19
        %s559 = sld [smem:[#allocation5 + %s558]]
        %s560 = sadd.s32 %s281, 20
        %s561 = sld [smem:[#allocation5 + %s560]]
        %s562 = sadd.s32 %s281, 21
        %s563 = sld [smem:[#allocation5 + %s562]]
        %s564 = sadd.s32 %s281, 22
        %s565 = sld [smem:[#allocation5 + %s564]]
        %s566 = sadd.s32 %s281, 23
        %s567 = sld [smem:[#allocation5 + %s566]]
        %s568 = sadd.s32 %s281, 24
        %s569 = sld [smem:[#allocation5 + %s568]]
        %s570 = sadd.s32 %s281, 25
        %s571 = sld [smem:[#allocation5 + %s570]]
        %s572 = sadd.s32 %s281, 26
        %s573 = sld [smem:[#allocation5 + %s572]]
        %s574 = sadd.s32 %s281, 27
        %s575 = sld [smem:[#allocation5 + %s574]]
        %s576 = sadd.s32 %s281, 28
        %s577 = sld [smem:[#allocation5 + %s576]]
        %s578 = sadd.s32 %s281, 29
        %s579 = sld [smem:[#allocation5 + %s578]]
        %s580 = sadd.s32 %s281, 30
        %s581 = sld [smem:[#allocation5 + %s580]]
        %s582 = sadd.s32 %s281, 31
        %s583 = sld [smem:[#allocation5 + %s582]]
        %s584 = scalar_lea.hbm %s1, %s553
        %s585 = scalar_lea.vmem [#allocation2], 16
        %s586 = scalar_lea.sflag [#allocation3], 1
        // Predicated region
        $region109: #{tpu_custom_call.1} parent=39 // pred_check
          _
        $region110: #{tpu_custom_call.1} parent=39 // pred_check_branch
          %588 = sbr.rel target = $region112
        $region111: #{tpu_custom_call.1} parent=39 // pred_region
          %589 = sst [smem:[#allocation12]] [#allocation45]
          %590 = sst [smem:[#allocation13]] [#allocation44]
        $region112: #{tpu_custom_call.1} parent=39 // pred_fallthru
          _
        %592 = shalt.err (0)
        %s594 = sshll.u32 %s584, 4
        %s595 = int_to_ptr.hbm [resolvable:$true] %s594
        %s596 = sshll.u32 %s585, 4
        %s597 = int_to_ptr.vmem [resolvable:$true] %s596
        %599 = dma.hbm_to_vmem [thread:$0]  %s595, 16, %s597, %s586
        %s600 = scalar_lea.hbm %s1, %s555
        %s601 = scalar_lea.vmem [#allocation2], 17
        // Predicated region
        $region113: #{tpu_custom_call.1} parent=39 // pred_check
          _
        $region114: #{tpu_custom_call.1} parent=39 // pred_check_branch
          %603 = sbr.rel target = $region116
        $region115: #{tpu_custom_call.1} parent=39 // pred_region
          %604 = sst [smem:[#allocation12]] [#allocation47]
          %605 = sst [smem:[#allocation13]] [#allocation46]
        $region116: #{tpu_custom_call.1} parent=39 // pred_fallthru
          _
        %607 = shalt.err (0)
        %s609 = sshll.u32 %s600, 4
        %s610 = int_to_ptr.hbm [resolvable:$true] %s609
        %s611 = sshll.u32 %s601, 4
        %s612 = int_to_ptr.vmem [resolvable:$true] %s611
        %614 = dma.hbm_to_vmem [thread:$0]  %s610, 16, %s612, %s586
        %s615 = scalar_lea.hbm %s1, %s557
        %s616 = scalar_lea.vmem [#allocation2], 18
        // Predicated region
        $region117: #{tpu_custom_call.1} parent=39 // pred_check
          _
        $region118: #{tpu_custom_call.1} parent=39 // pred_check_branch
          %618 = sbr.rel target = $region120
        $region119: #{tpu_custom_call.1} parent=39 // pred_region
          %619 = sst [smem:[#allocation12]] [#allocation49]
          %620 = sst [smem:[#allocation13]] [#allocation48]
        $region120: #{tpu_custom_call.1} parent=39 // pred_fallthru
          _
        %622 = shalt.err (0)
        %s624 = sshll.u32 %s615, 4
        %s625 = int_to_ptr.hbm [resolvable:$true] %s624
        %s626 = sshll.u32 %s616, 4
        %s627 = int_to_ptr.vmem [resolvable:$true] %s626
        %629 = dma.hbm_to_vmem [thread:$0]  %s625, 16, %s627, %s586
        %s630 = scalar_lea.hbm %s1, %s559
        %s631 = scalar_lea.vmem [#allocation2], 19
        // Predicated region
        $region121: #{tpu_custom_call.1} parent=39 // pred_check
          _
        $region122: #{tpu_custom_call.1} parent=39 // pred_check_branch
          %633 = sbr.rel target = $region124
        $region123: #{tpu_custom_call.1} parent=39 // pred_region
          %634 = sst [smem:[#allocation12]] [#allocation51]
          %635 = sst [smem:[#allocation13]] [#allocation50]
        $region124: #{tpu_custom_call.1} parent=39 // pred_fallthru
          _
        %637 = shalt.err (0)
        %s639 = sshll.u32 %s630, 4
        %s640 = int_to_ptr.hbm [resolvable:$true] %s639
        %s641 = sshll.u32 %s631, 4
        %s642 = int_to_ptr.vmem [resolvable:$true] %s641
        %644 = dma.hbm_to_vmem [thread:$0]  %s640, 16, %s642, %s586
        %s645 = scalar_lea.hbm %s1, %s561
        %s646 = scalar_lea.vmem [#allocation2], 20
        // Predicated region
        $region125: #{tpu_custom_call.1} parent=39 // pred_check
          _
        $region126: #{tpu_custom_call.1} parent=39 // pred_check_branch
          %648 = sbr.rel target = $region128
        $region127: #{tpu_custom_call.1} parent=39 // pred_region
          %649 = sst [smem:[#allocation12]] [#allocation53]
          %650 = sst [smem:[#allocation13]] [#allocation52]
        $region128: #{tpu_custom_call.1} parent=39 // pred_fallthru
          _
        %652 = shalt.err (0)
        %s654 = sshll.u32 %s645, 4
        %s655 = int_to_ptr.hbm [resolvable:$true] %s654
        %s656 = sshll.u32 %s646, 4
        %s657 = int_to_ptr.vmem [resolvable:$true] %s656
        %659 = dma.hbm_to_vmem [thread:$0]  %s655, 16, %s657, %s586
        %s660 = scalar_lea.hbm %s1, %s563
        %s661 = scalar_lea.vmem [#allocation2], 21
        // Predicated region
        $region129: #{tpu_custom_call.1} parent=39 // pred_check
          _
        $region130: #{tpu_custom_call.1} parent=39 // pred_check_branch
          %663 = sbr.rel target = $region132
        $region131: #{tpu_custom_call.1} parent=39 // pred_region
          %664 = sst [smem:[#allocation12]] [#allocation55]
          %665 = sst [smem:[#allocation13]] [#allocation54]
        $region132: #{tpu_custom_call.1} parent=39 // pred_fallthru
          _
        %667 = shalt.err (0)
        %s669 = sshll.u32 %s660, 4
        %s670 = int_to_ptr.hbm [resolvable:$true] %s669
        %s671 = sshll.u32 %s661, 4
        %s672 = int_to_ptr.vmem [resolvable:$true] %s671
        %674 = dma.hbm_to_vmem [thread:$0]  %s670, 16, %s672, %s586
        %s675 = scalar_lea.hbm %s1, %s565
        %s676 = scalar_lea.vmem [#allocation2], 22
        // Predicated region
        $region133: #{tpu_custom_call.1} parent=39 // pred_check
          _
        $region134: #{tpu_custom_call.1} parent=39 // pred_check_branch
          %678 = sbr.rel target = $region136
        $region135: #{tpu_custom_call.1} parent=39 // pred_region
          %679 = sst [smem:[#allocation12]] [#allocation57]
          %680 = sst [smem:[#allocation13]] [#allocation56]
        $region136: #{tpu_custom_call.1} parent=39 // pred_fallthru
          _
        %682 = shalt.err (0)
        %s684 = sshll.u32 %s675, 4
        %s685 = int_to_ptr.hbm [resolvable:$true] %s684
        %s686 = sshll.u32 %s676, 4
        %s687 = int_to_ptr.vmem [resolvable:$true] %s686
        %689 = dma.hbm_to_vmem [thread:$0]  %s685, 16, %s687, %s586
        %s690 = scalar_lea.hbm %s1, %s567
        %s691 = scalar_lea.vmem [#allocation2], 23
        // Predicated region
        $region137: #{tpu_custom_call.1} parent=39 // pred_check
          _
        $region138: #{tpu_custom_call.1} parent=39 // pred_check_branch
          %693 = sbr.rel target = $region140
        $region139: #{tpu_custom_call.1} parent=39 // pred_region
          %694 = sst [smem:[#allocation12]] [#allocation59]
          %695 = sst [smem:[#allocation13]] [#allocation58]
        $region140: #{tpu_custom_call.1} parent=39 // pred_fallthru
          _
        %697 = shalt.err (0)
        %s699 = sshll.u32 %s690, 4
        %s700 = int_to_ptr.hbm [resolvable:$true] %s699
        %s701 = sshll.u32 %s691, 4
        %s702 = int_to_ptr.vmem [resolvable:$true] %s701
        %704 = dma.hbm_to_vmem [thread:$0]  %s700, 16, %s702, %s586
        %s705 = scalar_lea.hbm %s1, %s569
        %s706 = scalar_lea.vmem [#allocation2], 24
        // Predicated region
        $region141: #{tpu_custom_call.1} parent=39 // pred_check
          _
        $region142: #{tpu_custom_call.1} parent=39 // pred_check_branch
          %708 = sbr.rel target = $region144
        $region143: #{tpu_custom_call.1} parent=39 // pred_region
          %709 = sst [smem:[#allocation12]] [#allocation61]
          %710 = sst [smem:[#allocation13]] [#allocation60]
        $region144: #{tpu_custom_call.1} parent=39 // pred_fallthru
          _
        %712 = shalt.err (0)
        %s714 = sshll.u32 %s705, 4
        %s715 = int_to_ptr.hbm [resolvable:$true] %s714
        %s716 = sshll.u32 %s706, 4
        %s717 = int_to_ptr.vmem [resolvable:$true] %s716
        %719 = dma.hbm_to_vmem [thread:$0]  %s715, 16, %s717, %s586
        %s720 = scalar_lea.hbm %s1, %s571
        %s721 = scalar_lea.vmem [#allocation2], 25
        // Predicated region
        $region145: #{tpu_custom_call.1} parent=39 // pred_check
          _
        $region146: #{tpu_custom_call.1} parent=39 // pred_check_branch
          %723 = sbr.rel target = $region148
        $region147: #{tpu_custom_call.1} parent=39 // pred_region
          %724 = sst [smem:[#allocation12]] [#allocation63]
          %725 = sst [smem:[#allocation13]] [#allocation62]
        $region148: #{tpu_custom_call.1} parent=39 // pred_fallthru
          _
        %727 = shalt.err (0)
        %s729 = sshll.u32 %s720, 4
        %s730 = int_to_ptr.hbm [resolvable:$true] %s729
        %s731 = sshll.u32 %s721, 4
        %s732 = int_to_ptr.vmem [resolvable:$true] %s731
        %734 = dma.hbm_to_vmem [thread:$0]  %s730, 16, %s732, %s586
        %s735 = scalar_lea.hbm %s1, %s573
        %s736 = scalar_lea.vmem [#allocation2], 26
        // Predicated region
        $region149: #{tpu_custom_call.1} parent=39 // pred_check
          _
        $region150: #{tpu_custom_call.1} parent=39 // pred_check_branch
          %738 = sbr.rel target = $region152
        $region151: #{tpu_custom_call.1} parent=39 // pred_region
          %739 = sst [smem:[#allocation12]] [#allocation65]
          %740 = sst [smem:[#allocation13]] [#allocation64]
        $region152: #{tpu_custom_call.1} parent=39 // pred_fallthru
          _
        %742 = shalt.err (0)
        %s744 = sshll.u32 %s735, 4
        %s745 = int_to_ptr.hbm [resolvable:$true] %s744
        %s746 = sshll.u32 %s736, 4
        %s747 = int_to_ptr.vmem [resolvable:$true] %s746
        %749 = dma.hbm_to_vmem [thread:$0]  %s745, 16, %s747, %s586
        %s750 = scalar_lea.hbm %s1, %s575
        %s751 = scalar_lea.vmem [#allocation2], 27
        // Predicated region
        $region153: #{tpu_custom_call.1} parent=39 // pred_check
          _
        $region154: #{tpu_custom_call.1} parent=39 // pred_check_branch
          %753 = sbr.rel target = $region156
        $region155: #{tpu_custom_call.1} parent=39 // pred_region
          %754 = sst [smem:[#allocation12]] [#allocation67]
          %755 = sst [smem:[#allocation13]] [#allocation66]
        $region156: #{tpu_custom_call.1} parent=39 // pred_fallthru
          _
        %757 = shalt.err (0)
        %s759 = sshll.u32 %s750, 4
        %s760 = int_to_ptr.hbm [resolvable:$true] %s759
        %s761 = sshll.u32 %s751, 4
        %s762 = int_to_ptr.vmem [resolvable:$true] %s761
        %764 = dma.hbm_to_vmem [thread:$0]  %s760, 16, %s762, %s586
        %s765 = scalar_lea.hbm %s1, %s577
        %s766 = scalar_lea.vmem [#allocation2], 28
        // Predicated region
        $region157: #{tpu_custom_call.1} parent=39 // pred_check
          _
        $region158: #{tpu_custom_call.1} parent=39 // pred_check_branch
          %768 = sbr.rel target = $region160
        $region159: #{tpu_custom_call.1} parent=39 // pred_region
          %769 = sst [smem:[#allocation12]] [#allocation69]
          %770 = sst [smem:[#allocation13]] [#allocation68]
        $region160: #{tpu_custom_call.1} parent=39 // pred_fallthru
          _
        %772 = shalt.err (0)
        %s774 = sshll.u32 %s765, 4
        %s775 = int_to_ptr.hbm [resolvable:$true] %s774
        %s776 = sshll.u32 %s766, 4
        %s777 = int_to_ptr.vmem [resolvable:$true] %s776
        %779 = dma.hbm_to_vmem [thread:$0]  %s775, 16, %s777, %s586
        %s780 = scalar_lea.hbm %s1, %s579
        %s781 = scalar_lea.vmem [#allocation2], 29
        // Predicated region
        $region161: #{tpu_custom_call.1} parent=39 // pred_check
          _
        $region162: #{tpu_custom_call.1} parent=39 // pred_check_branch
          %783 = sbr.rel target = $region164
        $region163: #{tpu_custom_call.1} parent=39 // pred_region
          %784 = sst [smem:[#allocation12]] [#allocation71]
          %785 = sst [smem:[#allocation13]] [#allocation70]
        $region164: #{tpu_custom_call.1} parent=39 // pred_fallthru
          _
        %787 = shalt.err (0)
        %s789 = sshll.u32 %s780, 4
        %s790 = int_to_ptr.hbm [resolvable:$true] %s789
        %s791 = sshll.u32 %s781, 4
        %s792 = int_to_ptr.vmem [resolvable:$true] %s791
        %794 = dma.hbm_to_vmem [thread:$0]  %s790, 16, %s792, %s586
        %s795 = scalar_lea.hbm %s1, %s581
        %s796 = scalar_lea.vmem [#allocation2], 30
        // Predicated region
        $region165: #{tpu_custom_call.1} parent=39 // pred_check
          _
        $region166: #{tpu_custom_call.1} parent=39 // pred_check_branch
          %798 = sbr.rel target = $region168
        $region167: #{tpu_custom_call.1} parent=39 // pred_region
          %799 = sst [smem:[#allocation12]] [#allocation73]
          %800 = sst [smem:[#allocation13]] [#allocation72]
        $region168: #{tpu_custom_call.1} parent=39 // pred_fallthru
          _
        %802 = shalt.err (0)
        %s804 = sshll.u32 %s795, 4
        %s805 = int_to_ptr.hbm [resolvable:$true] %s804
        %s806 = sshll.u32 %s796, 4
        %s807 = int_to_ptr.vmem [resolvable:$true] %s806
        %809 = dma.hbm_to_vmem [thread:$0]  %s805, 16, %s807, %s586
        %s810 = scalar_lea.hbm %s1, %s583
        %s811 = scalar_lea.vmem [#allocation2], 31
        // Predicated region
        $region169: #{tpu_custom_call.1} parent=39 // pred_check
          _
        $region170: #{tpu_custom_call.1} parent=39 // pred_check_branch
          %813 = sbr.rel target = $region172
        $region171: #{tpu_custom_call.1} parent=39 // pred_region
          %814 = sst [smem:[#allocation12]] [#allocation75]
          %815 = sst [smem:[#allocation13]] [#allocation74]
        $region172: #{tpu_custom_call.1} parent=39 // pred_fallthru
          _
        %817 = shalt.err (0)
        %s819 = sshll.u32 %s810, 4
        %s820 = int_to_ptr.hbm [resolvable:$true] %s819
        %s821 = sshll.u32 %s811, 4
        %s822 = int_to_ptr.vmem [resolvable:$true] %s821
        %824 = dma.hbm_to_vmem [thread:$0]  %s820, 16, %s822, %s586
        %s825 = sadd.s32 %s281, 32
        %s826 = sld [smem:[#allocation5 + %s825]]
        %s827 = sadd.s32 %s281, 33
        %s828 = sld [smem:[#allocation5 + %s827]]
        %s829 = sadd.s32 %s281, 34
        %s830 = sld [smem:[#allocation5 + %s829]]
        %s831 = sadd.s32 %s281, 35
        %s832 = sld [smem:[#allocation5 + %s831]]
        %s833 = sadd.s32 %s281, 36
        %s834 = sld [smem:[#allocation5 + %s833]]
        %s835 = sadd.s32 %s281, 37
        %s836 = sld [smem:[#allocation5 + %s835]]
        %s837 = sadd.s32 %s281, 38
        %s838 = sld [smem:[#allocation5 + %s837]]
        %s839 = sadd.s32 %s281, 39
        %s840 = sld [smem:[#allocation5 + %s839]]
        %s841 = sadd.s32 %s281, 40
        %s842 = sld [smem:[#allocation5 + %s841]]
        %s843 = sadd.s32 %s281, 41
        %s844 = sld [smem:[#allocation5 + %s843]]
        %s845 = sadd.s32 %s281, 42
        %s846 = sld [smem:[#allocation5 + %s845]]
        %s847 = sadd.s32 %s281, 43
        %s848 = sld [smem:[#allocation5 + %s847]]
        %s849 = sadd.s32 %s281, 44
        %s850 = sld [smem:[#allocation5 + %s849]]
        %s851 = sadd.s32 %s281, 45
        %s852 = sld [smem:[#allocation5 + %s851]]
        %s853 = sadd.s32 %s281, 46
        %s854 = sld [smem:[#allocation5 + %s853]]
        %s855 = sadd.s32 %s281, 47
        %s856 = sld [smem:[#allocation5 + %s855]]
        %s857 = scalar_lea.hbm %s1, %s826
        %s858 = scalar_lea.vmem [#allocation2], 32
        %s859 = scalar_lea.sflag [#allocation3], 2
        // Predicated region
        $region173: #{tpu_custom_call.1} parent=39 // pred_check
          _
        $region174: #{tpu_custom_call.1} parent=39 // pred_check_branch
          %861 = sbr.rel target = $region176
        $region175: #{tpu_custom_call.1} parent=39 // pred_region
          %862 = sst [smem:[#allocation12]] [#allocation77]
          %863 = sst [smem:[#allocation13]] [#allocation76]
        $region176: #{tpu_custom_call.1} parent=39 // pred_fallthru
          _
        %865 = shalt.err (0)
        %s867 = sshll.u32 %s857, 4
        %s868 = int_to_ptr.hbm [resolvable:$true] %s867
        %s869 = sshll.u32 %s858, 4
        %s870 = int_to_ptr.vmem [resolvable:$true] %s869
        %872 = dma.hbm_to_vmem [thread:$0]  %s868, 16, %s870, %s859
        %s873 = scalar_lea.hbm %s1, %s828
        %s874 = scalar_lea.vmem [#allocation2], 33
        // Predicated region
        $region177: #{tpu_custom_call.1} parent=39 // pred_check
          _
        $region178: #{tpu_custom_call.1} parent=39 // pred_check_branch
          %876 = sbr.rel target = $region180
        $region179: #{tpu_custom_call.1} parent=39 // pred_region
          %877 = sst [smem:[#allocation12]] [#allocation79]
          %878 = sst [smem:[#allocation13]] [#allocation78]
        $region180: #{tpu_custom_call.1} parent=39 // pred_fallthru
          _
        %880 = shalt.err (0)
        %s882 = sshll.u32 %s873, 4
        %s883 = int_to_ptr.hbm [resolvable:$true] %s882
        %s884 = sshll.u32 %s874, 4
        %s885 = int_to_ptr.vmem [resolvable:$true] %s884
        %887 = dma.hbm_to_vmem [thread:$0]  %s883, 16, %s885, %s859
        %s888 = scalar_lea.hbm %s1, %s830
        %s889 = scalar_lea.vmem [#allocation2], 34
        // Predicated region
        $region181: #{tpu_custom_call.1} parent=39 // pred_check
          _
        $region182: #{tpu_custom_call.1} parent=39 // pred_check_branch
          %891 = sbr.rel target = $region184
        $region183: #{tpu_custom_call.1} parent=39 // pred_region
          %892 = sst [smem:[#allocation12]] [#allocation81]
          %893 = sst [smem:[#allocation13]] [#allocation80]
        $region184: #{tpu_custom_call.1} parent=39 // pred_fallthru
          _
        %895 = shalt.err (0)
        %s897 = sshll.u32 %s888, 4
        %s898 = int_to_ptr.hbm [resolvable:$true] %s897
        %s899 = sshll.u32 %s889, 4
        %s900 = int_to_ptr.vmem [resolvable:$true] %s899
        %902 = dma.hbm_to_vmem [thread:$0]  %s898, 16, %s900, %s859
        %s903 = scalar_lea.hbm %s1, %s832
        %s904 = scalar_lea.vmem [#allocation2], 35
        // Predicated region
        $region185: #{tpu_custom_call.1} parent=39 // pred_check
          _
        $region186: #{tpu_custom_call.1} parent=39 // pred_check_branch
          %906 = sbr.rel target = $region188
        $region187: #{tpu_custom_call.1} parent=39 // pred_region
          %907 = sst [smem:[#allocation12]] [#allocation83]
          %908 = sst [smem:[#allocation13]] [#allocation82]
        $region188: #{tpu_custom_call.1} parent=39 // pred_fallthru
          _
        %910 = shalt.err (0)
        %s912 = sshll.u32 %s903, 4
        %s913 = int_to_ptr.hbm [resolvable:$true] %s912
        %s914 = sshll.u32 %s904, 4
        %s915 = int_to_ptr.vmem [resolvable:$true] %s914
        %917 = dma.hbm_to_vmem [thread:$0]  %s913, 16, %s915, %s859
        %s918 = scalar_lea.hbm %s1, %s834
        %s919 = scalar_lea.vmem [#allocation2], 36
        // Predicated region
        $region189: #{tpu_custom_call.1} parent=39 // pred_check
          _
        $region190: #{tpu_custom_call.1} parent=39 // pred_check_branch
          %921 = sbr.rel target = $region192
        $region191: #{tpu_custom_call.1} parent=39 // pred_region
          %922 = sst [smem:[#allocation12]] [#allocation85]
          %923 = sst [smem:[#allocation13]] [#allocation84]
        $region192: #{tpu_custom_call.1} parent=39 // pred_fallthru
          _
        %925 = shalt.err (0)
        %s927 = sshll.u32 %s918, 4
        %s928 = int_to_ptr.hbm [resolvable:$true] %s927
        %s929 = sshll.u32 %s919, 4
        %s930 = int_to_ptr.vmem [resolvable:$true] %s929
        %932 = dma.hbm_to_vmem [thread:$0]  %s928, 16, %s930, %s859
        %s933 = scalar_lea.hbm %s1, %s836
        %s934 = scalar_lea.vmem [#allocation2], 37
        // Predicated region
        $region193: #{tpu_custom_call.1} parent=39 // pred_check
          _
        $region194: #{tpu_custom_call.1} parent=39 // pred_check_branch
          %936 = sbr.rel target = $region196
        $region195: #{tpu_custom_call.1} parent=39 // pred_region
          %937 = sst [smem:[#allocation12]] [#allocation87]
          %938 = sst [smem:[#allocation13]] [#allocation86]
        $region196: #{tpu_custom_call.1} parent=39 // pred_fallthru
          _
        %940 = shalt.err (0)
        %s942 = sshll.u32 %s933, 4
        %s943 = int_to_ptr.hbm [resolvable:$true] %s942
        %s944 = sshll.u32 %s934, 4
        %s945 = int_to_ptr.vmem [resolvable:$true] %s944
        %947 = dma.hbm_to_vmem [thread:$0]  %s943, 16, %s945, %s859
        %s948 = scalar_lea.hbm %s1, %s838
        %s949 = scalar_lea.vmem [#allocation2], 38
        // Predicated region
        $region197: #{tpu_custom_call.1} parent=39 // pred_check
          _
        $region198: #{tpu_custom_call.1} parent=39 // pred_check_branch
          %951 = sbr.rel target = $region200
        $region199: #{tpu_custom_call.1} parent=39 // pred_region
          %952 = sst [smem:[#allocation12]] [#allocation89]
          %953 = sst [smem:[#allocation13]] [#allocation88]
        $region200: #{tpu_custom_call.1} parent=39 // pred_fallthru
          _
        %955 = shalt.err (0)
        %s957 = sshll.u32 %s948, 4
        %s958 = int_to_ptr.hbm [resolvable:$true] %s957
        %s959 = sshll.u32 %s949, 4
        %s960 = int_to_ptr.vmem [resolvable:$true] %s959
        %962 = dma.hbm_to_vmem [thread:$0]  %s958, 16, %s960, %s859
        %s963 = scalar_lea.hbm %s1, %s840
        %s964 = scalar_lea.vmem [#allocation2], 39
        // Predicated region
        $region201: #{tpu_custom_call.1} parent=39 // pred_check
          _
        $region202: #{tpu_custom_call.1} parent=39 // pred_check_branch
          %966 = sbr.rel target = $region204
        $region203: #{tpu_custom_call.1} parent=39 // pred_region
          %967 = sst [smem:[#allocation12]] [#allocation91]
          %968 = sst [smem:[#allocation13]] [#allocation90]
        $region204: #{tpu_custom_call.1} parent=39 // pred_fallthru
          _
        %970 = shalt.err (0)
        %s972 = sshll.u32 %s963, 4
        %s973 = int_to_ptr.hbm [resolvable:$true] %s972
        %s974 = sshll.u32 %s964, 4
        %s975 = int_to_ptr.vmem [resolvable:$true] %s974
        %977 = dma.hbm_to_vmem [thread:$0]  %s973, 16, %s975, %s859
        %s978 = scalar_lea.hbm %s1, %s842
        %s979 = scalar_lea.vmem [#allocation2], 40
        // Predicated region
        $region205: #{tpu_custom_call.1} parent=39 // pred_check
          _
        $region206: #{tpu_custom_call.1} parent=39 // pred_check_branch
          %981 = sbr.rel target = $region208
        $region207: #{tpu_custom_call.1} parent=39 // pred_region
          %982 = sst [smem:[#allocation12]] [#allocation93]
          %983 = sst [smem:[#allocation13]] [#allocation92]
        $region208: #{tpu_custom_call.1} parent=39 // pred_fallthru
          _
        %985 = shalt.err (0)
        %s987 = sshll.u32 %s978, 4
        %s988 = int_to_ptr.hbm [resolvable:$true] %s987
        %s989 = sshll.u32 %s979, 4
        %s990 = int_to_ptr.vmem [resolvable:$true] %s989
        %992 = dma.hbm_to_vmem [thread:$0]  %s988, 16, %s990, %s859
        %s993 = scalar_lea.hbm %s1, %s844
        %s994 = scalar_lea.vmem [#allocation2], 41
        // Predicated region
        $region209: #{tpu_custom_call.1} parent=39 // pred_check
          _
        $region210: #{tpu_custom_call.1} parent=39 // pred_check_branch
          %996 = sbr.rel target = $region212
        $region211: #{tpu_custom_call.1} parent=39 // pred_region
          %997 = sst [smem:[#allocation12]] [#allocation95]
          %998 = sst [smem:[#allocation13]] [#allocation94]
        $region212: #{tpu_custom_call.1} parent=39 // pred_fallthru
          _
        %1000 = shalt.err (0)
        %s1002 = sshll.u32 %s993, 4
        %s1003 = int_to_ptr.hbm [resolvable:$true] %s1002
        %s1004 = sshll.u32 %s994, 4
        %s1005 = int_to_ptr.vmem [resolvable:$true] %s1004
        %1007 = dma.hbm_to_vmem [thread:$0]  %s1003, 16, %s1005, %s859
        %s1008 = scalar_lea.hbm %s1, %s846
        %s1009 = scalar_lea.vmem [#allocation2], 42
        // Predicated region
        $region213: #{tpu_custom_call.1} parent=39 // pred_check
          _
        $region214: #{tpu_custom_call.1} parent=39 // pred_check_branch
          %1011 = sbr.rel target = $region216
        $region215: #{tpu_custom_call.1} parent=39 // pred_region
          %1012 = sst [smem:[#allocation12]] [#allocation97]
          %1013 = sst [smem:[#allocation13]] [#allocation96]
        $region216: #{tpu_custom_call.1} parent=39 // pred_fallthru
          _
        %1015 = shalt.err (0)
        %s1017 = sshll.u32 %s1008, 4
        %s1018 = int_to_ptr.hbm [resolvable:$true] %s1017
        %s1019 = sshll.u32 %s1009, 4
        %s1020 = int_to_ptr.vmem [resolvable:$true] %s1019
        %1022 = dma.hbm_to_vmem [thread:$0]  %s1018, 16, %s1020, %s859
        %s1023 = scalar_lea.hbm %s1, %s848
        %s1024 = scalar_lea.vmem [#allocation2], 43
        // Predicated region
        $region217: #{tpu_custom_call.1} parent=39 // pred_check
          _
        $region218: #{tpu_custom_call.1} parent=39 // pred_check_branch
          %1026 = sbr.rel target = $region220
        $region219: #{tpu_custom_call.1} parent=39 // pred_region
          %1027 = sst [smem:[#allocation12]] [#allocation99]
          %1028 = sst [smem:[#allocation13]] [#allocation98]
        $region220: #{tpu_custom_call.1} parent=39 // pred_fallthru
          _
        %1030 = shalt.err (0)
        %s1032 = sshll.u32 %s1023, 4
        %s1033 = int_to_ptr.hbm [resolvable:$true] %s1032
        %s1034 = sshll.u32 %s1024, 4
        %s1035 = int_to_ptr.vmem [resolvable:$true] %s1034
        %1037 = dma.hbm_to_vmem [thread:$0]  %s1033, 16, %s1035, %s859
        %s1038 = scalar_lea.hbm %s1, %s850
        %s1039 = scalar_lea.vmem [#allocation2], 44
        // Predicated region
        $region221: #{tpu_custom_call.1} parent=39 // pred_check
          _
        $region222: #{tpu_custom_call.1} parent=39 // pred_check_branch
          %1041 = sbr.rel target = $region224
        $region223: #{tpu_custom_call.1} parent=39 // pred_region
          %1042 = sst [smem:[#allocation12]] [#allocation101]
          %1043 = sst [smem:[#allocation13]] [#allocation100]
        $region224: #{tpu_custom_call.1} parent=39 // pred_fallthru
          _
        %1045 = shalt.err (0)
        %s1047 = sshll.u32 %s1038, 4
        %s1048 = int_to_ptr.hbm [resolvable:$true] %s1047
        %s1049 = sshll.u32 %s1039, 4
        %s1050 = int_to_ptr.vmem [resolvable:$true] %s1049
        %1052 = dma.hbm_to_vmem [thread:$0]  %s1048, 16, %s1050, %s859
        %s1053 = scalar_lea.hbm %s1, %s852
        %s1054 = scalar_lea.vmem [#allocation2], 45
        // Predicated region
        $region225: #{tpu_custom_call.1} parent=39 // pred_check
          _
        $region226: #{tpu_custom_call.1} parent=39 // pred_check_branch
          %1056 = sbr.rel target = $region228
        $region227: #{tpu_custom_call.1} parent=39 // pred_region
          %1057 = sst [smem:[#allocation12]] [#allocation103]
          %1058 = sst [smem:[#allocation13]] [#allocation102]
        $region228: #{tpu_custom_call.1} parent=39 // pred_fallthru
          _
        %1060 = shalt.err (0)
        %s1062 = sshll.u32 %s1053, 4
        %s1063 = int_to_ptr.hbm [resolvable:$true] %s1062
        %s1064 = sshll.u32 %s1054, 4
        %s1065 = int_to_ptr.vmem [resolvable:$true] %s1064
        %1067 = dma.hbm_to_vmem [thread:$0]  %s1063, 16, %s1065, %s859
        %s1068 = scalar_lea.hbm %s1, %s854
        %s1069 = scalar_lea.vmem [#allocation2], 46
        // Predicated region
        $region229: #{tpu_custom_call.1} parent=39 // pred_check
          _
        $region230: #{tpu_custom_call.1} parent=39 // pred_check_branch
          %1071 = sbr.rel target = $region232
        $region231: #{tpu_custom_call.1} parent=39 // pred_region
          %1072 = sst [smem:[#allocation12]] [#allocation105]
          %1073 = sst [smem:[#allocation13]] [#allocation104]
        $region232: #{tpu_custom_call.1} parent=39 // pred_fallthru
          _
        %1075 = shalt.err (0)
        %s1077 = sshll.u32 %s1068, 4
        %s1078 = int_to_ptr.hbm [resolvable:$true] %s1077
        %s1079 = sshll.u32 %s1069, 4
        %s1080 = int_to_ptr.vmem [resolvable:$true] %s1079
        %1082 = dma.hbm_to_vmem [thread:$0]  %s1078, 16, %s1080, %s859
        %s1083 = scalar_lea.hbm %s1, %s856
        %s1084 = scalar_lea.vmem [#allocation2], 47
        // Predicated region
        $region233: #{tpu_custom_call.1} parent=39 // pred_check
          _
        $region234: #{tpu_custom_call.1} parent=39 // pred_check_branch
          %1086 = sbr.rel target = $region236
        $region235: #{tpu_custom_call.1} parent=39 // pred_region
          %1087 = sst [smem:[#allocation12]] [#allocation107]
          %1088 = sst [smem:[#allocation13]] [#allocation106]
        $region236: #{tpu_custom_call.1} parent=39 // pred_fallthru
          _
        %1090 = shalt.err (0)
        %s1092 = sshll.u32 %s1083, 4
        %s1093 = int_to_ptr.hbm [resolvable:$true] %s1092
        %s1094 = sshll.u32 %s1084, 4
        %s1095 = int_to_ptr.vmem [resolvable:$true] %s1094
        %1097 = dma.hbm_to_vmem [thread:$0]  %s1093, 16, %s1095, %s859
        %v1098 = vld [vmem:[#allocation6] sm:$0x1]
        %v1099 = vld [vmem:[%s6] sm:$0x1]
        %v1100 = vld [vmem:[%s3] sm:$0x1]
        %v1101 = vld [vmem:[%s3 + $0x1] sm:$0x1]
        loop: start=0, step=1, limit=4
        $region237: #{tpu_custom_call.1} parent=39 // loop_pre_header
          _
        $region238: #{tpu_custom_call.1} parent=39 // loop_header
          %s1103 = sphi 0, %s1107
          %p1104 = scmp.ge.s32.totalorder %s1103, 4
        $region239: #{tpu_custom_call.1} parent=39 // loop_header_branch
          %1106 = sbr.rel (%p1104) target = $region243
        $region240: #{tpu_custom_call.1} parent=39 // loop_body
          %p1108 = scmp.lt.s32.totalorder %s1103, 0
          %s1109 = ssub.s32 0, %s1103
          %s1110 = scalar_select %p1108, %s1109, %s1103
          %s1111 = sdiv.u32.pop %s1110, 3
          %s1112 = srem.u32.pop %s1110, 3
          %s1113 = ssub.s32 0, %s1112
          %s1114 = scalar_select %p1108, %s1113, %s1112
          %p1115 = scmp.ne.s32.totalorder %s1114, 0
          %p1116 = scmp.lt.s32.totalorder %s1114, 0
          %p1117 = pnand %p1116, %p1115
          %p1118 = pneg %p1117
          %s1119 = sadd.s32 %s1114, 3
          %s1120 = scalar_select %p1118, %s1119, %s1114
          %s1121 = sadd.s32 %s1103, 3
          %p1122 = scmp.lt.s32.totalorder %s1121, 3
          %s1123 = scalar_select %p1122, %s1121, 3
          %s1124 = smul.u32 %s1123, 16
          %s1125 = sadd.s32 %s281, %s1124
          %s1126 = sld [smem:[#allocation5 + %s1125]]
          %s1127 = sadd.s32 %s1125, 1
          %s1128 = sld [smem:[#allocation5 + %s1127]]
          %s1129 = sadd.s32 %s1125, 2
          %s1130 = sld [smem:[#allocation5 + %s1129]]
          %s1131 = sadd.s32 %s1125, 3
          %s1132 = sld [smem:[#allocation5 + %s1131]]
          %s1133 = sadd.s32 %s1125, 4
          %s1134 = sld [smem:[#allocation5 + %s1133]]
          %s1135 = sadd.s32 %s1125, 5
          %s1136 = sld [smem:[#allocation5 + %s1135]]
          %s1137 = sadd.s32 %s1125, 6
          %s1138 = sld [smem:[#allocation5 + %s1137]]
          %s1139 = sadd.s32 %s1125, 7
          %s1140 = sld [smem:[#allocation5 + %s1139]]
          %s1141 = sadd.s32 %s1125, 8
          %s1142 = sld [smem:[#allocation5 + %s1141]]
          %s1143 = sadd.s32 %s1125, 9
          %s1144 = sld [smem:[#allocation5 + %s1143]]
          %s1145 = sadd.s32 %s1125, 10
          %s1146 = sld [smem:[#allocation5 + %s1145]]
          %s1147 = sadd.s32 %s1125, 11
          %s1148 = sld [smem:[#allocation5 + %s1147]]
          %s1149 = sadd.s32 %s1125, 12
          %s1150 = sld [smem:[#allocation5 + %s1149]]
          %s1151 = sadd.s32 %s1125, 13
          %s1152 = sld [smem:[#allocation5 + %s1151]]
          %s1153 = sadd.s32 %s1125, 14
          %s1154 = sld [smem:[#allocation5 + %s1153]]
          %s1155 = sadd.s32 %s1125, 15
          %s1156 = sld [smem:[#allocation5 + %s1155]]
          %s1157 = smul.u32 %s1120, 16
          %s1158 = scalar_lea.vmem [#allocation2], %s1157
          %s1159 = scalar_lea.sflag [#allocation3], %s1120
          %s1160 = smul.u32 16, 1
          %s1161 = sshll.u32 %s1160, 4
          %1162 = dma.done %s1159, %s1161
          %v1163 = vld [vmem:[%s1158] sm:$0xff]
          %v1164 = vld [vmem:[%s1158 + $0x8] sm:$0xff]
          %p1165 = scmp.lt.s32.totalorder %s1121, 4
          // Predicated region
          $region244: #{tpu_custom_call.1} parent=240 // pred_check
            %p1166 = pneg %p1165
          $region245: #{tpu_custom_call.1} parent=240 // pred_check_branch
            %1168 = sbr.rel (%p1166) target = $region247
          $region246: #{tpu_custom_call.1} parent=240 // pred_region
            %s1169 = scalar_lea.hbm %s1, %s1126
            // Predicated region
            $region248: #{tpu_custom_call.1} parent=246 // pred_check
              _
            $region249: #{tpu_custom_call.1} parent=246 // pred_check_branch
              %1171 = sbr.rel target = $region251
            $region250: #{tpu_custom_call.1} parent=246 // pred_region
              %1172 = sst [smem:[#allocation12]] [#allocation109]
              %1173 = sst [smem:[#allocation13]] [#allocation108]
            $region251: #{tpu_custom_call.1} parent=246 // pred_fallthru
              _
            %1175 = shalt.err (0)
            %s1177 = sshll.u32 %s1169, 4
            %s1178 = int_to_ptr.hbm [resolvable:$true] %s1177
            %s1179 = sshll.u32 %s1158, 4
            %s1180 = int_to_ptr.vmem [resolvable:$true] %s1179
            %1182 = dma.hbm_to_vmem [thread:$0]  %s1178, 16, %s1180, %s1159
            %s1183 = scalar_lea.hbm %s1, %s1128
            %s1184 = sadd.s32 1, %s1157
            %s1185 = scalar_lea.vmem [#allocation2], %s1184
            // Predicated region
            $region252: #{tpu_custom_call.1} parent=246 // pred_check
              _
            $region253: #{tpu_custom_call.1} parent=246 // pred_check_branch
              %1187 = sbr.rel target = $region255
            $region254: #{tpu_custom_call.1} parent=246 // pred_region
              %1188 = sst [smem:[#allocation12]] [#allocation111]
              %1189 = sst [smem:[#allocation13]] [#allocation110]
            $region255: #{tpu_custom_call.1} parent=246 // pred_fallthru
              _
            %1191 = shalt.err (0)
            %s1193 = sshll.u32 %s1183, 4
            %s1194 = int_to_ptr.hbm [resolvable:$true] %s1193
            %s1195 = sshll.u32 %s1185, 4
            %s1196 = int_to_ptr.vmem [resolvable:$true] %s1195
            %1198 = dma.hbm_to_vmem [thread:$0]  %s1194, 16, %s1196, %s1159
            %s1199 = scalar_lea.hbm %s1, %s1130
            %s1200 = sadd.s32 2, %s1157
            %s1201 = scalar_lea.vmem [#allocation2], %s1200
            // Predicated region
            $region256: #{tpu_custom_call.1} parent=246 // pred_check
              _
            $region257: #{tpu_custom_call.1} parent=246 // pred_check_branch
              %1203 = sbr.rel target = $region259
            $region258: #{tpu_custom_call.1} parent=246 // pred_region
              %1204 = sst [smem:[#allocation12]] [#allocation113]
              %1205 = sst [smem:[#allocation13]] [#allocation112]
            $region259: #{tpu_custom_call.1} parent=246 // pred_fallthru
              _
            %1207 = shalt.err (0)
            %s1209 = sshll.u32 %s1199, 4
            %s1210 = int_to_ptr.hbm [resolvable:$true] %s1209
            %s1211 = sshll.u32 %s1201, 4
            %s1212 = int_to_ptr.vmem [resolvable:$true] %s1211
            %1214 = dma.hbm_to_vmem [thread:$0]  %s1210, 16, %s1212, %s1159
            %s1215 = scalar_lea.hbm %s1, %s1132
            %s1216 = sadd.s32 3, %s1157
            %s1217 = scalar_lea.vmem [#allocation2], %s1216
            // Predicated region
            $region260: #{tpu_custom_call.1} parent=246 // pred_check
              _
            $region261: #{tpu_custom_call.1} parent=246 // pred_check_branch
              %1219 = sbr.rel target = $region263
            $region262: #{tpu_custom_call.1} parent=246 // pred_region
              %1220 = sst [smem:[#allocation12]] [#allocation115]
              %1221 = sst [smem:[#allocation13]] [#allocation114]
            $region263: #{tpu_custom_call.1} parent=246 // pred_fallthru
              _
            %1223 = shalt.err (0)
            %s1225 = sshll.u32 %s1215, 4
            %s1226 = int_to_ptr.hbm [resolvable:$true] %s1225
            %s1227 = sshll.u32 %s1217, 4
            %s1228 = int_to_ptr.vmem [resolvable:$true] %s1227
            %1230 = dma.hbm_to_vmem [thread:$0]  %s1226, 16, %s1228, %s1159
            %s1231 = scalar_lea.hbm %s1, %s1134
            %s1232 = sadd.s32 4, %s1157
            %s1233 = scalar_lea.vmem [#allocation2], %s1232
            // Predicated region
            $region264: #{tpu_custom_call.1} parent=246 // pred_check
              _
            $region265: #{tpu_custom_call.1} parent=246 // pred_check_branch
              %1235 = sbr.rel target = $region267
            $region266: #{tpu_custom_call.1} parent=246 // pred_region
              %1236 = sst [smem:[#allocation12]] [#allocation117]
              %1237 = sst [smem:[#allocation13]] [#allocation116]
            $region267: #{tpu_custom_call.1} parent=246 // pred_fallthru
              _
            %1239 = shalt.err (0)
            %s1241 = sshll.u32 %s1231, 4
            %s1242 = int_to_ptr.hbm [resolvable:$true] %s1241
            %s1243 = sshll.u32 %s1233, 4
            %s1244 = int_to_ptr.vmem [resolvable:$true] %s1243
            %1246 = dma.hbm_to_vmem [thread:$0]  %s1242, 16, %s1244, %s1159
            %s1247 = scalar_lea.hbm %s1, %s1136
            %s1248 = sadd.s32 5, %s1157
            %s1249 = scalar_lea.vmem [#allocation2], %s1248
            // Predicated region
            $region268: #{tpu_custom_call.1} parent=246 // pred_check
              _
            $region269: #{tpu_custom_call.1} parent=246 // pred_check_branch
              %1251 = sbr.rel target = $region271
            $region270: #{tpu_custom_call.1} parent=246 // pred_region
              %1252 = sst [smem:[#allocation12]] [#allocation119]
              %1253 = sst [smem:[#allocation13]] [#allocation118]
            $region271: #{tpu_custom_call.1} parent=246 // pred_fallthru
              _
            %1255 = shalt.err (0)
            %s1257 = sshll.u32 %s1247, 4
            %s1258 = int_to_ptr.hbm [resolvable:$true] %s1257
            %s1259 = sshll.u32 %s1249, 4
            %s1260 = int_to_ptr.vmem [resolvable:$true] %s1259
            %1262 = dma.hbm_to_vmem [thread:$0]  %s1258, 16, %s1260, %s1159
            %s1263 = scalar_lea.hbm %s1, %s1138
            %s1264 = sadd.s32 6, %s1157
            %s1265 = scalar_lea.vmem [#allocation2], %s1264
            // Predicated region
            $region272: #{tpu_custom_call.1} parent=246 // pred_check
              _
            $region273: #{tpu_custom_call.1} parent=246 // pred_check_branch
              %1267 = sbr.rel target = $region275
            $region274: #{tpu_custom_call.1} parent=246 // pred_region
              %1268 = sst [smem:[#allocation12]] [#allocation121]
              %1269 = sst [smem:[#allocation13]] [#allocation120]
            $region275: #{tpu_custom_call.1} parent=246 // pred_fallthru
              _
            %1271 = shalt.err (0)
            %s1273 = sshll.u32 %s1263, 4
            %s1274 = int_to_ptr.hbm [resolvable:$true] %s1273
            %s1275 = sshll.u32 %s1265, 4
            %s1276 = int_to_ptr.vmem [resolvable:$true] %s1275
            %1278 = dma.hbm_to_vmem [thread:$0]  %s1274, 16, %s1276, %s1159
            %s1279 = scalar_lea.hbm %s1, %s1140
            %s1280 = sadd.s32 7, %s1157
            %s1281 = scalar_lea.vmem [#allocation2], %s1280
            // Predicated region
            $region276: #{tpu_custom_call.1} parent=246 // pred_check
              _
            $region277: #{tpu_custom_call.1} parent=246 // pred_check_branch
              %1283 = sbr.rel target = $region279
            $region278: #{tpu_custom_call.1} parent=246 // pred_region
              %1284 = sst [smem:[#allocation12]] [#allocation123]
              %1285 = sst [smem:[#allocation13]] [#allocation122]
            $region279: #{tpu_custom_call.1} parent=246 // pred_fallthru
              _
            %1287 = shalt.err (0)
            %s1289 = sshll.u32 %s1279, 4
            %s1290 = int_to_ptr.hbm [resolvable:$true] %s1289
            %s1291 = sshll.u32 %s1281, 4
            %s1292 = int_to_ptr.vmem [resolvable:$true] %s1291
            %1294 = dma.hbm_to_vmem [thread:$0]  %s1290, 16, %s1292, %s1159
            %s1295 = scalar_lea.hbm %s1, %s1142
            %s1296 = sadd.s32 8, %s1157
            %s1297 = scalar_lea.vmem [#allocation2], %s1296
            // Predicated region
            $region280: #{tpu_custom_call.1} parent=246 // pred_check
              _
            $region281: #{tpu_custom_call.1} parent=246 // pred_check_branch
              %1299 = sbr.rel target = $region283
            $region282: #{tpu_custom_call.1} parent=246 // pred_region
              %1300 = sst [smem:[#allocation12]] [#allocation125]
              %1301 = sst [smem:[#allocation13]] [#allocation124]
            $region283: #{tpu_custom_call.1} parent=246 // pred_fallthru
              _
            %1303 = shalt.err (0)
            %s1305 = sshll.u32 %s1295, 4
            %s1306 = int_to_ptr.hbm [resolvable:$true] %s1305
            %s1307 = sshll.u32 %s1297, 4
            %s1308 = int_to_ptr.vmem [resolvable:$true] %s1307
            %1310 = dma.hbm_to_vmem [thread:$0]  %s1306, 16, %s1308, %s1159
            %s1311 = scalar_lea.hbm %s1, %s1144
            %s1312 = sadd.s32 9, %s1157
            %s1313 = scalar_lea.vmem [#allocation2], %s1312
            // Predicated region
            $region284: #{tpu_custom_call.1} parent=246 // pred_check
              _
            $region285: #{tpu_custom_call.1} parent=246 // pred_check_branch
              %1315 = sbr.rel target = $region287
            $region286: #{tpu_custom_call.1} parent=246 // pred_region
              %1316 = sst [smem:[#allocation12]] [#allocation127]
              %1317 = sst [smem:[#allocation13]] [#allocation126]
            $region287: #{tpu_custom_call.1} parent=246 // pred_fallthru
              _
            %1319 = shalt.err (0)
            %s1321 = sshll.u32 %s1311, 4
            %s1322 = int_to_ptr.hbm [resolvable:$true] %s1321
            %s1323 = sshll.u32 %s1313, 4
            %s1324 = int_to_ptr.vmem [resolvable:$true] %s1323
            %1326 = dma.hbm_to_vmem [thread:$0]  %s1322, 16, %s1324, %s1159
            %s1327 = scalar_lea.hbm %s1, %s1146
            %s1328 = sadd.s32 10, %s1157
            %s1329 = scalar_lea.vmem [#allocation2], %s1328
            // Predicated region
            $region288: #{tpu_custom_call.1} parent=246 // pred_check
              _
            $region289: #{tpu_custom_call.1} parent=246 // pred_check_branch
              %1331 = sbr.rel target = $region291
            $region290: #{tpu_custom_call.1} parent=246 // pred_region
              %1332 = sst [smem:[#allocation12]] [#allocation129]
              %1333 = sst [smem:[#allocation13]] [#allocation128]
            $region291: #{tpu_custom_call.1} parent=246 // pred_fallthru
              _
            %1335 = shalt.err (0)
            %s1337 = sshll.u32 %s1327, 4
            %s1338 = int_to_ptr.hbm [resolvable:$true] %s1337
            %s1339 = sshll.u32 %s1329, 4
            %s1340 = int_to_ptr.vmem [resolvable:$true] %s1339
            %1342 = dma.hbm_to_vmem [thread:$0]  %s1338, 16, %s1340, %s1159
            %s1343 = scalar_lea.hbm %s1, %s1148
            %s1344 = sadd.s32 11, %s1157
            %s1345 = scalar_lea.vmem [#allocation2], %s1344
            // Predicated region
            $region292: #{tpu_custom_call.1} parent=246 // pred_check
              _
            $region293: #{tpu_custom_call.1} parent=246 // pred_check_branch
              %1347 = sbr.rel target = $region295
            $region294: #{tpu_custom_call.1} parent=246 // pred_region
              %1348 = sst [smem:[#allocation12]] [#allocation131]
              %1349 = sst [smem:[#allocation13]] [#allocation130]
            $region295: #{tpu_custom_call.1} parent=246 // pred_fallthru
              _
            %1351 = shalt.err (0)
            %s1353 = sshll.u32 %s1343, 4
            %s1354 = int_to_ptr.hbm [resolvable:$true] %s1353
            %s1355 = sshll.u32 %s1345, 4
            %s1356 = int_to_ptr.vmem [resolvable:$true] %s1355
            %1358 = dma.hbm_to_vmem [thread:$0]  %s1354, 16, %s1356, %s1159
            %s1359 = scalar_lea.hbm %s1, %s1150
            %s1360 = sadd.s32 12, %s1157
            %s1361 = scalar_lea.vmem [#allocation2], %s1360
            // Predicated region
            $region296: #{tpu_custom_call.1} parent=246 // pred_check
              _
            $region297: #{tpu_custom_call.1} parent=246 // pred_check_branch
              %1363 = sbr.rel target = $region299
            $region298: #{tpu_custom_call.1} parent=246 // pred_region
              %1364 = sst [smem:[#allocation12]] [#allocation133]
              %1365 = sst [smem:[#allocation13]] [#allocation132]
            $region299: #{tpu_custom_call.1} parent=246 // pred_fallthru
              _
            %1367 = shalt.err (0)
            %s1369 = sshll.u32 %s1359, 4
            %s1370 = int_to_ptr.hbm [resolvable:$true] %s1369
            %s1371 = sshll.u32 %s1361, 4
            %s1372 = int_to_ptr.vmem [resolvable:$true] %s1371
            %1374 = dma.hbm_to_vmem [thread:$0]  %s1370, 16, %s1372, %s1159
            %s1375 = scalar_lea.hbm %s1, %s1152
            %s1376 = sadd.s32 13, %s1157
            %s1377 = scalar_lea.vmem [#allocation2], %s1376
            // Predicated region
            $region300: #{tpu_custom_call.1} parent=246 // pred_check
              _
            $region301: #{tpu_custom_call.1} parent=246 // pred_check_branch
              %1379 = sbr.rel target = $region303
            $region302: #{tpu_custom_call.1} parent=246 // pred_region
              %1380 = sst [smem:[#allocation12]] [#allocation135]
              %1381 = sst [smem:[#allocation13]] [#allocation134]
            $region303: #{tpu_custom_call.1} parent=246 // pred_fallthru
              _
            %1383 = shalt.err (0)
            %s1385 = sshll.u32 %s1375, 4
            %s1386 = int_to_ptr.hbm [resolvable:$true] %s1385
            %s1387 = sshll.u32 %s1377, 4
            %s1388 = int_to_ptr.vmem [resolvable:$true] %s1387
            %1390 = dma.hbm_to_vmem [thread:$0]  %s1386, 16, %s1388, %s1159
            %s1391 = scalar_lea.hbm %s1, %s1154
            %s1392 = sadd.s32 14, %s1157
            %s1393 = scalar_lea.vmem [#allocation2], %s1392
            // Predicated region
            $region304: #{tpu_custom_call.1} parent=246 // pred_check
              _
            $region305: #{tpu_custom_call.1} parent=246 // pred_check_branch
              %1395 = sbr.rel target = $region307
            $region306: #{tpu_custom_call.1} parent=246 // pred_region
              %1396 = sst [smem:[#allocation12]] [#allocation137]
              %1397 = sst [smem:[#allocation13]] [#allocation136]
            $region307: #{tpu_custom_call.1} parent=246 // pred_fallthru
              _
            %1399 = shalt.err (0)
            %s1401 = sshll.u32 %s1391, 4
            %s1402 = int_to_ptr.hbm [resolvable:$true] %s1401
            %s1403 = sshll.u32 %s1393, 4
            %s1404 = int_to_ptr.vmem [resolvable:$true] %s1403
            %1406 = dma.hbm_to_vmem [thread:$0]  %s1402, 16, %s1404, %s1159
            %s1407 = scalar_lea.hbm %s1, %s1156
            %s1408 = sadd.s32 15, %s1157
            %s1409 = scalar_lea.vmem [#allocation2], %s1408
            // Predicated region
            $region308: #{tpu_custom_call.1} parent=246 // pred_check
              _
            $region309: #{tpu_custom_call.1} parent=246 // pred_check_branch
              %1411 = sbr.rel target = $region311
            $region310: #{tpu_custom_call.1} parent=246 // pred_region
              %1412 = sst [smem:[#allocation12]] [#allocation139]
              %1413 = sst [smem:[#allocation13]] [#allocation138]
            $region311: #{tpu_custom_call.1} parent=246 // pred_fallthru
              _
            %1415 = shalt.err (0)
            %s1417 = sshll.u32 %s1407, 4
            %s1418 = int_to_ptr.hbm [resolvable:$true] %s1417
            %s1419 = sshll.u32 %s1409, 4
            %s1420 = int_to_ptr.vmem [resolvable:$true] %s1419
            %1422 = dma.hbm_to_vmem [thread:$0]  %s1418, 16, %s1420, %s1159
          $region247: #{tpu_custom_call.1} parent=240 // pred_fallthru
            _
          %s1423 = smul.u32 %s1103, 16
          %s1424 = sadd.s32 %s280, %s1423
          %s1425 = scalar_lea.vmem %s276, %s1423
          %v1426 = vld [vmem:[%s1425] sm:$0xff]
          %v1427 = vld [vmem:[%s1425 + $0x8] sm:$0xff]
          %vm1428 = vcmp.eq.s32.totalorder %v1426, 0
          %vm1429 = vcmp.eq.s32.totalorder %v1427, 0
          %v1430 = vsel %vm1428, 1, 0
          %v1431 = vsel %vm1429, 1, 0
          %1432 = vset.pattern.permute.xlu0 0
          %1433 = vperm.xlu0 %1432, %v1430
          %v1434 = vpop.permute.xlu0 %1433
          %1435 = vset.pattern.permute.xlu0 0
          %1436 = vperm.xlu0 %1435, %v1431
          %v1437 = vpop.permute.xlu0 %1436
          %vm1438 = vcmp.eq.s32.totalorder %v1434, 1
          %vm1439 = vcmp.eq.s32.totalorder %v1437, 1
          %v1440 = vperm.slane %v1100, 0
          %v1441 = vperm.slane %v1101, 0
          %v1442 = vsel %vm1438, %v1440, %v1441
          %v1443 = vsel %vm1439, %v1440, %v1441
          %s1444 = scalar_lea.vmem %s2, %s1424
          %v1445 = vld [vmem:[%s1444] sm:$0xff]
          %v1446 = vld [vmem:[%s1444 + $0x8] sm:$0xff]
          %v1447 = vadd.f32 %v1163, %v1445
          %v1448 = vadd.f32 %v1164, %v1446
          %v1449 = vadd.f32 %v1447, %v1442
          %v1450 = vadd.f32 %v1448, %v1443
          %1451 = vadd.xlane.f32.xlu0 %v1449
          %v1452 = vpop.xlane.xlu0 %1451
          %1453 = vadd.xlane.f32.xlu0 %v1450
          %v1454 = vpop.xlane.xlu0 %1453
          %v1455 = vmul.f32 %v1449, %v1449
          %v1456 = vmul.f32 %v1450, %v1450
          %1457 = vadd.xlane.f32.xlu0 %v1455
          %v1458 = vpop.xlane.xlu0 %1457
          %1459 = vadd.xlane.f32.xlu0 %v1456
          %v1460 = vpop.xlane.xlu0 %1459
          %v1461 = vmul.f32 %v1452, 0.0078125
          %v1462 = vmul.f32 %v1454, 0.0078125
          %v1463 = vmul.f32 %v1458, 0.0078125
          %v1464 = vmul.f32 %v1460, 0.0078125
          %v1465 = vmul.f32 %v1461, %v1461
          %v1466 = vmul.f32 %v1462, %v1462
          %v1467 = vsub.f32 %v1463, %v1465
          %v1468 = vsub.f32 %v1464, %v1466
          %v1469 = vmax.f32 %v1467, 0.0
          %v1470 = vmax.f32 %v1468, 0.0
          %v1471 = vsub.f32 %v1449, %v1461
          %v1472 = vsub.f32 %v1450, %v1462
          %v1473 = vadd.f32 %v1469, 1e-12
          %v1474 = vadd.f32 %v1470, 1e-12
          %v1475 = vrsqrt.pop %v1473
          %v1476 = vmul.f32 %v1475, %v1473
          %v1477 = vmul.f32 %v1476, %v1475
          %v1478 = vmul.f32 0.5, %v1477
          %v1479 = vsub.f32 1.5, %v1478
          %v1480 = vmul.f32 %v1475, %v1479
          %vm1481 = vweird.f32 %v1473
          %vm1482 = vweird.f32 %v1475
          %vm1483 = vmor %vm1481, %vm1482
          %v1484 = vsel %vm1483, %v1475, %v1480
          %v1485 = vrsqrt.pop %v1474
          %v1486 = vmul.f32 %v1485, %v1474
          %v1487 = vmul.f32 %v1486, %v1485
          %v1488 = vmul.f32 0.5, %v1487
          %v1489 = vsub.f32 1.5, %v1488
          %v1490 = vmul.f32 %v1485, %v1489
          %vm1491 = vweird.f32 %v1474
          %vm1492 = vweird.f32 %v1485
          %vm1493 = vmor %vm1491, %vm1492
          %v1494 = vsel %vm1493, %v1485, %v1490
          %v1495 = vmul.f32 %v1471, %v1484
          %v1496 = vmul.f32 %v1472, %v1494
          %v1498 = vperm.slane %v1098, 0
          %v1500 = vmul.f32 %v1495, %v1498
          %v1501 = vmul.f32 %v1496, %v1498
          %v1503 = vperm.slane %v1099, 0
          %v1505 = vadd.f32 %v1500, %v1503
          %v1506 = vadd.f32 %v1501, %v1503
          %s1507 = scalar_lea.vmem %s267, %s1423 [#allocation9]
          %1508 = vst [vmem:[%s1507] sm:$0xff] %v1505
          %1509 = vst [vmem:[%s1507 + $0x8] sm:$0xff] %v1506
        $region241: #{tpu_custom_call.1} parent=39 // loop_footer
          %s1107 = sadd.s32 1, %s1103
        $region242: #{tpu_custom_call.1} parent=39 // loop_footer_branch
          %1102 = sbr.rel target = $region238
        $region243: #{tpu_custom_call.1} parent=39 // loop_exit
          _
        %s1510 = sand.u32 %s164, 1
        %s1511 = scalar_lea.sflag [#allocation8], %s1510
        %s1512 = sand.u32 %s164, 1
        %s1513 = smul.addr %s1512, 64
        %s1514 = scalar_lea.vmem [#allocation9], %s1513
        // Predicated region
        $region312: #{tpu_custom_call.1} parent=39 // pred_check
          %p1515 = pneg %p174
        $region313: #{tpu_custom_call.1} parent=39 // pred_check_branch
          %1517 = sbr.rel (%p1515) target = $region315
        $region314: #{tpu_custom_call.1} parent=39 // pred_region
          %s1518 = smul.u32 8, %s35
          %1520 = vsyncadd %s1511, 0
          %s1521 = smul.addr %s34, 8
          %s1522 = sadd.s32 %s1518, %s1521
          %s1523 = smul.addr %s1522, 8
          %s1524 = scalar_lea.hbm %s7, %s1523
          %s1525 = sshll.u32 %s1514, 4
          %s1526 = int_to_ptr.vmem [resolvable:$true] %s1525
          %s1527 = sshll.u32 %s1524, 4
          %s1528 = int_to_ptr.hbm [resolvable:$true] %s1527
          %1533 = dma.vmem_to_hbm [thread:$0]  %s1526, 1024, %s1528, %s1511, 128, 128, 8
        $region315: #{tpu_custom_call.1} parent=39 // pred_fallthru
          _
      $region40: #{tpu_custom_call.1} parent=5 // pred_fallthru
        _
      %p1534 = scmp.le.s32.totalorder 2, %s25
      // Predicated region
      $region316: #{tpu_custom_call.1} parent=5 // pred_check
        %p1535 = pneg %p1534
      $region317: #{tpu_custom_call.1} parent=5 // pred_check_branch
        %1537 = sbr.rel (%p1535) target = $region319
      $region318: #{tpu_custom_call.1} parent=5 // pred_region
        %s1538 = ssub.s32 %s25, 2
        // Predicated region
        $region320: #{tpu_custom_call.1} parent=318 // pred_check
          %p1539 = pneg %p180
        $region321: #{tpu_custom_call.1} parent=318 // pred_check_branch
          %1541 = sbr.rel (%p1539) target = $region323
        $region322: #{tpu_custom_call.1} parent=318 // pred_region
          %s1542 = sand.u32 %s165, 1
          %s1543 = scalar_lea.sflag [#allocation8], %s1542
          %s1544 = sand.u32 %s165, 1
          %s1545 = smul.addr %s1544, 64
          %s1546 = scalar_lea.vmem [#allocation9], %s1545
          %1548 = dma.done %s1543, 1024
        $region323: #{tpu_custom_call.1} parent=318 // pred_fallthru
          _
      $region319: #{tpu_custom_call.1} parent=5 // pred_fallthru
        _
    $region6: #{tpu_custom_call.1} parent=1 // loop_footer
      %s29 = sadd.s32 1, %s25
    $region7: #{tpu_custom_call.1} parent=1 // loop_footer_branch
      %24 = sbr.rel target = $region3
    $region8: #{tpu_custom_call.1} parent=1 // loop_exit
      _
    %1549 = vsyncpa [#allocation7], 1
    %s1550 = scalar_lea.sflag [#allocation7], 1
    %1551 = vsyncpa %s1550, 1
    %1552 = vsyncpa [#allocation8], 1
    %s1553 = scalar_lea.sflag [#allocation8], 1
    %1554 = vsyncpa %s1553, 1
  %1555 = vsyncmov [#allocation3]
  %s1556 = vpop.sfrf %1555
  %p1557 = scmp.eq.s32.totalorder %s1556, 0
  %p1558 = pneg %p1557
  %1560 = shalt.err (%p1558)
  %s1561 = scalar_lea.sflag [#allocation3], 1
  %1562 = vsyncmov %s1561
  %s1563 = vpop.sfrf %1562
  %p1564 = scmp.eq.s32.totalorder %s1563, 0
  %p1565 = pneg %p1564
  %1567 = shalt.err (%p1565)
  %s1568 = scalar_lea.sflag [#allocation3], 2
  %1569 = vsyncmov %s1568
  %s1570 = vpop.sfrf %1569
  %p1571 = scmp.eq.s32.totalorder %s1570, 0
  %p1572 = pneg %p1571
  %1574 = shalt.err (%p1572)

</llo_original>
